<compile_context>
chip_gen: v7x
topology: tpu7x:2x2x1
jax: 0.10.0
libtpu: 0.0.40
codegen_flags: <defaults>
</compile_context>

<pallas_src>
import functools
import math

import jax
import jax.numpy as jnp
from jax.experimental import pallas as pl
from jax.experimental.pallas import tpu as pltpu

_PREC = jax.lax.Precision.HIGHEST
_OUT_PREC = _PREC  # see TODO(synk) above: DEFAULT is the cheap option if tolerated


def _gat_kernel(h_all_ref, h_q_ref, adj_ref, w_ref, aproj_ref, bias_ref,
                out_ref, attn_ref, *, n_head, f_out):
    # h_all_ref : (1, n, f_in)      all rows of this batch element (keys / values)
    # h_q_ref   : (1, tq, f_in)     query-row tile
    # adj_ref   : (1, tq, n)        adjacency rows of the query tile (any dtype)
    # w_ref     : (f_in, H*f_out)   all heads fused
    # aproj_ref : (H*f_out, 2H)     block-diag [a_src | a_dst]
    # bias_ref  : (1, H*f_out)
    # out_ref   : (1, tq, H*f_out)  lane-dense output slab
    # attn_ref  : (1, H, tq, n)     attention weights
    w_all = w_ref[...]

    # Fused-head projection: MXU matmuls with H*f_out output lanes.
    # (hp_all is recomputed per query tile; n*f_in*HF flops -- negligible vs the
    #  H*n^2 elementwise/softmax work and it keeps the grid fully parallel.)
    hp_all = jnp.dot(h_all_ref[0], w_all,
                     preferred_element_type=jnp.float32, precision=_PREC)   # (n, HF)
    hp_q = jnp.dot(h_q_ref[0], w_all,
                   preferred_element_type=jnp.float32, precision=_PREC)     # (tq, HF)

    # a_src / a_dst projections folded into the MXU (block-diagonal a_proj).
    scores_q = jnp.dot(hp_q, aproj_ref[...],
                       preferred_element_type=jnp.float32, precision=_PREC)    # (tq, 2H)
    scores_all = jnp.dot(hp_all, aproj_ref[...],
                         preferred_element_type=jnp.float32, precision=_PREC)  # (n, 2H)

    # Batched-over-heads logits stack: logits[h, q, k] = src[q, h] + dst[k, h].
    src3 = scores_q[:, :n_head].T[:, :, None]        # (H, tq, 1)
    dst3 = scores_all[:, n_head:].T[:, None, :]      # (H, 1, n)
    logits = src3 + dst3                             # (H, tq, n)

    # LeakyReLU(negative_slope=0.2): mul + max.
    logits = jnp.maximum(logits, 0.2 * logits)

    # Adjacency mask hoisted out of the head dimension, additive form (one add per
    # element per head instead of compare+select).
    adj_bias = jnp.where(adj_ref[0] != 0, jnp.float32(0.0), jnp.float32(-1e12))
    logits = logits + adj_bias[None, :, :]

    # Softmax over the key axis for all heads at once; normalize via a (H, tq, 1)
    # reciprocal multiply instead of n^2 divides per head.
    m = jnp.max(logits, axis=-1, keepdims=True)
    p = jnp.exp(logits - m)
    inv = 1.0 / jnp.sum(p, axis=-1, keepdims=True)
    attn3 = p * inv                                   # (H, tq, n)

    # TODO(synk): attn_dropout is identity here (inference / eval mode).
    attn_ref[0] = attn3.astype(attn_ref.dtype)

    # Per-head value matmul (only f_out of the MXU output lanes -- not the
    # bottleneck while the kernel is HBM/EUP-bound on the attn stream).  Head
    # outputs are tiny (tq, f_out) tiles; one full-width unmasked store at the end.
    outs = []
    for hd in range(n_head):
        lo = hd * f_out
        outs.append(jnp.dot(attn3[hd], hp_all[:, lo:lo + f_out],
                            preferred_element_type=jnp.float32,
                            precision=_OUT_PREC))
    out_all = jnp.concatenate(outs, axis=-1) + bias_ref[...]   # (tq, HF), lane-dense
    out_ref[0] = out_all.astype(out_ref.dtype)


def _vmem_limit_bytes():
    """Generation-aware scoped-VMEM limit: ~3/4 of physical VMEM."""
    try:
        cap = int(pltpu.get_tpu_info().vmem_capacity_bytes)   # v5e/v6e 128MiB, v7x 64MiB
    except Exception:
        cap = 64 * 1024 * 1024   # conservative fallback (v7x-sized)
    return (cap // 4) * 3


def _pick_tq(n, n_head, f_out, adj_itemsize, vmem_limit):
    """Largest query tile that divides n, is a multiple of 8 (layout rule), and keeps
    double-buffered tiles + f32 intermediates within ~half the scoped-VMEM budget."""
    if n <= 128:
        return n
    hf = n_head * f_out
    per_row = (2 * (adj_itemsize * n + 4 * n_head * n + 4 * hf)   # DMA'd tiles, x2 buf
               + 3 * 4 * n_head * n)                              # logits / exp / attn stack
    budget = max(vmem_limit // 2, 1 << 20)
    max_tq = max(8, min(1024, budget // per_row))
    max_tq -= max_tq % 8
    for cand in range(max_tq, 7, -8):
        if n % cand == 0:
            return cand
    # TODO(synk): masked / ragged query tiling for n not divisible by 8.
    return n


def batch_multi_head_graph_attention(h, adj, w, a_src, a_dst, bias=None, *,
                                     tq=None, vmem_limit_bytes=None):
    """h: (bs, n, f_in) f32; adj: (bs, n, n) -- any dtype (only compared against 0,
    so bf16/int8 adjacency shrinks the HBM read stream); w: (n_head, f_in, f_out);
    a_src/a_dst: (n_head, f_out, 1); bias: (f_out,) or None.
    Returns (out (bs, n_head, n, f_out), attn (bs, n_head, n, n))."""
    bs, n, f_in = h.shape
    n_head, _, f_out = w.shape
    hf = n_head * f_out

    if vmem_limit_bytes is None:
        vmem_limit_bytes = _vmem_limit_bytes()
    if tq is None or tq > n or n % tq != 0:
        tq = _pick_tq(n, n_head, f_out, jnp.dtype(adj.dtype).itemsize,
                      vmem_limit_bytes)
    n_q = n // tq

    # Wrapper-side layout plumbing (no hot-path compute):
    # Fused weight matrix: column hd*f_out + j holds w[hd, :, j].
    w_all = jnp.transpose(w, (1, 0, 2)).reshape(f_in, hf)
    # Block-diagonal projection matrix (hf, 2H):
    #   rows hd*f_out..(hd+1)*f_out, col hd     -> a_src[hd]
    #   rows hd*f_out..(hd+1)*f_out, col H + hd -> a_dst[hd]
    eye_h = jnp.eye(n_head, dtype=jnp.float32)
    src_blk = (a_src[..., 0][:, :, None] * eye_h[:, None, :]).reshape(hf, n_head)
    dst_blk = (a_dst[..., 0][:, :, None] * eye_h[:, None, :]).reshape(hf, n_head)
    a_proj = jnp.concatenate([src_blk, dst_blk], axis=1)          # (hf, 2H)
    if bias is None:
        bias = jnp.zeros((f_out,), jnp.float32)
    bias_all = jnp.tile(bias, n_head).reshape(1, hf)

    kernel = functools.partial(_gat_kernel, n_head=n_head, f_out=f_out)

    out_shape = (
        jax.ShapeDtypeStruct((bs, n, hf), jnp.float32),          # lane-dense out slab
        jax.ShapeDtypeStruct((bs, n_head, n, n), jnp.float32),   # attention weights
    )

    fn = pl.pallas_call(
        kernel,
        out_shape=out_shape,
        grid_spec=pltpu.PrefetchScalarGridSpec(
            num_scalar_prefetch=0,
            grid=(bs, n_q),
            in_specs=[
                pl.BlockSpec((1, n, f_in), lambda b, q: (b, 0, 0)),      # h (all rows)
                pl.BlockSpec((1, tq, f_in), lambda b, q: (b, q, 0)),     # h (query rows)
                pl.BlockSpec((1, tq, n), lambda b, q: (b, q, 0)),        # adj rows
                pl.BlockSpec((f_in, hf), lambda b, q: (0, 0)),           # w_all
                pl.BlockSpec((hf, 2 * n_head), lambda b, q: (0, 0)),     # a_proj
                pl.BlockSpec((1, hf), lambda b, q: (0, 0)),              # bias
            ],
            out_specs=[
                pl.BlockSpec((1, tq, hf), lambda b, q: (b, q, 0)),
                pl.BlockSpec((1, n_head, tq, n), lambda b, q: (b, 0, q, 0)),
            ],
        ),
        compiler_params=pltpu.CompilerParams(
            dimension_semantics=("parallel", "parallel"),
            vmem_limit_bytes=int(vmem_limit_bytes)),
    )
    out_all, attn = fn(h, h, adj, w_all, a_proj, bias_all)

    # (bs, n, n_head*f_out) -> (bs, n_head, n, f_out)
    out = out_all.reshape(bs, n, n_head, f_out).transpose(0, 2, 1, 3)
    return out, attn


def _xavier_uniform(key, shape, gain):
    # PyTorch fan convention for >=2D tensors.
    rf = 1
    for d in shape[2:]:
        rf *= d
    fan_in = shape[1] * rf
    fan_out = shape[0] * rf
    bound = gain * math.sqrt(6.0 / (fan_in + fan_out))
    return jax.random.uniform(key, shape, jnp.float32, -bound, bound)


def _reference(h, adj, w, a_src, a_dst, bias):
    # Pure-JAX reference of the PyTorch forward (eval mode), f32 precision.
    h_prime = jnp.einsum('bnf,hfo->bhno', h, w, precision=_PREC)
    attn_src = jnp.einsum('bhno,hoz->bhnz', h_prime, a_src, precision=_PREC)
    attn_dst = jnp.einsum('bhno,hoz->bhnz', h_prime, a_dst, precision=_PREC)
    attn = attn_src + jnp.swapaxes(attn_dst, -1, -2)
    attn = jnp.where(attn > 0, attn, 0.2 * attn)
    attn = jnp.where(adj[:, None, :, :] == 0, -1e12, attn)
    attn = jax.nn.softmax(attn, axis=-1)
    out = jnp.einsum('bhnm,bhmo->bhno', attn, h_prime, precision=_PREC) + bias
    return out, attn


if __name__ == "__main__":
    key = jax.random.PRNGKey(0)
    bs, n, f_in, f_out, n_head = 2, 8, 16, 32, 4

    k_h, k_adj, k_w, k_as, k_ad = jax.random.split(key, 5)

    h = jax.random.normal(k_h, (bs, n, f_in), jnp.float32)
    adj = (jax.random.uniform(k_adj, (bs, n, n)) > 0.3).astype(jnp.float32)
    # ensure self-loops so every row has at least one unmasked entry
    adj = jnp.maximum(adj, jnp.eye(n, dtype=jnp.float32)[None])

    gain = 1.414
    w = _xavier_uniform(k_w, (n_head, f_in, f_out), gain)
    a_src = _xavier_uniform(k_as, (n_head, f_out, 1), gain)
    a_dst = _xavier_uniform(k_ad, (n_head, f_out, 1), gain)
    bias = jnp.zeros((f_out,), jnp.float32)

    out, attn = batch_multi_head_graph_attention(h, adj, w, a_src, a_dst, bias)
    jax.block_until_ready((out, attn))

    out_ref, attn_ref = _reference(h, adj, w, a_src, a_dst, bias)
    assert out.shape == (bs, n_head, n, f_out)
    assert attn.shape == (bs, n_head, n, n)
    assert jnp.allclose(out, out_ref, atol=1e-3, rtol=1e-3), (
        float(jnp.max(jnp.abs(out - out_ref))))
    assert jnp.allclose(attn, attn_ref, atol=1e-4, rtol=1e-3), (
        float(jnp.max(jnp.abs(attn - attn_ref))))

    print("KERNEL_OK")
</pallas_src>

<mosaic_0001>
module attributes {stable_mosaic.version = 11 : i64} {
  func.func @_gat_kernel(%arg0: i32, %arg1: i32, %arg2: memref<1x8x16xf32, #tpu.memory_space<vmem>>, %arg3: memref<1x8x16xf32, #tpu.memory_space<vmem>>, %arg4: memref<1x8x8xf32, #tpu.memory_space<vmem>>, %arg5: memref<16x128xf32, #tpu.memory_space<vmem>>, %arg6: memref<128x8xf32, #tpu.memory_space<vmem>>, %arg7: memref<1x128xf32, #tpu.memory_space<vmem>>, %arg8: memref<1x8x128xf32, #tpu.memory_space<vmem>>, %arg9: memref<1x4x8x8xf32, #tpu.memory_space<vmem>>) attributes {dimension_semantics = [#tpu.dimension_semantics<parallel>, #tpu.dimension_semantics<parallel>], iteration_bounds = array<i64: 2, 1>, scalar_prefetch = 0 : i64, scratch_operands = 0 : i64, tpu.core_type = #tpu.core_type<tc>, window_params = [{transform_indices = @transform_0, window_bounds = array<i64: 1, 8, 16>}, {transform_indices = @transform_1, window_bounds = array<i64: 1, 8, 16>}, {transform_indices = @transform_2, window_bounds = array<i64: 1, 8, 8>}, {pipeline_mode = #tpu.pipeline_mode<synchronous>, transform_indices = @transform_3, window_bounds = array<i64: 16, 128>}, {pipeline_mode = #tpu.pipeline_mode<synchronous>, transform_indices = @transform_4, window_bounds = array<i64: 128, 8>}, {pipeline_mode = #tpu.pipeline_mode<synchronous>, transform_indices = @transform_5, window_bounds = array<i64: 1, 128>}, {transform_indices = @transform_6, window_bounds = array<i64: 1, 8, 128>}, {transform_indices = @transform_7, window_bounds = array<i64: 1, 4, 8, 8>}]} {
    %c0 = arith.constant 0 : index
    %c0_0 = arith.constant 0 : index
    %0 = vector.load %arg5[%c0, %c0_0] : memref<16x128xf32, #tpu.memory_space<vmem>>, vector<16x128xf32>
    %c0_1 = arith.constant 0 : index
    %c0_2 = arith.constant 0 : index
    %c0_3 = arith.constant 0 : index
    %1 = vector.load %arg2[%c0_1, %c0_2, %c0_3] : memref<1x8x16xf32, #tpu.memory_space<vmem>>, vector<1x8x16xf32>
    %2 = vector.shape_cast %1 : vector<1x8x16xf32> to vector<8x16xf32>
    %cst = arith.constant dense<0.000000e+00> : vector<8x128xf32>
    %3 = tpu.matmul %2, %0, %cst {dimension_numbers = #tpu.dot_dimension_numbers<[1], [0], [0], [1], [0, 0, 1, 1], [], []>, precision = #tpu.contract_precision<fp32>} : vector<8x16xf32>, vector<16x128xf32>, vector<8x128xf32> -> vector<8x128xf32>
    %c0_4 = arith.constant 0 : index
    %c0_5 = arith.constant 0 : index
    %c0_6 = arith.constant 0 : index
    %4 = vector.load %arg3[%c0_4, %c0_5, %c0_6] : memref<1x8x16xf32, #tpu.memory_space<vmem>>, vector<1x8x16xf32>
    %5 = vector.shape_cast %4 : vector<1x8x16xf32> to vector<8x16xf32>
    %cst_7 = arith.constant dense<0.000000e+00> : vector<8x128xf32>
    %6 = tpu.matmul %5, %0, %cst_7 {dimension_numbers = #tpu.dot_dimension_numbers<[1], [0], [0], [1], [0, 0, 1, 1], [], []>, precision = #tpu.contract_precision<fp32>} : vector<8x16xf32>, vector<16x128xf32>, vector<8x128xf32> -> vector<8x128xf32>
    %c0_8 = arith.constant 0 : index
    %c0_9 = arith.constant 0 : index
    %7 = vector.load %arg6[%c0_8, %c0_9] : memref<128x8xf32, #tpu.memory_space<vmem>>, vector<128x8xf32>
    %cst_10 = arith.constant dense<0.000000e+00> : vector<8x8xf32>
    %8 = tpu.matmul %6, %7, %cst_10 {dimension_numbers = #tpu.dot_dimension_numbers<[1], [0], [0], [1], [0, 0, 1, 1], [], []>, precision = #tpu.contract_precision<fp32>} : vector<8x128xf32>, vector<128x8xf32>, vector<8x8xf32> -> vector<8x8xf32>
    %c0_11 = arith.constant 0 : index
    %c0_12 = arith.constant 0 : index
    %9 = vector.load %arg6[%c0_11, %c0_12] : memref<128x8xf32, #tpu.memory_space<vmem>>, vector<128x8xf32>
    %cst_13 = arith.constant dense<0.000000e+00> : vector<8x8xf32>
    %10 = tpu.matmul %3, %9, %cst_13 {dimension_numbers = #tpu.dot_dimension_numbers<[1], [0], [0], [1], [0, 0, 1, 1], [], []>, precision = #tpu.contract_precision<fp32>} : vector<8x128xf32>, vector<128x8xf32>, vector<8x8xf32> -> vector<8x8xf32>
    %11 = vector.extract_strided_slice %8 {offsets = [0, 0], sizes = [8, 4], strides = [1, 1]} : vector<8x8xf32> to vector<8x4xf32>
    %12 = tpu.transpose %11, [1, 0] : vector<8x4xf32> -> vector<4x8xf32>
    %13 = vector.shape_cast %12 : vector<4x8xf32> to vector<4x8x1xf32>
    %14 = vector.extract_strided_slice %10 {offsets = [0, 4], sizes = [8, 4], strides = [1, 1]} : vector<8x8xf32> to vector<8x4xf32>
    %15 = tpu.transpose %14, [1, 0] : vector<8x4xf32> -> vector<4x8xf32>
    %16 = vector.shape_cast %15 : vector<4x8xf32> to vector<4x1x8xf32>
    %17 = vector.broadcast %13 : vector<4x8x1xf32> to vector<4x8x8xf32>
    %18 = vector.broadcast %16 : vector<4x1x8xf32> to vector<4x8x8xf32>
    %19 = arith.addf %17, %18 : vector<4x8x8xf32>
    %cst_14 = arith.constant 2.000000e-01 : f32
    %20 = vector.broadcast %cst_14 : f32 to vector<4x8x8xf32>
    %21 = arith.mulf %20, %19 : vector<4x8x8xf32>
    %22 = arith.maximumf %19, %21 : vector<4x8x8xf32>
    %c0_15 = arith.constant 0 : index
    %c0_16 = arith.constant 0 : index
    %c0_17 = arith.constant 0 : index
    %23 = vector.load %arg4[%c0_15, %c0_16, %c0_17] : memref<1x8x8xf32, #tpu.memory_space<vmem>>, vector<1x8x8xf32>
    %24 = vector.shape_cast %23 : vector<1x8x8xf32> to vector<8x8xf32>
    %cst_18 = arith.constant 0.000000e+00 : f32
    %25 = vector.broadcast %cst_18 : f32 to vector<8x8xf32>
    %26 = arith.cmpf one, %24, %25 : vector<8x8xf32>
    %cst_19 = arith.constant 0.000000e+00 : f32
    %cst_20 = arith.constant -9.99999995E+11 : f32
    %27 = vector.broadcast %cst_19 : f32 to vector<8x8xf32>
    %28 = vector.broadcast %cst_20 : f32 to vector<8x8xf32>
    %29 = arith.select %26, %27, %28 : vector<8x8xi1>, vector<8x8xf32>
    %30 = vector.shape_cast %29 : vector<8x8xf32> to vector<1x8x8xf32>
    %31 = vector.broadcast %30 : vector<1x8x8xf32> to vector<4x8x8xf32>
    %32 = arith.addf %22, %31 : vector<4x8x8xf32>
    %cst_21 = arith.constant dense<0xFF800000> : vector<4x8xf32>
    %33 = vector.multi_reduction <maximumf>, %32, %cst_21 [2] : vector<4x8x8xf32> to vector<4x8xf32>
    %34 = vector.shape_cast %33 : vector<4x8xf32> to vector<4x8x1xf32>
    %35 = vector.broadcast %34 : vector<4x8x1xf32> to vector<4x8x8xf32>
    %36 = arith.subf %32, %35 : vector<4x8x8xf32>
    %37 = math.exp %36 : vector<4x8x8xf32>
    %cst_22 = arith.constant dense<0.000000e+00> : vector<4x8xf32>
    %38 = vector.multi_reduction <add>, %37, %cst_22 [2] : vector<4x8x8xf32> to vector<4x8xf32>
    %39 = vector.shape_cast %38 : vector<4x8xf32> to vector<4x8x1xf32>
    %cst_23 = arith.constant 1.000000e+00 : f32
    %40 = vector.broadcast %cst_23 : f32 to vector<4x8x1xf32>
    %41 = arith.divf %40, %39 : vector<4x8x1xf32>
    %42 = vector.broadcast %41 : vector<4x8x1xf32> to vector<4x8x8xf32>
    %43 = arith.mulf %37, %42 : vector<4x8x8xf32>
    %c0_24 = arith.constant 0 : index
    %c0_25 = arith.constant 0 : index
    %c0_26 = arith.constant 0 : index
    %c0_27 = arith.constant 0 : index
    %44 = vector.load %arg9[%c0_24, %c0_25, %c0_26, %c0_27] : memref<1x4x8x8xf32, #tpu.memory_space<vmem>>, vector<1x4x8x8xf32>
    %45 = vector.shape_cast %44 : vector<1x4x8x8xf32> to vector<4x8x8xf32>
    %46 = vector.shape_cast %43 : vector<4x8x8xf32> to vector<1x4x8x8xf32>
    tpu.vector_store %arg9[%c0_24, %c0_25, %c0_26, %c0_27], %46 {strides = array<i32>} : memref<1x4x8x8xf32, #tpu.memory_space<vmem>>, vector<1x4x8x8xf32>,
    %47 = vector.extract_strided_slice %43 {offsets = [0, 0, 0], sizes = [1, 8, 8], strides = [1, 1, 1]} : vector<4x8x8xf32> to vector<1x8x8xf32>
    %48 = vector.shape_cast %47 : vector<1x8x8xf32> to vector<8x8xf32>
    %49 = vector.extract_strided_slice %3 {offsets = [0, 0], sizes = [8, 32], strides = [1, 1]} : vector<8x128xf32> to vector<8x32xf32>
    %cst_28 = arith.constant dense<0.000000e+00> : vector<8x32xf32>
    %50 = tpu.matmul %48, %49, %cst_28 {dimension_numbers = #tpu.dot_dimension_numbers<[1], [0], [0], [1], [0, 0, 1, 1], [], []>, precision = #tpu.contract_precision<fp32>} : vector<8x8xf32>, vector<8x32xf32>, vector<8x32xf32> -> vector<8x32xf32>
    %51 = vector.extract_strided_slice %43 {offsets = [1, 0, 0], sizes = [1, 8, 8], strides = [1, 1, 1]} : vector<4x8x8xf32> to vector<1x8x8xf32>
    %52 = vector.shape_cast %51 : vector<1x8x8xf32> to vector<8x8xf32>
    %53 = vector.extract_strided_slice %3 {offsets = [0, 32], sizes = [8, 32], strides = [1, 1]} : vector<8x128xf32> to vector<8x32xf32>
    %cst_29 = arith.constant dense<0.000000e+00> : vector<8x32xf32>
    %54 = tpu.matmul %52, %53, %cst_29 {dimension_numbers = #tpu.dot_dimension_numbers<[1], [0], [0], [1], [0, 0, 1, 1], [], []>, precision = #tpu.contract_precision<fp32>} : vector<8x8xf32>, vector<8x32xf32>, vector<8x32xf32> -> vector<8x32xf32>
    %55 = vector.extract_strided_slice %43 {offsets = [2, 0, 0], sizes = [1, 8, 8], strides = [1, 1, 1]} : vector<4x8x8xf32> to vector<1x8x8xf32>
    %56 = vector.shape_cast %55 : vector<1x8x8xf32> to vector<8x8xf32>
    %57 = vector.extract_strided_slice %3 {offsets = [0, 64], sizes = [8, 32], strides = [1, 1]} : vector<8x128xf32> to vector<8x32xf32>
    %cst_30 = arith.constant dense<0.000000e+00> : vector<8x32xf32>
    %58 = tpu.matmul %56, %57, %cst_30 {dimension_numbers = #tpu.dot_dimension_numbers<[1], [0], [0], [1], [0, 0, 1, 1], [], []>, precision = #tpu.contract_precision<fp32>} : vector<8x8xf32>, vector<8x32xf32>, vector<8x32xf32> -> vector<8x32xf32>
    %59 = vector.extract_strided_slice %43 {offsets = [3, 0, 0], sizes = [1, 8, 8], strides = [1, 1, 1]} : vector<4x8x8xf32> to vector<1x8x8xf32>
    %60 = vector.shape_cast %59 : vector<1x8x8xf32> to vector<8x8xf32>
    %61 = vector.extract_strided_slice %3 {offsets = [0, 96], sizes = [8, 32], strides = [1, 1]} : vector<8x128xf32> to vector<8x32xf32>
    %cst_31 = arith.constant dense<0.000000e+00> : vector<8x32xf32>
    %62 = tpu.matmul %60, %61, %cst_31 {dimension_numbers = #tpu.dot_dimension_numbers<[1], [0], [0], [1], [0, 0, 1, 1], [], []>, precision = #tpu.contract_precision<fp32>} : vector<8x8xf32>, vector<8x32xf32>, vector<8x32xf32> -> vector<8x32xf32>
    %63 = tpu.concatenate %50, %54, %58, %62 in 1 : vector<8x32xf32>, vector<8x32xf32>, vector<8x32xf32>, vector<8x32xf32> -> vector<8x128xf32>
    %c0_32 = arith.constant 0 : index
    %c0_33 = arith.constant 0 : index
    %64 = vector.load %arg7[%c0_32, %c0_33] : memref<1x128xf32, #tpu.memory_space<vmem>>, vector<1x128xf32>
    %65 = vector.broadcast %64 : vector<1x128xf32> to vector<8x128xf32>
    %66 = arith.addf %63, %65 : vector<8x128xf32>
    %c0_34 = arith.constant 0 : index
    %c0_35 = arith.constant 0 : index
    %c0_36 = arith.constant 0 : index
    %67 = vector.load %arg8[%c0_34, %c0_35, %c0_36] : memref<1x8x128xf32, #tpu.memory_space<vmem>>, vector<1x8x128xf32>
    %68 = vector.shape_cast %67 : vector<1x8x128xf32> to vector<8x128xf32>
    %69 = vector.shape_cast %66 : vector<8x128xf32> to vector<1x8x128xf32>
    tpu.vector_store %arg8[%c0_34, %c0_35, %c0_36], %69 {strides = array<i32>} : memref<1x8x128xf32, #tpu.memory_space<vmem>>, vector<1x8x128xf32>,
    return
  }
  func.func @transform_0(%arg0: i32, %arg1: i32) -> (i32, i32, i32) {
    %c0_i32 = arith.constant 0 : i32
    %c0_i32_0 = arith.constant 0 : i32
    %c0_i32_1 = arith.constant 0 : i32
    return %arg0, %c0_i32, %c0_i32_0 : i32, i32, i32
  }
  func.func @transform_1(%arg0: i32, %arg1: i32) -> (i32, i32, i32) {
    %c0_i32 = arith.constant 0 : i32
    %c0_i32_0 = arith.constant 0 : i32
    return %arg0, %arg1, %c0_i32 : i32, i32, i32
  }
  func.func @transform_2(%arg0: i32, %arg1: i32) -> (i32, i32, i32) {
    %c0_i32 = arith.constant 0 : i32
    %c0_i32_0 = arith.constant 0 : i32
    return %arg0, %arg1, %c0_i32 : i32, i32, i32
  }
  func.func @transform_3(%arg0: i32, %arg1: i32) -> (i32, i32) {
    %c0_i32 = arith.constant 0 : i32
    %c0_i32_0 = arith.constant 0 : i32
    %c0_i32_1 = arith.constant 0 : i32
    return %c0_i32, %c0_i32_0 : i32, i32
  }
  func.func @transform_4(%arg0: i32, %arg1: i32) -> (i32, i32) {
    %c0_i32 = arith.constant 0 : i32
    %c0_i32_0 = arith.constant 0 : i32
    %c0_i32_1 = arith.constant 0 : i32
    return %c0_i32, %c0_i32_0 : i32, i32
  }
  func.func @transform_5(%arg0: i32, %arg1: i32) -> (i32, i32) {
    %c0_i32 = arith.constant 0 : i32
    %c0_i32_0 = arith.constant 0 : i32
    %c0_i32_1 = arith.constant 0 : i32
    return %c0_i32, %c0_i32_0 : i32, i32
  }
  func.func @transform_6(%arg0: i32, %arg1: i32) -> (i32, i32, i32) {
    %c0_i32 = arith.constant 0 : i32
    %c0_i32_0 = arith.constant 0 : i32
    return %arg0, %arg1, %c0_i32 : i32, i32, i32
  }
  func.func @transform_7(%arg0: i32, %arg1: i32) -> (i32, i32, i32, i32) {
    %c0_i32 = arith.constant 0 : i32
    %c0_i32_0 = arith.constant 0 : i32
    %c0_i32_1 = arith.constant 0 : i32
    return %arg0, %c0_i32, %arg1, %c0_i32_0 : i32, i32, i32, i32
  }
}

</mosaic_0001>

<llo_original>
// kernel: tpu_custom_call.1
$region0: #{tpu_custom_call.1}
  #allocation0 [shape = 'u32[]', space=smem, size = 0x4, offset = 0x4, fixed_abs, tag = 'smem constant byte address 0x4 - core index']
  #allocation1 [shape = 'u32[144,128]{1,0:T(1,128)}', space=vmem, size = 0x12000, scoped, tag = 'internal scratch']
  %s0 = inlined_call_operand.vmem [shape: f32[2,8,16], index: 0, kind: input, shape index: {}]
  %s1 = inlined_call_operand.vmem [shape: f32[2,8,16], index: 1, kind: input, shape index: {}]
  %s2 = inlined_call_operand.vmem [shape: f32[2,8,8], index: 2, kind: input, shape index: {}]
  %s3 = inlined_call_operand.vmem [shape: f32[16,128], index: 3, kind: input, shape index: {}]
  %s4 = inlined_call_operand.vmem [shape: f32[128,8], index: 4, kind: input, shape index: {}]
  %s5 = inlined_call_operand.vmem [shape: f32[1,128], index: 5, kind: input, shape index: {}]
  %s6 = inlined_call_operand.hbm [shape: f32[2,8,128], index: 6, kind: output, shape index: {0}]
  %s7 = inlined_call_operand.hbm [shape: f32[2,4,8,8], index: 7, kind: output, shape index: {1}]
  %8 = xla_tuple %s6, %s7
  %s9 = sld [smem:[#allocation0]]
  $region65: #{tpu_custom_call.1} parent=0
    _
  %s11 = ssub.s32 1, %s9
  %s12 = scalar_select 0, %s11, %s9
  $region1: #{tpu_custom_call.1} parent=0
    #allocation2 [shape = 'u8[8192]{0}', space=vmem, size = 0x2000, scoped, tag = 'output window, operand 0']
    #allocation3 [shape = 's32[2]{0}', space=sflag, size = 0x8, scoped, tag = 'scoped memory for tpu_custom_call.1']
    #allocation4 [shape = 'u8[32768]{0}', space=vmem, size = 0x8000, scoped, tag = 'output window, operand 1']
    #allocation5 [shape = 's32[2]{0}', space=sflag, size = 0x8, scoped, tag = 'scoped memory for tpu_custom_call.1']
    %13 = vsyncpa [#allocation3], 0
    %s14 = scalar_lea.sflag [#allocation3], 1
    %15 = vsyncpa %s14, 0
    %16 = vsyncpa [#allocation5], 0
    %s17 = scalar_lea.sflag [#allocation5], 1
    %18 = vsyncpa %s17, 0
    loop: start=0, step=1, limit=4
    $region2: #{tpu_custom_call.1} parent=1 // loop_pre_header
      _
    $region3: #{tpu_custom_call.1} parent=1 // loop_header
      %s20 = sphi 0, %s24
      %p21 = scmp.ge.s32.totalorder %s20, 4
      %s27 = sphi 0, %s39
      %s28 = sphi 0, %s35
      %s29 = sphi 0, %s27
      %s30 = sphi 0, %s28
      %s31 = sphi 0, %s29
      %s32 = sphi 0, %s30
      %s42 = sphi 0, %s44
      %s45 = sphi 0, %s42
      %s46 = sphi 0, %s45
      %s62 = sphi 0, %s46
      %s70 = sphi 0, %s72
      %s73 = sphi 0, %s70
      %s74 = sphi 0, %s73
      %s90 = sphi 0, %s74
      %s98 = sphi 0, %s100
      %s101 = sphi 0, %s98
      %s102 = sphi 0, %s101
      %s118 = sphi 0, %s102
      %s122 = sphi 0, %s122
      %s124 = sphi 0, %s122
      %s125 = sphi 0, %s124
      %s139 = sphi 0, %s125
      %s143 = sphi 0, %s143
      %s145 = sphi 0, %s143
      %s146 = sphi 0, %s145
      %s160 = sphi 0, %s146
      %s164 = sphi 0, %s164
      %s166 = sphi 0, %s164
      %s167 = sphi 0, %s166
      %s181 = sphi 0, %s167
      %s189 = sphi 0, %s191
      %s192 = sphi 0, %s189
      %s193 = sphi 0, %s192
      %s209 = sphi 0, %s193
      %s217 = sphi 0, %s219
      %s220 = sphi 0, %s217
      %s221 = sphi 0, %s220
      %s237 = sphi 0, %s221
    $region4: #{tpu_custom_call.1} parent=1 // loop_header_branch
      %23 = sbr.rel (%p21) target = $region8
    $region5: #{tpu_custom_call.1} parent=1 // loop_body
      %s25 = ssub.s32 %s20, 1
      %s26 = ssub.s32 %s20, 2
      %s33 = sadd.s32 1, %s28
      %p34 = scmp.ge.s32.totalorder %s33, 1
      %s35 = scalar_select %p34, 0, %s33
      %s36 = sadd.s32 1, %s27
      %s37 = scalar_select %p34, %s36, %s27
      %p38 = scmp.ge.s32.totalorder %s37, 2
      %s39 = scalar_select %p38, 0, %s37
      %s40 = ssub.s32 %s27, %s39
      %p41 = scmp.eq.s32.totalorder %s40, 0
      %s43 = sadd.s32 %s42, 1
      %s44 = scalar_select %p41, %s42, %s43
      %p47 = pneg %p41
      %p48 = scmp.eq.s32.totalorder %s20, 1
      %p49 = por %p47, %p48
      %p50 = scmp.ne.s32.totalorder %s42, %s45
      %p51 = scmp.eq.s32.totalorder %s20, 0
      %p52 = por %p50, %p51
      %p53 = scmp.ne.s32.totalorder %s42, %s45
      %p54 = scmp.eq.s32.totalorder %s25, 1
      %p55 = por %p53, %p54
      %p56 = scmp.ne.s32.totalorder %s45, %s46
      %p57 = scmp.eq.s32.totalorder %s25, 0
      %p58 = por %p56, %p57
      %p59 = scmp.ne.s32.totalorder %s45, %s46
      %p60 = scmp.eq.s32.totalorder %s26, 1
      %p61 = por %p59, %p60
      %p63 = scmp.ne.s32.totalorder %s46, %s62
      %p64 = scmp.eq.s32.totalorder %s26, 0
      %p65 = por %p63, %p64
      %s66 = ssub.s32 %s27, %s39
      %s67 = ssub.s32 %s28, %s35
      %s68 = sor.u32 %s66, %s67
      %p69 = scmp.eq.s32.totalorder %s68, 0
      %s71 = sadd.s32 %s70, 1
      %s72 = scalar_select %p69, %s70, %s71
      %p75 = pneg %p69
      %p76 = scmp.eq.s32.totalorder %s20, 1
      %p77 = por %p75, %p76
      %p78 = scmp.ne.s32.totalorder %s70, %s73
      %p79 = scmp.eq.s32.totalorder %s20, 0
      %p80 = por %p78, %p79
      %p81 = scmp.ne.s32.totalorder %s70, %s73
      %p82 = scmp.eq.s32.totalorder %s25, 1
      %p83 = por %p81, %p82
      %p84 = scmp.ne.s32.totalorder %s73, %s74
      %p85 = scmp.eq.s32.totalorder %s25, 0
      %p86 = por %p84, %p85
      %p87 = scmp.ne.s32.totalorder %s73, %s74
      %p88 = scmp.eq.s32.totalorder %s26, 1
      %p89 = por %p87, %p88
      %p91 = scmp.ne.s32.totalorder %s74, %s90
      %p92 = scmp.eq.s32.totalorder %s26, 0
      %p93 = por %p91, %p92
      %s94 = ssub.s32 %s27, %s39
      %s95 = ssub.s32 %s28, %s35
      %s96 = sor.u32 %s94, %s95
      %p97 = scmp.eq.s32.totalorder %s96, 0
      %s99 = sadd.s32 %s98, 1
      %s100 = scalar_select %p97, %s98, %s99
      %p103 = pneg %p97
      %p104 = scmp.eq.s32.totalorder %s20, 1
      %p105 = por %p103, %p104
      %p106 = scmp.ne.s32.totalorder %s98, %s101
      %p107 = scmp.eq.s32.totalorder %s20, 0
      %p108 = por %p106, %p107
      %p109 = scmp.ne.s32.totalorder %s98, %s101
      %p110 = scmp.eq.s32.totalorder %s25, 1
      %p111 = por %p109, %p110
      %p112 = scmp.ne.s32.totalorder %s101, %s102
      %p113 = scmp.eq.s32.totalorder %s25, 0
      %p114 = por %p112, %p113
      %p115 = scmp.ne.s32.totalorder %s101, %s102
      %p116 = scmp.eq.s32.totalorder %s26, 1
      %p117 = por %p115, %p116
      %p119 = scmp.ne.s32.totalorder %s102, %s118
      %p120 = scmp.eq.s32.totalorder %s26, 0
      %p121 = por %p119, %p120
      %s123 = sadd.s32 %s122, 1
      %p126 = scmp.eq.s32.totalorder %s20, 1
      %p127 = scmp.ne.s32.totalorder %s122, %s124
      %p128 = scmp.eq.s32.totalorder %s20, 0
      %p129 = por %p127, %p128
      %p130 = scmp.ne.s32.totalorder %s122, %s124
      %p131 = scmp.eq.s32.totalorder %s25, 1
      %p132 = por %p130, %p131
      %p133 = scmp.ne.s32.totalorder %s124, %s125
      %p134 = scmp.eq.s32.totalorder %s25, 0
      %p135 = por %p133, %p134
      %p136 = scmp.ne.s32.totalorder %s124, %s125
      %p137 = scmp.eq.s32.totalorder %s26, 1
      %p138 = por %p136, %p137
      %p140 = scmp.ne.s32.totalorder %s125, %s139
      %p141 = scmp.eq.s32.totalorder %s26, 0
      %p142 = por %p140, %p141
      %s144 = sadd.s32 %s143, 1
      %p147 = scmp.eq.s32.totalorder %s20, 1
      %p148 = scmp.ne.s32.totalorder %s143, %s145
      %p149 = scmp.eq.s32.totalorder %s20, 0
      %p150 = por %p148, %p149
      %p151 = scmp.ne.s32.totalorder %s143, %s145
      %p152 = scmp.eq.s32.totalorder %s25, 1
      %p153 = por %p151, %p152
      %p154 = scmp.ne.s32.totalorder %s145, %s146
      %p155 = scmp.eq.s32.totalorder %s25, 0
      %p156 = por %p154, %p155
      %p157 = scmp.ne.s32.totalorder %s145, %s146
      %p158 = scmp.eq.s32.totalorder %s26, 1
      %p159 = por %p157, %p158
      %p161 = scmp.ne.s32.totalorder %s146, %s160
      %p162 = scmp.eq.s32.totalorder %s26, 0
      %p163 = por %p161, %p162
      %s165 = sadd.s32 %s164, 1
      %p168 = scmp.eq.s32.totalorder %s20, 1
      %p169 = scmp.ne.s32.totalorder %s164, %s166
      %p170 = scmp.eq.s32.totalorder %s20, 0
      %p171 = por %p169, %p170
      %p172 = scmp.ne.s32.totalorder %s164, %s166
      %p173 = scmp.eq.s32.totalorder %s25, 1
      %p174 = por %p172, %p173
      %p175 = scmp.ne.s32.totalorder %s166, %s167
      %p176 = scmp.eq.s32.totalorder %s25, 0
      %p177 = por %p175, %p176
      %p178 = scmp.ne.s32.totalorder %s166, %s167
      %p179 = scmp.eq.s32.totalorder %s26, 1
      %p180 = por %p178, %p179
      %p182 = scmp.ne.s32.totalorder %s167, %s181
      %p183 = scmp.eq.s32.totalorder %s26, 0
      %p184 = por %p182, %p183
      %s185 = ssub.s32 %s27, %s39
      %s186 = ssub.s32 %s28, %s35
      %s187 = sor.u32 %s185, %s186
      %p188 = scmp.eq.s32.totalorder %s187, 0
      %s190 = sadd.s32 %s189, 1
      %s191 = scalar_select %p188, %s189, %s190
      %p194 = pneg %p188
      %p195 = scmp.eq.s32.totalorder %s20, 1
      %p196 = por %p194, %p195
      %p197 = scmp.ne.s32.totalorder %s189, %s192
      %p198 = scmp.eq.s32.totalorder %s20, 0
      %p199 = por %p197, %p198
      %p200 = scmp.ne.s32.totalorder %s189, %s192
      %p201 = scmp.eq.s32.totalorder %s25, 1
      %p202 = por %p200, %p201
      %p203 = scmp.ne.s32.totalorder %s192, %s193
      %p204 = scmp.eq.s32.totalorder %s25, 0
      %p205 = por %p203, %p204
      %p206 = scmp.ne.s32.totalorder %s192, %s193
      %p207 = scmp.eq.s32.totalorder %s26, 1
      %p208 = por %p206, %p207
      %p210 = scmp.ne.s32.totalorder %s193, %s209
      %p211 = scmp.eq.s32.totalorder %s26, 0
      %p212 = por %p210, %p211
      %s213 = ssub.s32 %s27, %s39
      %s214 = ssub.s32 %s28, %s35
      %s215 = sor.u32 %s213, %s214
      %p216 = scmp.eq.s32.totalorder %s215, 0
      %s218 = sadd.s32 %s217, 1
      %s219 = scalar_select %p216, %s217, %s218
      %p222 = pneg %p216
      %p223 = scmp.eq.s32.totalorder %s20, 1
      %p224 = por %p222, %p223
      %p225 = scmp.ne.s32.totalorder %s217, %s220
      %p226 = scmp.eq.s32.totalorder %s20, 0
      %p227 = por %p225, %p226
      %p228 = scmp.ne.s32.totalorder %s217, %s220
      %p229 = scmp.eq.s32.totalorder %s25, 1
      %p230 = por %p228, %p229
      %p231 = scmp.ne.s32.totalorder %s220, %s221
      %p232 = scmp.eq.s32.totalorder %s25, 0
      %p233 = por %p231, %p232
      %p234 = scmp.ne.s32.totalorder %s220, %s221
      %p235 = scmp.eq.s32.totalorder %s26, 1
      %p236 = por %p234, %p235
      %p238 = scmp.ne.s32.totalorder %s221, %s237
      %p239 = scmp.eq.s32.totalorder %s26, 0
      %p240 = por %p238, %p239
      %p241 = scmp.le.s32.totalorder 1, %s20
      %p242 = scmp.lt.s32.totalorder %s20, 3
      %p243 = pnand %p241, %p242
      %p244 = pneg %p243
      // Predicated region
      $region9: #{tpu_custom_call.1} parent=5 // pred_check
        _
      $region10: #{tpu_custom_call.1} parent=5 // pred_check_branch
        %246 = sbr.rel (%p243) target = $region12
      $region11: #{tpu_custom_call.1} parent=5 // pred_region
        %s247 = ssub.s32 %s20, 1
        // Predicated region
        $region13: #{tpu_custom_call.1} parent=11 // pred_check
          %p248 = pneg %p135
        $region14: #{tpu_custom_call.1} parent=11 // pred_check_branch
          %250 = sbr.rel (%p248) target = $region16
        $region15: #{tpu_custom_call.1} parent=11 // pred_region
          _
        $region16: #{tpu_custom_call.1} parent=11 // pred_fallthru
          _
        // Predicated region
        $region17: #{tpu_custom_call.1} parent=11 // pred_check
          %p251 = pneg %p156
        $region18: #{tpu_custom_call.1} parent=11 // pred_check_branch
          %253 = sbr.rel (%p251) target = $region20
        $region19: #{tpu_custom_call.1} parent=11 // pred_region
          _
        $region20: #{tpu_custom_call.1} parent=11 // pred_fallthru
          _
        // Predicated region
        $region21: #{tpu_custom_call.1} parent=11 // pred_check
          %p254 = pneg %p177
        $region22: #{tpu_custom_call.1} parent=11 // pred_check_branch
          %256 = sbr.rel (%p254) target = $region24
        $region23: #{tpu_custom_call.1} parent=11 // pred_region
          _
        $region24: #{tpu_custom_call.1} parent=11 // pred_fallthru
          _
      $region12: #{tpu_custom_call.1} parent=5 // pred_fallthru
        _
      %p257 = scmp.lt.s32.totalorder %s20, 2
      // Predicated region
      $region25: #{tpu_custom_call.1} parent=5 // pred_check
        %p258 = pneg %p257
      $region26: #{tpu_custom_call.1} parent=5 // pred_check_branch
        %260 = sbr.rel (%p258) target = $region28
      $region27: #{tpu_custom_call.1} parent=5 // pred_region
        // Predicated region
        $region29: #{tpu_custom_call.1} parent=27 // pred_check
          %p261 = pneg %p52
        $region30: #{tpu_custom_call.1} parent=27 // pred_check_branch
          %263 = sbr.rel (%p261) target = $region32
        $region31: #{tpu_custom_call.1} parent=27 // pred_region
          %p264 = scmp.lt.s32.totalorder %s27, 1
          %s265 = scalar_select %p264, %s27, 1
          %s266 = smul.addr %s265, 8
          %s267 = scalar_lea.vmem %s0, %s266
        $region32: #{tpu_custom_call.1} parent=27 // pred_fallthru
          _
        // Predicated region
        $region33: #{tpu_custom_call.1} parent=27 // pred_check
          %p268 = pneg %p80
        $region34: #{tpu_custom_call.1} parent=27 // pred_check_branch
          %270 = sbr.rel (%p268) target = $region36
        $region35: #{tpu_custom_call.1} parent=27 // pred_region
          %p271 = scmp.lt.s32.totalorder %s27, 1
          %s272 = scalar_select %p271, %s27, 1
          %p273 = scmp.lt.s32.totalorder %s28, 0
          %s274 = scalar_select %p273, %s28, 0
          %s275 = sadd.s32 %s274, %s272
          %s276 = smul.addr %s275, 8
          %s277 = scalar_lea.vmem %s1, %s276
        $region36: #{tpu_custom_call.1} parent=27 // pred_fallthru
          _
        // Predicated region
        $region37: #{tpu_custom_call.1} parent=27 // pred_check
          %p278 = pneg %p108
        $region38: #{tpu_custom_call.1} parent=27 // pred_check_branch
          %280 = sbr.rel (%p278) target = $region40
        $region39: #{tpu_custom_call.1} parent=27 // pred_region
          %p281 = scmp.lt.s32.totalorder %s27, 1
          %s282 = scalar_select %p281, %s27, 1
          %p283 = scmp.lt.s32.totalorder %s28, 0
          %s284 = scalar_select %p283, %s28, 0
          %s285 = sadd.s32 %s284, %s282
          %s286 = smul.addr %s285, 8
          %s287 = scalar_lea.vmem %s2, %s286
        $region40: #{tpu_custom_call.1} parent=27 // pred_fallthru
          _
      $region28: #{tpu_custom_call.1} parent=5 // pred_fallthru
        _
      %p288 = scmp.le.s32.totalorder 1, %s20
      %p289 = scmp.lt.s32.totalorder %s20, 3
      %p290 = pnand %p288, %p289
      %p291 = pneg %p290
      // Predicated region
      $region41: #{tpu_custom_call.1} parent=5 // pred_check
        _
      $region42: #{tpu_custom_call.1} parent=5 // pred_check_branch
        %293 = sbr.rel (%p290) target = $region44
      $region43: #{tpu_custom_call.1} parent=5 // pred_region
        %s294 = ssub.s32 %s20, 1
        %p295 = scmp.lt.s32.totalorder %s29, 1
        %s296 = scalar_select %p295, %s29, 1
        %s297 = smul.addr %s296, 8
        %s298 = scalar_lea.vmem %s0, %s297
        %p299 = pneg %p58
        %p300 = pneg %p55
        %p301 = scmp.lt.s32.totalorder %s29, 1
        %s302 = scalar_select %p301, %s29, 1
        %p303 = scmp.lt.s32.totalorder %s30, 0
        %s304 = scalar_select %p303, %s30, 0
        %s305 = sadd.s32 %s304, %s302
        %s306 = smul.addr %s305, 8
        %s307 = scalar_lea.vmem %s1, %s306
        %p308 = pneg %p86
        %p309 = pneg %p83
        %p310 = scmp.lt.s32.totalorder %s29, 1
        %s311 = scalar_select %p310, %s29, 1
        %p312 = scmp.lt.s32.totalorder %s30, 0
        %s313 = scalar_select %p312, %s30, 0
        %s314 = sadd.s32 %s313, %s311
        %s315 = smul.addr %s314, 8
        %s316 = scalar_lea.vmem %s2, %s315
        %p317 = pneg %p114
        %p318 = pneg %p111
        %p319 = pneg %p135
        %p320 = pneg %p132
        %p321 = pneg %p156
        %p322 = pneg %p153
        %p323 = pneg %p177
        %p324 = pneg %p174
        %p325 = pneg %p205
        %p326 = pneg %p202
        %s327 = sand.u32 %s192, 1
        %s328 = scalar_lea.sflag [#allocation3], %s327
        %s329 = sand.u32 %s192, 1
        %s330 = smul.addr %s329, 8
        %s331 = scalar_lea.vmem [#allocation2], %s330
        %p332 = pneg %p233
        %p333 = pneg %p230
        %s334 = sand.u32 %s220, 1
        %s335 = scalar_lea.sflag [#allocation5], %s334
        %s336 = sand.u32 %s220, 1
        %s337 = smul.addr %s336, 32
        %s338 = scalar_lea.vmem [#allocation4], %s337
        %p339 = scmp.lt.s32.totalorder %s29, 1
        %s340 = scalar_select %p339, %s29, 1
        %s341 = smul.addr %s340, 8
        %s342 = scalar_lea.vmem %s0, %s341
        %p343 = scmp.lt.s32.totalorder %s29, 1
        %s344 = scalar_select %p343, %s29, 1
        %p345 = scmp.lt.s32.totalorder %s30, 0
        %s346 = scalar_select %p345, %s30, 0
        %s347 = sadd.s32 %s346, %s344
        %s348 = smul.addr %s347, 8
        %s349 = scalar_lea.vmem %s1, %s348
        %p350 = scmp.lt.s32.totalorder %s29, 1
        %s351 = scalar_select %p350, %s29, 1
        %p352 = scmp.lt.s32.totalorder %s30, 0
        %s353 = scalar_select %p352, %s30, 0
        %s354 = sadd.s32 %s353, %s351
        %s355 = smul.addr %s354, 8
        %s356 = scalar_lea.vmem %s2, %s355
        %v357 = vld [vmem:[%s3] sm:$0xff]
        %v358 = vld [vmem:[%s3 + $0x8] sm:$0xff]
        %v359 = vld [vmem:[%s342] sm:$0xff]
        %vm360 = vcmask 130048
        %v362 = vsel %vm360, %v359, 0
        %364 = vmatprep.subr.mxu0 0.0
        %v365 = vand.u32 %v357, 4294901760
        %366 = vmatpush1.msra.mxu0 %v365
        %367 = vmatprep.subr.mxu0 0.0
        %v368 = vand.u32 %v358, 4294901760
        %369 = vmatpush1.msra.mxu0 %v368
        %370 = vmatprep.subr.mxu0 0.0
        %371 = vmatpush1.msra.mxu0 0.0
        %372 = vmatprep.subr.mxu0 0.0
        %373 = vmatpush1.msra.mxu0 0.0
        %374 = vmatprep.subr.mxu0 0.0
        %375 = vmatpush1.msra.mxu0 0.0
        %376 = vmatprep.subr.mxu0 0.0
        %377 = vmatpush1.msra.mxu0 0.0
        %378 = vmatprep.subr.mxu0 0.0
        %379 = vmatpush1.msra.mxu0 0.0
        %380 = vmatprep.subr.mxu0 0.0
        %381 = vmatpush1.msra.mxu0 0.0
        %382 = vmatprep.subr.mxu0 0.0
        %383 = vmatpush1.msra.mxu0 0.0
        %384 = vmatprep.subr.mxu0 0.0
        %385 = vmatpush1.msra.mxu0 0.0
        %386 = vmatprep.subr.mxu0 0.0
        %387 = vmatpush1.msra.mxu0 0.0
        %388 = vmatprep.subr.mxu0 0.0
        %389 = vmatpush1.msra.mxu0 0.0
        %390 = vmatprep.subr.mxu0 0.0
        %391 = vmatpush1.msra.mxu0 0.0
        %392 = vmatprep.subr.mxu0 0.0
        %393 = vmatpush1.msra.mxu0 0.0
        %394 = vmatprep.subr.mxu0 0.0
        %395 = vmatpush1.msra.mxu0 0.0
        %396 = vmatprep.subr.mxu0 0.0
        %397 = vmatpush1.msra.mxu0 0.0
        %398 = vmatprep.subr.mxu0 0.0
        %399 = vmatpush1.msra.mxu0 0.0
        %400 = vmatprep.subr.mxu0 0.0
        %401 = vmatpush1.msra.mxu0 0.0
        %402 = vmatprep.subr.mxu0 0.0
        %403 = vmatpush1.msra.mxu0 0.0
        %404 = vmatprep.subr.mxu0 0.0
        %405 = vmatpush1.msra.mxu0 0.0
        %406 = vmatprep.subr.mxu0 0.0
        %407 = vmatpush1.msra.mxu0 0.0
        %408 = vmatprep.subr.mxu0 0.0
        %409 = vmatpush1.msra.mxu0 0.0
        %410 = vmatprep.subr.mxu0 0.0
        %411 = vmatpush1.msra.mxu0 0.0
        %412 = vmatprep.subr.mxu0 0.0
        %413 = vmatpush1.msra.mxu0 0.0
        %414 = vmatprep.subr.mxu0 0.0
        %415 = vmatpush1.msra.mxu0 0.0
        %416 = vmatprep.subr.mxu0 0.0
        %417 = vmatpush1.msra.mxu0 0.0
        %418 = vmatprep.subr.mxu0 0.0
        %419 = vmatpush1.msra.mxu0 0.0
        %420 = vmatprep.subr.mxu0 0.0
        %421 = vmatpush1.msra.mxu0 0.0
        %422 = vmatprep.subr.mxu0 0.0
        %423 = vmatpush1.msra.mxu0 0.0
        %424 = vmatprep.subr.mxu0 0.0
        %425 = vmatpush1.msra.mxu0 0.0
        %426 = vmatprep.subr.mxu0 0.0
        %427 = vmatpush1.msra.mxu0 0.0
        %428 = vmatprep.subr.mxu0 0.0
        %429 = vmatpush1.msra.mxu0 0.0
        %430 = vmatprep.mubr.f32.mxu0 0.0
        %v431 = vand.u32 %v362, 4294901760
        %v432 = vsub.f32 %v362, %v431
        %v433 = vand.u32 %v432, 4294901760
        %v434 = vsub.f32 %v432, %v433
        %v435 = vand.u32 %v434, 4294901760
        %436 = vmatmul.mubr.f32.gmra.mrb[0].mxu0 %v435
        %v437 = vpop.f32.mrb[0].mxu0
        %v438 = vadd.f32 0.0, %v437
        %v439 = vpop.f32.mrb[0].mxu0
        %440 = vdwg.mxu0
        %441 = vmatprep.subr.mxu0 0.0
        %v442 = vand.u32 %v357, 4294901760
        %v443 = vsub.f32 %v357, %v442
        %v444 = vand.u32 %v443, 4294901760
        %v445 = vsub.f32 %v443, %v444
        %v446 = vand.u32 %v445, 4294901760
        %447 = vmatpush1.msra.mxu0 %v446
        %448 = vmatprep.subr.mxu0 0.0
        %v449 = vand.u32 %v358, 4294901760
        %v450 = vsub.f32 %v358, %v449
        %v451 = vand.u32 %v450, 4294901760
        %v452 = vsub.f32 %v450, %v451
        %v453 = vand.u32 %v452, 4294901760
        %454 = vmatpush1.msra.mxu0 %v453
        %455 = vmatprep.subr.mxu0 0.0
        %456 = vmatpush1.msra.mxu0 0.0
        %457 = vmatprep.subr.mxu0 0.0
        %458 = vmatpush1.msra.mxu0 0.0
        %459 = vmatprep.subr.mxu0 0.0
        %460 = vmatpush1.msra.mxu0 0.0
        %461 = vmatprep.subr.mxu0 0.0
        %462 = vmatpush1.msra.mxu0 0.0
        %463 = vmatprep.subr.mxu0 0.0
        %464 = vmatpush1.msra.mxu0 0.0
        %465 = vmatprep.subr.mxu0 0.0
        %466 = vmatpush1.msra.mxu0 0.0
        %467 = vmatprep.subr.mxu0 0.0
        %468 = vmatpush1.msra.mxu0 0.0
        %469 = vmatprep.subr.mxu0 0.0
        %470 = vmatpush1.msra.mxu0 0.0
        %471 = vmatprep.subr.mxu0 0.0
        %472 = vmatpush1.msra.mxu0 0.0
        %473 = vmatprep.subr.mxu0 0.0
        %474 = vmatpush1.msra.mxu0 0.0
        %475 = vmatprep.subr.mxu0 0.0
        %476 = vmatpush1.msra.mxu0 0.0
        %477 = vmatprep.subr.mxu0 0.0
        %478 = vmatpush1.msra.mxu0 0.0
        %479 = vmatprep.subr.mxu0 0.0
        %480 = vmatpush1.msra.mxu0 0.0
        %481 = vmatprep.subr.mxu0 0.0
        %482 = vmatpush1.msra.mxu0 0.0
        %483 = vmatprep.subr.mxu0 0.0
        %484 = vmatpush1.msra.mxu0 0.0
        %485 = vmatprep.subr.mxu0 0.0
        %486 = vmatpush1.msra.mxu0 0.0
        %487 = vmatprep.subr.mxu0 0.0
        %488 = vmatpush1.msra.mxu0 0.0
        %489 = vmatprep.subr.mxu0 0.0
        %490 = vmatpush1.msra.mxu0 0.0
        %491 = vmatprep.subr.mxu0 0.0
        %492 = vmatpush1.msra.mxu0 0.0
        %493 = vmatprep.subr.mxu0 0.0
        %494 = vmatpush1.msra.mxu0 0.0
        %495 = vmatprep.subr.mxu0 0.0
        %496 = vmatpush1.msra.mxu0 0.0
        %497 = vmatprep.subr.mxu0 0.0
        %498 = vmatpush1.msra.mxu0 0.0
        %499 = vmatprep.subr.mxu0 0.0
        %500 = vmatpush1.msra.mxu0 0.0
        %501 = vmatprep.subr.mxu0 0.0
        %502 = vmatpush1.msra.mxu0 0.0
        %503 = vmatprep.subr.mxu0 0.0
        %504 = vmatpush1.msra.mxu0 0.0
        %505 = vmatprep.subr.mxu0 0.0
        %506 = vmatpush1.msra.mxu0 0.0
        %507 = vmatprep.subr.mxu0 0.0
        %508 = vmatpush1.msra.mxu0 0.0
        %509 = vmatprep.subr.mxu0 0.0
        %510 = vmatpush1.msra.mxu0 0.0
        %511 = vmatprep.subr.mxu0 0.0
        %512 = vmatpush1.msra.mxu0 0.0
        %513 = vmatprep.subr.mxu0 0.0
        %514 = vmatpush1.msra.mxu0 0.0
        %515 = vmatprep.mubr.f32.mxu0 0.0
        %v516 = vand.u32 %v362, 4294901760
        %517 = vmatmul.mubr.f32.gmra.mrb[0].mxu0 %v516
        %v518 = vpop.f32.mrb[0].mxu0
        %v519 = vadd.f32 %v438, %v518
        %v520 = vpop.f32.mrb[0].mxu0
        %521 = vdwg.mxu0
        %522 = vmatprep.subr.mxu0 0.0
        %v523 = vand.u32 %v357, 4294901760
        %v524 = vsub.f32 %v357, %v523
        %525 = vmatpush1.msra.mxu0 %v524
        %526 = vmatprep.subr.mxu0 0.0
        %v527 = vand.u32 %v358, 4294901760
        %v528 = vsub.f32 %v358, %v527
        %529 = vmatpush1.msra.mxu0 %v528
        %530 = vmatprep.subr.mxu0 0.0
        %531 = vmatpush1.msra.mxu0 0.0
        %532 = vmatprep.subr.mxu0 0.0
        %533 = vmatpush1.msra.mxu0 0.0
        %534 = vmatprep.subr.mxu0 0.0
        %535 = vmatpush1.msra.mxu0 0.0
        %536 = vmatprep.subr.mxu0 0.0
        %537 = vmatpush1.msra.mxu0 0.0
        %538 = vmatprep.subr.mxu0 0.0
        %539 = vmatpush1.msra.mxu0 0.0
        %540 = vmatprep.subr.mxu0 0.0
        %541 = vmatpush1.msra.mxu0 0.0
        %542 = vmatprep.subr.mxu0 0.0
        %543 = vmatpush1.msra.mxu0 0.0
        %544 = vmatprep.subr.mxu0 0.0
        %545 = vmatpush1.msra.mxu0 0.0
        %546 = vmatprep.subr.mxu0 0.0
        %547 = vmatpush1.msra.mxu0 0.0
        %548 = vmatprep.subr.mxu0 0.0
        %549 = vmatpush1.msra.mxu0 0.0
        %550 = vmatprep.subr.mxu0 0.0
        %551 = vmatpush1.msra.mxu0 0.0
        %552 = vmatprep.subr.mxu0 0.0
        %553 = vmatpush1.msra.mxu0 0.0
        %554 = vmatprep.subr.mxu0 0.0
        %555 = vmatpush1.msra.mxu0 0.0
        %556 = vmatprep.subr.mxu0 0.0
        %557 = vmatpush1.msra.mxu0 0.0
        %558 = vmatprep.subr.mxu0 0.0
        %559 = vmatpush1.msra.mxu0 0.0
        %560 = vmatprep.subr.mxu0 0.0
        %561 = vmatpush1.msra.mxu0 0.0
        %562 = vmatprep.subr.mxu0 0.0
        %563 = vmatpush1.msra.mxu0 0.0
        %564 = vmatprep.subr.mxu0 0.0
        %565 = vmatpush1.msra.mxu0 0.0
        %566 = vmatprep.subr.mxu0 0.0
        %567 = vmatpush1.msra.mxu0 0.0
        %568 = vmatprep.subr.mxu0 0.0
        %569 = vmatpush1.msra.mxu0 0.0
        %570 = vmatprep.subr.mxu0 0.0
        %571 = vmatpush1.msra.mxu0 0.0
        %572 = vmatprep.subr.mxu0 0.0
        %573 = vmatpush1.msra.mxu0 0.0
        %574 = vmatprep.subr.mxu0 0.0
        %575 = vmatpush1.msra.mxu0 0.0
        %576 = vmatprep.subr.mxu0 0.0
        %577 = vmatpush1.msra.mxu0 0.0
        %578 = vmatprep.subr.mxu0 0.0
        %579 = vmatpush1.msra.mxu0 0.0
        %580 = vmatprep.subr.mxu0 0.0
        %581 = vmatpush1.msra.mxu0 0.0
        %582 = vmatprep.subr.mxu0 0.0
        %583 = vmatpush1.msra.mxu0 0.0
        %584 = vmatprep.subr.mxu0 0.0
        %585 = vmatpush1.msra.mxu0 0.0
        %586 = vmatprep.subr.mxu0 0.0
        %587 = vmatpush1.msra.mxu0 0.0
        %588 = vmatprep.subr.mxu0 0.0
        %589 = vmatpush1.msra.mxu0 0.0
        %590 = vmatprep.mubr.f32.mxu0 0.0
        %v591 = vand.u32 %v362, 4294901760
        %v592 = vsub.f32 %v362, %v591
        %593 = vmatmul.mubr.f32.gmra.mrb[0].mxu0 %v592
        %v594 = vpop.f32.mrb[0].mxu0
        %v595 = vadd.f32 %v519, %v594
        %v596 = vpop.f32.mrb[0].mxu0
        %597 = vdwg.mxu0
        %598 = vmatprep.subr.mxu0 0.0
        %v599 = vand.u32 %v357, 4294901760
        %600 = vmatpush1.msra.mxu0 %v599
        %601 = vmatprep.subr.mxu0 0.0
        %v602 = vand.u32 %v358, 4294901760
        %603 = vmatpush1.msra.mxu0 %v602
        %604 = vmatprep.subr.mxu0 0.0
        %605 = vmatpush1.msra.mxu0 0.0
        %606 = vmatprep.subr.mxu0 0.0
        %607 = vmatpush1.msra.mxu0 0.0
        %608 = vmatprep.subr.mxu0 0.0
        %609 = vmatpush1.msra.mxu0 0.0
        %610 = vmatprep.subr.mxu0 0.0
        %611 = vmatpush1.msra.mxu0 0.0
        %612 = vmatprep.subr.mxu0 0.0
        %613 = vmatpush1.msra.mxu0 0.0
        %614 = vmatprep.subr.mxu0 0.0
        %615 = vmatpush1.msra.mxu0 0.0
        %616 = vmatprep.subr.mxu0 0.0
        %617 = vmatpush1.msra.mxu0 0.0
        %618 = vmatprep.subr.mxu0 0.0
        %619 = vmatpush1.msra.mxu0 0.0
        %620 = vmatprep.subr.mxu0 0.0
        %621 = vmatpush1.msra.mxu0 0.0
        %622 = vmatprep.subr.mxu0 0.0
        %623 = vmatpush1.msra.mxu0 0.0
        %624 = vmatprep.subr.mxu0 0.0
        %625 = vmatpush1.msra.mxu0 0.0
        %626 = vmatprep.subr.mxu0 0.0
        %627 = vmatpush1.msra.mxu0 0.0
        %628 = vmatprep.subr.mxu0 0.0
        %629 = vmatpush1.msra.mxu0 0.0
        %630 = vmatprep.subr.mxu0 0.0
        %631 = vmatpush1.msra.mxu0 0.0
        %632 = vmatprep.subr.mxu0 0.0
        %633 = vmatpush1.msra.mxu0 0.0
        %634 = vmatprep.subr.mxu0 0.0
        %635 = vmatpush1.msra.mxu0 0.0
        %636 = vmatprep.subr.mxu0 0.0
        %637 = vmatpush1.msra.mxu0 0.0
        %638 = vmatprep.subr.mxu0 0.0
        %639 = vmatpush1.msra.mxu0 0.0
        %640 = vmatprep.subr.mxu0 0.0
        %641 = vmatpush1.msra.mxu0 0.0
        %642 = vmatprep.subr.mxu0 0.0
        %643 = vmatpush1.msra.mxu0 0.0
        %644 = vmatprep.subr.mxu0 0.0
        %645 = vmatpush1.msra.mxu0 0.0
        %646 = vmatprep.subr.mxu0 0.0
        %647 = vmatpush1.msra.mxu0 0.0
        %648 = vmatprep.subr.mxu0 0.0
        %649 = vmatpush1.msra.mxu0 0.0
        %650 = vmatprep.subr.mxu0 0.0
        %651 = vmatpush1.msra.mxu0 0.0
        %652 = vmatprep.subr.mxu0 0.0
        %653 = vmatpush1.msra.mxu0 0.0
        %654 = vmatprep.subr.mxu0 0.0
        %655 = vmatpush1.msra.mxu0 0.0
        %656 = vmatprep.subr.mxu0 0.0
        %657 = vmatpush1.msra.mxu0 0.0
        %658 = vmatprep.subr.mxu0 0.0
        %659 = vmatpush1.msra.mxu0 0.0
        %660 = vmatprep.subr.mxu0 0.0
        %661 = vmatpush1.msra.mxu0 0.0
        %662 = vmatprep.subr.mxu0 0.0
        %663 = vmatpush1.msra.mxu0 0.0
        %664 = vmatprep.mubr.f32.mxu0 0.0
        %v665 = vand.u32 %v362, 4294901760
        %v666 = vsub.f32 %v362, %v665
        %v667 = vand.u32 %v666, 4294901760
        %668 = vmatmul.mubr.f32.gmra.mrb[0].mxu0 %v667
        %v669 = vpop.f32.mrb[0].mxu0
        %v670 = vadd.f32 %v595, %v669
        %v671 = vpop.f32.mrb[0].mxu0
        %672 = vdwg.mxu0
        %673 = vmatprep.subr.mxu0 0.0
        %v674 = vand.u32 %v357, 4294901760
        %v675 = vsub.f32 %v357, %v674
        %v676 = vand.u32 %v675, 4294901760
        %677 = vmatpush1.msra.mxu0 %v676
        %678 = vmatprep.subr.mxu0 0.0
        %v679 = vand.u32 %v358, 4294901760
        %v680 = vsub.f32 %v358, %v679
        %v681 = vand.u32 %v680, 4294901760
        %682 = vmatpush1.msra.mxu0 %v681
        %683 = vmatprep.subr.mxu0 0.0
        %684 = vmatpush1.msra.mxu0 0.0
        %685 = vmatprep.subr.mxu0 0.0
        %686 = vmatpush1.msra.mxu0 0.0
        %687 = vmatprep.subr.mxu0 0.0
        %688 = vmatpush1.msra.mxu0 0.0
        %689 = vmatprep.subr.mxu0 0.0
        %690 = vmatpush1.msra.mxu0 0.0
        %691 = vmatprep.subr.mxu0 0.0
        %692 = vmatpush1.msra.mxu0 0.0
        %693 = vmatprep.subr.mxu0 0.0
        %694 = vmatpush1.msra.mxu0 0.0
        %695 = vmatprep.subr.mxu0 0.0
        %696 = vmatpush1.msra.mxu0 0.0
        %697 = vmatprep.subr.mxu0 0.0
        %698 = vmatpush1.msra.mxu0 0.0
        %699 = vmatprep.subr.mxu0 0.0
        %700 = vmatpush1.msra.mxu0 0.0
        %701 = vmatprep.subr.mxu0 0.0
        %702 = vmatpush1.msra.mxu0 0.0
        %703 = vmatprep.subr.mxu0 0.0
        %704 = vmatpush1.msra.mxu0 0.0
        %705 = vmatprep.subr.mxu0 0.0
        %706 = vmatpush1.msra.mxu0 0.0
        %707 = vmatprep.subr.mxu0 0.0
        %708 = vmatpush1.msra.mxu0 0.0
        %709 = vmatprep.subr.mxu0 0.0
        %710 = vmatpush1.msra.mxu0 0.0
        %711 = vmatprep.subr.mxu0 0.0
        %712 = vmatpush1.msra.mxu0 0.0
        %713 = vmatprep.subr.mxu0 0.0
        %714 = vmatpush1.msra.mxu0 0.0
        %715 = vmatprep.subr.mxu0 0.0
        %716 = vmatpush1.msra.mxu0 0.0
        %717 = vmatprep.subr.mxu0 0.0
        %718 = vmatpush1.msra.mxu0 0.0
        %719 = vmatprep.subr.mxu0 0.0
        %720 = vmatpush1.msra.mxu0 0.0
        %721 = vmatprep.subr.mxu0 0.0
        %722 = vmatpush1.msra.mxu0 0.0
        %723 = vmatprep.subr.mxu0 0.0
        %724 = vmatpush1.msra.mxu0 0.0
        %725 = vmatprep.subr.mxu0 0.0
        %726 = vmatpush1.msra.mxu0 0.0
        %727 = vmatprep.subr.mxu0 0.0
        %728 = vmatpush1.msra.mxu0 0.0
        %729 = vmatprep.subr.mxu0 0.0
        %730 = vmatpush1.msra.mxu0 0.0
        %731 = vmatprep.subr.mxu0 0.0
        %732 = vmatpush1.msra.mxu0 0.0
        %733 = vmatprep.subr.mxu0 0.0
        %734 = vmatpush1.msra.mxu0 0.0
        %735 = vmatprep.subr.mxu0 0.0
        %736 = vmatpush1.msra.mxu0 0.0
        %737 = vmatprep.subr.mxu0 0.0
        %738 = vmatpush1.msra.mxu0 0.0
        %739 = vmatprep.subr.mxu0 0.0
        %740 = vmatpush1.msra.mxu0 0.0
        %741 = vmatprep.subr.mxu0 0.0
        %742 = vmatpush1.msra.mxu0 0.0
        %743 = vmatprep.mubr.f32.mxu0 0.0
        %v744 = vand.u32 %v362, 4294901760
        %745 = vmatmul.mubr.f32.gmra.mrb[0].mxu0 %v744
        %v746 = vpop.f32.mrb[0].mxu0
        %v747 = vadd.f32 %v670, %v746
        %v748 = vpop.f32.mrb[0].mxu0
        %749 = vdwg.mxu0
        %750 = vmatprep.subr.mxu0 0.0
        %v751 = vand.u32 %v357, 4294901760
        %752 = vmatpush1.msra.mxu0 %v751
        %753 = vmatprep.subr.mxu0 0.0
        %v754 = vand.u32 %v358, 4294901760
        %755 = vmatpush1.msra.mxu0 %v754
        %756 = vmatprep.subr.mxu0 0.0
        %757 = vmatpush1.msra.mxu0 0.0
        %758 = vmatprep.subr.mxu0 0.0
        %759 = vmatpush1.msra.mxu0 0.0
        %760 = vmatprep.subr.mxu0 0.0
        %761 = vmatpush1.msra.mxu0 0.0
        %762 = vmatprep.subr.mxu0 0.0
        %763 = vmatpush1.msra.mxu0 0.0
        %764 = vmatprep.subr.mxu0 0.0
        %765 = vmatpush1.msra.mxu0 0.0
        %766 = vmatprep.subr.mxu0 0.0
        %767 = vmatpush1.msra.mxu0 0.0
        %768 = vmatprep.subr.mxu0 0.0
        %769 = vmatpush1.msra.mxu0 0.0
        %770 = vmatprep.subr.mxu0 0.0
        %771 = vmatpush1.msra.mxu0 0.0
        %772 = vmatprep.subr.mxu0 0.0
        %773 = vmatpush1.msra.mxu0 0.0
        %774 = vmatprep.subr.mxu0 0.0
        %775 = vmatpush1.msra.mxu0 0.0
        %776 = vmatprep.subr.mxu0 0.0
        %777 = vmatpush1.msra.mxu0 0.0
        %778 = vmatprep.subr.mxu0 0.0
        %779 = vmatpush1.msra.mxu0 0.0
        %780 = vmatprep.subr.mxu0 0.0
        %781 = vmatpush1.msra.mxu0 0.0
        %782 = vmatprep.subr.mxu0 0.0
        %783 = vmatpush1.msra.mxu0 0.0
        %784 = vmatprep.subr.mxu0 0.0
        %785 = vmatpush1.msra.mxu0 0.0
        %786 = vmatprep.subr.mxu0 0.0
        %787 = vmatpush1.msra.mxu0 0.0
        %788 = vmatprep.subr.mxu0 0.0
        %789 = vmatpush1.msra.mxu0 0.0
        %790 = vmatprep.subr.mxu0 0.0
        %791 = vmatpush1.msra.mxu0 0.0
        %792 = vmatprep.subr.mxu0 0.0
        %793 = vmatpush1.msra.mxu0 0.0
        %794 = vmatprep.subr.mxu0 0.0
        %795 = vmatpush1.msra.mxu0 0.0
        %796 = vmatprep.subr.mxu0 0.0
        %797 = vmatpush1.msra.mxu0 0.0
        %798 = vmatprep.subr.mxu0 0.0
        %799 = vmatpush1.msra.mxu0 0.0
        %800 = vmatprep.subr.mxu0 0.0
        %801 = vmatpush1.msra.mxu0 0.0
        %802 = vmatprep.subr.mxu0 0.0
        %803 = vmatpush1.msra.mxu0 0.0
        %804 = vmatprep.subr.mxu0 0.0
        %805 = vmatpush1.msra.mxu0 0.0
        %806 = vmatprep.subr.mxu0 0.0
        %807 = vmatpush1.msra.mxu0 0.0
        %808 = vmatprep.subr.mxu0 0.0
        %809 = vmatpush1.msra.mxu0 0.0
        %810 = vmatprep.subr.mxu0 0.0
        %811 = vmatpush1.msra.mxu0 0.0
        %812 = vmatprep.subr.mxu0 0.0
        %813 = vmatpush1.msra.mxu0 0.0
        %814 = vmatprep.subr.mxu0 0.0
        %815 = vmatpush1.msra.mxu0 0.0
        %816 = vmatprep.mubr.f32.mxu0 0.0
        %v817 = vand.u32 %v362, 4294901760
        %818 = vmatmul.mubr.f32.gmra.mrb[0].mxu0 %v817
        %v819 = vpop.f32.mrb[0].mxu0
        %v820 = vadd.f32 %v747, %v819
        %v821 = vpop.f32.mrb[0].mxu0
        %822 = vdwg.mxu0
        %v823 = vld [vmem:[%s349] sm:$0xff]
        %v825 = vsel %vm360, %v823, 0
        %827 = vmatprep.subr.mxu0 0.0
        %v828 = vand.u32 %v357, 4294901760
        %829 = vmatpush1.msra.mxu0 %v828
        %830 = vmatprep.subr.mxu0 0.0
        %v831 = vand.u32 %v358, 4294901760
        %832 = vmatpush1.msra.mxu0 %v831
        %833 = vmatprep.subr.mxu0 0.0
        %834 = vmatpush1.msra.mxu0 0.0
        %835 = vmatprep.subr.mxu0 0.0
        %836 = vmatpush1.msra.mxu0 0.0
        %837 = vmatprep.subr.mxu0 0.0
        %838 = vmatpush1.msra.mxu0 0.0
        %839 = vmatprep.subr.mxu0 0.0
        %840 = vmatpush1.msra.mxu0 0.0
        %841 = vmatprep.subr.mxu0 0.0
        %842 = vmatpush1.msra.mxu0 0.0
        %843 = vmatprep.subr.mxu0 0.0
        %844 = vmatpush1.msra.mxu0 0.0
        %845 = vmatprep.subr.mxu0 0.0
        %846 = vmatpush1.msra.mxu0 0.0
        %847 = vmatprep.subr.mxu0 0.0
        %848 = vmatpush1.msra.mxu0 0.0
        %849 = vmatprep.subr.mxu0 0.0
        %850 = vmatpush1.msra.mxu0 0.0
        %851 = vmatprep.subr.mxu0 0.0
        %852 = vmatpush1.msra.mxu0 0.0
        %853 = vmatprep.subr.mxu0 0.0
        %854 = vmatpush1.msra.mxu0 0.0
        %855 = vmatprep.subr.mxu0 0.0
        %856 = vmatpush1.msra.mxu0 0.0
        %857 = vmatprep.subr.mxu0 0.0
        %858 = vmatpush1.msra.mxu0 0.0
        %859 = vmatprep.subr.mxu0 0.0
        %860 = vmatpush1.msra.mxu0 0.0
        %861 = vmatprep.subr.mxu0 0.0
        %862 = vmatpush1.msra.mxu0 0.0
        %863 = vmatprep.subr.mxu0 0.0
        %864 = vmatpush1.msra.mxu0 0.0
        %865 = vmatprep.subr.mxu0 0.0
        %866 = vmatpush1.msra.mxu0 0.0
        %867 = vmatprep.subr.mxu0 0.0
        %868 = vmatpush1.msra.mxu0 0.0
        %869 = vmatprep.subr.mxu0 0.0
        %870 = vmatpush1.msra.mxu0 0.0
        %871 = vmatprep.subr.mxu0 0.0
        %872 = vmatpush1.msra.mxu0 0.0
        %873 = vmatprep.subr.mxu0 0.0
        %874 = vmatpush1.msra.mxu0 0.0
        %875 = vmatprep.subr.mxu0 0.0
        %876 = vmatpush1.msra.mxu0 0.0
        %877 = vmatprep.subr.mxu0 0.0
        %878 = vmatpush1.msra.mxu0 0.0
        %879 = vmatprep.subr.mxu0 0.0
        %880 = vmatpush1.msra.mxu0 0.0
        %881 = vmatprep.subr.mxu0 0.0
        %882 = vmatpush1.msra.mxu0 0.0
        %883 = vmatprep.subr.mxu0 0.0
        %884 = vmatpush1.msra.mxu0 0.0
        %885 = vmatprep.subr.mxu0 0.0
        %886 = vmatpush1.msra.mxu0 0.0
        %887 = vmatprep.subr.mxu0 0.0
        %888 = vmatpush1.msra.mxu0 0.0
        %889 = vmatprep.subr.mxu0 0.0
        %890 = vmatpush1.msra.mxu0 0.0
        %891 = vmatprep.subr.mxu0 0.0
        %892 = vmatpush1.msra.mxu0 0.0
        %893 = vmatprep.mubr.f32.mxu0 0.0
        %v894 = vand.u32 %v825, 4294901760
        %v895 = vsub.f32 %v825, %v894
        %v896 = vand.u32 %v895, 4294901760
        %v897 = vsub.f32 %v895, %v896
        %v898 = vand.u32 %v897, 4294901760
        %899 = vmatmul.mubr.f32.gmra.mrb[0].mxu0 %v898
        %v900 = vpop.f32.mrb[0].mxu0
        %v901 = vadd.f32 0.0, %v900
        %v902 = vpop.f32.mrb[0].mxu0
        %903 = vdwg.mxu0
        %904 = vmatprep.subr.mxu0 0.0
        %v905 = vand.u32 %v357, 4294901760
        %v906 = vsub.f32 %v357, %v905
        %v907 = vand.u32 %v906, 4294901760
        %v908 = vsub.f32 %v906, %v907
        %v909 = vand.u32 %v908, 4294901760
        %910 = vmatpush1.msra.mxu0 %v909
        %911 = vmatprep.subr.mxu0 0.0
        %v912 = vand.u32 %v358, 4294901760
        %v913 = vsub.f32 %v358, %v912
        %v914 = vand.u32 %v913, 4294901760
        %v915 = vsub.f32 %v913, %v914
        %v916 = vand.u32 %v915, 4294901760
        %917 = vmatpush1.msra.mxu0 %v916
        %918 = vmatprep.subr.mxu0 0.0
        %919 = vmatpush1.msra.mxu0 0.0
        %920 = vmatprep.subr.mxu0 0.0
        %921 = vmatpush1.msra.mxu0 0.0
        %922 = vmatprep.subr.mxu0 0.0
        %923 = vmatpush1.msra.mxu0 0.0
        %924 = vmatprep.subr.mxu0 0.0
        %925 = vmatpush1.msra.mxu0 0.0
        %926 = vmatprep.subr.mxu0 0.0
        %927 = vmatpush1.msra.mxu0 0.0
        %928 = vmatprep.subr.mxu0 0.0
        %929 = vmatpush1.msra.mxu0 0.0
        %930 = vmatprep.subr.mxu0 0.0
        %931 = vmatpush1.msra.mxu0 0.0
        %932 = vmatprep.subr.mxu0 0.0
        %933 = vmatpush1.msra.mxu0 0.0
        %934 = vmatprep.subr.mxu0 0.0
        %935 = vmatpush1.msra.mxu0 0.0
        %936 = vmatprep.subr.mxu0 0.0
        %937 = vmatpush1.msra.mxu0 0.0
        %938 = vmatprep.subr.mxu0 0.0
        %939 = vmatpush1.msra.mxu0 0.0
        %940 = vmatprep.subr.mxu0 0.0
        %941 = vmatpush1.msra.mxu0 0.0
        %942 = vmatprep.subr.mxu0 0.0
        %943 = vmatpush1.msra.mxu0 0.0
        %944 = vmatprep.subr.mxu0 0.0
        %945 = vmatpush1.msra.mxu0 0.0
        %946 = vmatprep.subr.mxu0 0.0
        %947 = vmatpush1.msra.mxu0 0.0
        %948 = vmatprep.subr.mxu0 0.0
        %949 = vmatpush1.msra.mxu0 0.0
        %950 = vmatprep.subr.mxu0 0.0
        %951 = vmatpush1.msra.mxu0 0.0
        %952 = vmatprep.subr.mxu0 0.0
        %953 = vmatpush1.msra.mxu0 0.0
        %954 = vmatprep.subr.mxu0 0.0
        %955 = vmatpush1.msra.mxu0 0.0
        %956 = vmatprep.subr.mxu0 0.0
        %957 = vmatpush1.msra.mxu0 0.0
        %958 = vmatprep.subr.mxu0 0.0
        %959 = vmatpush1.msra.mxu0 0.0
        %960 = vmatprep.subr.mxu0 0.0
        %961 = vmatpush1.msra.mxu0 0.0
        %962 = vmatprep.subr.mxu0 0.0
        %963 = vmatpush1.msra.mxu0 0.0
        %964 = vmatprep.subr.mxu0 0.0
        %965 = vmatpush1.msra.mxu0 0.0
        %966 = vmatprep.subr.mxu0 0.0
        %967 = vmatpush1.msra.mxu0 0.0
        %968 = vmatprep.subr.mxu0 0.0
        %969 = vmatpush1.msra.mxu0 0.0
        %970 = vmatprep.subr.mxu0 0.0
        %971 = vmatpush1.msra.mxu0 0.0
        %972 = vmatprep.subr.mxu0 0.0
        %973 = vmatpush1.msra.mxu0 0.0
        %974 = vmatprep.subr.mxu0 0.0
        %975 = vmatpush1.msra.mxu0 0.0
        %976 = vmatprep.subr.mxu0 0.0
        %977 = vmatpush1.msra.mxu0 0.0
        %978 = vmatprep.mubr.f32.mxu0 0.0
        %v979 = vand.u32 %v825, 4294901760
        %980 = vmatmul.mubr.f32.gmra.mrb[0].mxu0 %v979
        %v981 = vpop.f32.mrb[0].mxu0
        %v982 = vadd.f32 %v901, %v981
        %v983 = vpop.f32.mrb[0].mxu0
        %984 = vdwg.mxu0
        %985 = vmatprep.subr.mxu0 0.0
        %v986 = vand.u32 %v357, 4294901760
        %v987 = vsub.f32 %v357, %v986
        %988 = vmatpush1.msra.mxu0 %v987
        %989 = vmatprep.subr.mxu0 0.0
        %v990 = vand.u32 %v358, 4294901760
        %v991 = vsub.f32 %v358, %v990
        %992 = vmatpush1.msra.mxu0 %v991
        %993 = vmatprep.subr.mxu0 0.0
        %994 = vmatpush1.msra.mxu0 0.0
        %995 = vmatprep.subr.mxu0 0.0
        %996 = vmatpush1.msra.mxu0 0.0
        %997 = vmatprep.subr.mxu0 0.0
        %998 = vmatpush1.msra.mxu0 0.0
        %999 = vmatprep.subr.mxu0 0.0
        %1000 = vmatpush1.msra.mxu0 0.0
        %1001 = vmatprep.subr.mxu0 0.0
        %1002 = vmatpush1.msra.mxu0 0.0
        %1003 = vmatprep.subr.mxu0 0.0
        %1004 = vmatpush1.msra.mxu0 0.0
        %1005 = vmatprep.subr.mxu0 0.0
        %1006 = vmatpush1.msra.mxu0 0.0
        %1007 = vmatprep.subr.mxu0 0.0
        %1008 = vmatpush1.msra.mxu0 0.0
        %1009 = vmatprep.subr.mxu0 0.0
        %1010 = vmatpush1.msra.mxu0 0.0
        %1011 = vmatprep.subr.mxu0 0.0
        %1012 = vmatpush1.msra.mxu0 0.0
        %1013 = vmatprep.subr.mxu0 0.0
        %1014 = vmatpush1.msra.mxu0 0.0
        %1015 = vmatprep.subr.mxu0 0.0
        %1016 = vmatpush1.msra.mxu0 0.0
        %1017 = vmatprep.subr.mxu0 0.0
        %1018 = vmatpush1.msra.mxu0 0.0
        %1019 = vmatprep.subr.mxu0 0.0
        %1020 = vmatpush1.msra.mxu0 0.0
        %1021 = vmatprep.subr.mxu0 0.0
        %1022 = vmatpush1.msra.mxu0 0.0
        %1023 = vmatprep.subr.mxu0 0.0
        %1024 = vmatpush1.msra.mxu0 0.0
        %1025 = vmatprep.subr.mxu0 0.0
        %1026 = vmatpush1.msra.mxu0 0.0
        %1027 = vmatprep.subr.mxu0 0.0
        %1028 = vmatpush1.msra.mxu0 0.0
        %1029 = vmatprep.subr.mxu0 0.0
        %1030 = vmatpush1.msra.mxu0 0.0
        %1031 = vmatprep.subr.mxu0 0.0
        %1032 = vmatpush1.msra.mxu0 0.0
        %1033 = vmatprep.subr.mxu0 0.0
        %1034 = vmatpush1.msra.mxu0 0.0
        %1035 = vmatprep.subr.mxu0 0.0
        %1036 = vmatpush1.msra.mxu0 0.0
        %1037 = vmatprep.subr.mxu0 0.0
        %1038 = vmatpush1.msra.mxu0 0.0
        %1039 = vmatprep.subr.mxu0 0.0
        %1040 = vmatpush1.msra.mxu0 0.0
        %1041 = vmatprep.subr.mxu0 0.0
        %1042 = vmatpush1.msra.mxu0 0.0
        %1043 = vmatprep.subr.mxu0 0.0
        %1044 = vmatpush1.msra.mxu0 0.0
        %1045 = vmatprep.subr.mxu0 0.0
        %1046 = vmatpush1.msra.mxu0 0.0
        %1047 = vmatprep.subr.mxu0 0.0
        %1048 = vmatpush1.msra.mxu0 0.0
        %1049 = vmatprep.subr.mxu0 0.0
        %1050 = vmatpush1.msra.mxu0 0.0
        %1051 = vmatprep.subr.mxu0 0.0
        %1052 = vmatpush1.msra.mxu0 0.0
        %1053 = vmatprep.mubr.f32.mxu0 0.0
        %v1054 = vand.u32 %v825, 4294901760
        %v1055 = vsub.f32 %v825, %v1054
        %1056 = vmatmul.mubr.f32.gmra.mrb[0].mxu0 %v1055
        %v1057 = vpop.f32.mrb[0].mxu0
        %v1058 = vadd.f32 %v982, %v1057
        %v1059 = vpop.f32.mrb[0].mxu0
        %1060 = vdwg.mxu0
        %1061 = vmatprep.subr.mxu0 0.0
        %v1062 = vand.u32 %v357, 4294901760
        %1063 = vmatpush1.msra.mxu0 %v1062
        %1064 = vmatprep.subr.mxu0 0.0
        %v1065 = vand.u32 %v358, 4294901760
        %1066 = vmatpush1.msra.mxu0 %v1065
        %1067 = vmatprep.subr.mxu0 0.0
        %1068 = vmatpush1.msra.mxu0 0.0
        %1069 = vmatprep.subr.mxu0 0.0
        %1070 = vmatpush1.msra.mxu0 0.0
        %1071 = vmatprep.subr.mxu0 0.0
        %1072 = vmatpush1.msra.mxu0 0.0
        %1073 = vmatprep.subr.mxu0 0.0
        %1074 = vmatpush1.msra.mxu0 0.0
        %1075 = vmatprep.subr.mxu0 0.0
        %1076 = vmatpush1.msra.mxu0 0.0
        %1077 = vmatprep.subr.mxu0 0.0
        %1078 = vmatpush1.msra.mxu0 0.0
        %1079 = vmatprep.subr.mxu0 0.0
        %1080 = vmatpush1.msra.mxu0 0.0
        %1081 = vmatprep.subr.mxu0 0.0
        %1082 = vmatpush1.msra.mxu0 0.0
        %1083 = vmatprep.subr.mxu0 0.0
        %1084 = vmatpush1.msra.mxu0 0.0
        %1085 = vmatprep.subr.mxu0 0.0
        %1086 = vmatpush1.msra.mxu0 0.0
        %1087 = vmatprep.subr.mxu0 0.0
        %1088 = vmatpush1.msra.mxu0 0.0
        %1089 = vmatprep.subr.mxu0 0.0
        %1090 = vmatpush1.msra.mxu0 0.0
        %1091 = vmatprep.subr.mxu0 0.0
        %1092 = vmatpush1.msra.mxu0 0.0
        %1093 = vmatprep.subr.mxu0 0.0
        %1094 = vmatpush1.msra.mxu0 0.0
        %1095 = vmatprep.subr.mxu0 0.0
        %1096 = vmatpush1.msra.mxu0 0.0
        %1097 = vmatprep.subr.mxu0 0.0
        %1098 = vmatpush1.msra.mxu0 0.0
        %1099 = vmatprep.subr.mxu0 0.0
        %1100 = vmatpush1.msra.mxu0 0.0
        %1101 = vmatprep.subr.mxu0 0.0
        %1102 = vmatpush1.msra.mxu0 0.0
        %1103 = vmatprep.subr.mxu0 0.0
        %1104 = vmatpush1.msra.mxu0 0.0
        %1105 = vmatprep.subr.mxu0 0.0
        %1106 = vmatpush1.msra.mxu0 0.0
        %1107 = vmatprep.subr.mxu0 0.0
        %1108 = vmatpush1.msra.mxu0 0.0
        %1109 = vmatprep.subr.mxu0 0.0
        %1110 = vmatpush1.msra.mxu0 0.0
        %1111 = vmatprep.subr.mxu0 0.0
        %1112 = vmatpush1.msra.mxu0 0.0
        %1113 = vmatprep.subr.mxu0 0.0
        %1114 = vmatpush1.msra.mxu0 0.0
        %1115 = vmatprep.subr.mxu0 0.0
        %1116 = vmatpush1.msra.mxu0 0.0
        %1117 = vmatprep.subr.mxu0 0.0
        %1118 = vmatpush1.msra.mxu0 0.0
        %1119 = vmatprep.subr.mxu0 0.0
        %1120 = vmatpush1.msra.mxu0 0.0
        %1121 = vmatprep.subr.mxu0 0.0
        %1122 = vmatpush1.msra.mxu0 0.0
        %1123 = vmatprep.subr.mxu0 0.0
        %1124 = vmatpush1.msra.mxu0 0.0
        %1125 = vmatprep.subr.mxu0 0.0
        %1126 = vmatpush1.msra.mxu0 0.0
        %1127 = vmatprep.mubr.f32.mxu0 0.0
        %v1128 = vand.u32 %v825, 4294901760
        %v1129 = vsub.f32 %v825, %v1128
        %v1130 = vand.u32 %v1129, 4294901760
        %1131 = vmatmul.mubr.f32.gmra.mrb[0].mxu0 %v1130
        %v1132 = vpop.f32.mrb[0].mxu0
        %v1133 = vadd.f32 %v1058, %v1132
        %v1134 = vpop.f32.mrb[0].mxu0
        %1135 = vdwg.mxu0
        %1136 = vmatprep.subr.mxu0 0.0
        %v1137 = vand.u32 %v357, 4294901760
        %v1138 = vsub.f32 %v357, %v1137
        %v1139 = vand.u32 %v1138, 4294901760
        %1140 = vmatpush1.msra.mxu0 %v1139
        %1141 = vmatprep.subr.mxu0 0.0
        %v1142 = vand.u32 %v358, 4294901760
        %v1143 = vsub.f32 %v358, %v1142
        %v1144 = vand.u32 %v1143, 4294901760
        %1145 = vmatpush1.msra.mxu0 %v1144
        %1146 = vmatprep.subr.mxu0 0.0
        %1147 = vmatpush1.msra.mxu0 0.0
        %1148 = vmatprep.subr.mxu0 0.0
        %1149 = vmatpush1.msra.mxu0 0.0
        %1150 = vmatprep.subr.mxu0 0.0
        %1151 = vmatpush1.msra.mxu0 0.0
        %1152 = vmatprep.subr.mxu0 0.0
        %1153 = vmatpush1.msra.mxu0 0.0
        %1154 = vmatprep.subr.mxu0 0.0
        %1155 = vmatpush1.msra.mxu0 0.0
        %1156 = vmatprep.subr.mxu0 0.0
        %1157 = vmatpush1.msra.mxu0 0.0
        %1158 = vmatprep.subr.mxu0 0.0
        %1159 = vmatpush1.msra.mxu0 0.0
        %1160 = vmatprep.subr.mxu0 0.0
        %1161 = vmatpush1.msra.mxu0 0.0
        %1162 = vmatprep.subr.mxu0 0.0
        %1163 = vmatpush1.msra.mxu0 0.0
        %1164 = vmatprep.subr.mxu0 0.0
        %1165 = vmatpush1.msra.mxu0 0.0
        %1166 = vmatprep.subr.mxu0 0.0
        %1167 = vmatpush1.msra.mxu0 0.0
        %1168 = vmatprep.subr.mxu0 0.0
        %1169 = vmatpush1.msra.mxu0 0.0
        %1170 = vmatprep.subr.mxu0 0.0
        %1171 = vmatpush1.msra.mxu0 0.0
        %1172 = vmatprep.subr.mxu0 0.0
        %1173 = vmatpush1.msra.mxu0 0.0
        %1174 = vmatprep.subr.mxu0 0.0
        %1175 = vmatpush1.msra.mxu0 0.0
        %1176 = vmatprep.subr.mxu0 0.0
        %1177 = vmatpush1.msra.mxu0 0.0
        %1178 = vmatprep.subr.mxu0 0.0
        %1179 = vmatpush1.msra.mxu0 0.0
        %1180 = vmatprep.subr.mxu0 0.0
        %1181 = vmatpush1.msra.mxu0 0.0
        %1182 = vmatprep.subr.mxu0 0.0
        %1183 = vmatpush1.msra.mxu0 0.0
        %1184 = vmatprep.subr.mxu0 0.0
        %1185 = vmatpush1.msra.mxu0 0.0
        %1186 = vmatprep.subr.mxu0 0.0
        %1187 = vmatpush1.msra.mxu0 0.0
        %1188 = vmatprep.subr.mxu0 0.0
        %1189 = vmatpush1.msra.mxu0 0.0
        %1190 = vmatprep.subr.mxu0 0.0
        %1191 = vmatpush1.msra.mxu0 0.0
        %1192 = vmatprep.subr.mxu0 0.0
        %1193 = vmatpush1.msra.mxu0 0.0
        %1194 = vmatprep.subr.mxu0 0.0
        %1195 = vmatpush1.msra.mxu0 0.0
        %1196 = vmatprep.subr.mxu0 0.0
        %1197 = vmatpush1.msra.mxu0 0.0
        %1198 = vmatprep.subr.mxu0 0.0
        %1199 = vmatpush1.msra.mxu0 0.0
        %1200 = vmatprep.subr.mxu0 0.0
        %1201 = vmatpush1.msra.mxu0 0.0
        %1202 = vmatprep.subr.mxu0 0.0
        %1203 = vmatpush1.msra.mxu0 0.0
        %1204 = vmatprep.subr.mxu0 0.0
        %1205 = vmatpush1.msra.mxu0 0.0
        %1206 = vmatprep.mubr.f32.mxu0 0.0
        %v1207 = vand.u32 %v825, 4294901760
        %1208 = vmatmul.mubr.f32.gmra.mrb[0].mxu0 %v1207
        %v1209 = vpop.f32.mrb[0].mxu0
        %v1210 = vadd.f32 %v1133, %v1209
        %v1211 = vpop.f32.mrb[0].mxu0
        %1212 = vdwg.mxu0
        %1213 = vmatprep.subr.mxu0 0.0
        %v1214 = vand.u32 %v357, 4294901760
        %1215 = vmatpush1.msra.mxu0 %v1214
        %1216 = vmatprep.subr.mxu0 0.0
        %v1217 = vand.u32 %v358, 4294901760
        %1218 = vmatpush1.msra.mxu0 %v1217
        %1219 = vmatprep.subr.mxu0 0.0
        %1220 = vmatpush1.msra.mxu0 0.0
        %1221 = vmatprep.subr.mxu0 0.0
        %1222 = vmatpush1.msra.mxu0 0.0
        %1223 = vmatprep.subr.mxu0 0.0
        %1224 = vmatpush1.msra.mxu0 0.0
        %1225 = vmatprep.subr.mxu0 0.0
        %1226 = vmatpush1.msra.mxu0 0.0
        %1227 = vmatprep.subr.mxu0 0.0
        %1228 = vmatpush1.msra.mxu0 0.0
        %1229 = vmatprep.subr.mxu0 0.0
        %1230 = vmatpush1.msra.mxu0 0.0
        %1231 = vmatprep.subr.mxu0 0.0
        %1232 = vmatpush1.msra.mxu0 0.0
        %1233 = vmatprep.subr.mxu0 0.0
        %1234 = vmatpush1.msra.mxu0 0.0
        %1235 = vmatprep.subr.mxu0 0.0
        %1236 = vmatpush1.msra.mxu0 0.0
        %1237 = vmatprep.subr.mxu0 0.0
        %1238 = vmatpush1.msra.mxu0 0.0
        %1239 = vmatprep.subr.mxu0 0.0
        %1240 = vmatpush1.msra.mxu0 0.0
        %1241 = vmatprep.subr.mxu0 0.0
        %1242 = vmatpush1.msra.mxu0 0.0
        %1243 = vmatprep.subr.mxu0 0.0
        %1244 = vmatpush1.msra.mxu0 0.0
        %1245 = vmatprep.subr.mxu0 0.0
        %1246 = vmatpush1.msra.mxu0 0.0
        %1247 = vmatprep.subr.mxu0 0.0
        %1248 = vmatpush1.msra.mxu0 0.0
        %1249 = vmatprep.subr.mxu0 0.0
        %1250 = vmatpush1.msra.mxu0 0.0
        %1251 = vmatprep.subr.mxu0 0.0
        %1252 = vmatpush1.msra.mxu0 0.0
        %1253 = vmatprep.subr.mxu0 0.0
        %1254 = vmatpush1.msra.mxu0 0.0
        %1255 = vmatprep.subr.mxu0 0.0
        %1256 = vmatpush1.msra.mxu0 0.0
        %1257 = vmatprep.subr.mxu0 0.0
        %1258 = vmatpush1.msra.mxu0 0.0
        %1259 = vmatprep.subr.mxu0 0.0
        %1260 = vmatpush1.msra.mxu0 0.0
        %1261 = vmatprep.subr.mxu0 0.0
        %1262 = vmatpush1.msra.mxu0 0.0
        %1263 = vmatprep.subr.mxu0 0.0
        %1264 = vmatpush1.msra.mxu0 0.0
        %1265 = vmatprep.subr.mxu0 0.0
        %1266 = vmatpush1.msra.mxu0 0.0
        %1267 = vmatprep.subr.mxu0 0.0
        %1268 = vmatpush1.msra.mxu0 0.0
        %1269 = vmatprep.subr.mxu0 0.0
        %1270 = vmatpush1.msra.mxu0 0.0
        %1271 = vmatprep.subr.mxu0 0.0
        %1272 = vmatpush1.msra.mxu0 0.0
        %1273 = vmatprep.subr.mxu0 0.0
        %1274 = vmatpush1.msra.mxu0 0.0
        %1275 = vmatprep.subr.mxu0 0.0
        %1276 = vmatpush1.msra.mxu0 0.0
        %1277 = vmatprep.subr.mxu0 0.0
        %1278 = vmatpush1.msra.mxu0 0.0
        %1279 = vmatprep.mubr.f32.mxu0 0.0
        %v1280 = vand.u32 %v825, 4294901760
        %1281 = vmatmul.mubr.f32.gmra.mrb[0].mxu0 %v1280
        %v1282 = vpop.f32.mrb[0].mxu0
        %v1283 = vadd.f32 %v1210, %v1282
        %v1284 = vpop.f32.mrb[0].mxu0
        %1285 = vdwg.mxu0
        %v1286 = vld [vmem:[%s4] sm:$0xff]
        %v1287 = vld [vmem:[%s4 + $0x8] sm:$0xff]
        %v1288 = vld [vmem:[%s4 + $0x10] sm:$0xff]
        %v1289 = vld [vmem:[%s4 + $0x18] sm:$0xff]
        %v1290 = vld [vmem:[%s4 + $0x20] sm:$0xff]
        %v1291 = vld [vmem:[%s4 + $0x28] sm:$0xff]
        %v1292 = vld [vmem:[%s4 + $0x30] sm:$0xff]
        %v1293 = vld [vmem:[%s4 + $0x38] sm:$0xff]
        %v1294 = vld [vmem:[%s4 + $0x40] sm:$0xff]
        %v1295 = vld [vmem:[%s4 + $0x48] sm:$0xff]
        %v1296 = vld [vmem:[%s4 + $0x50] sm:$0xff]
        %v1297 = vld [vmem:[%s4 + $0x58] sm:$0xff]
        %v1298 = vld [vmem:[%s4 + $0x60] sm:$0xff]
        %v1299 = vld [vmem:[%s4 + $0x68] sm:$0xff]
        %v1300 = vld [vmem:[%s4 + $0x70] sm:$0xff]
        %v1301 = vld [vmem:[%s4 + $0x78] sm:$0xff]
        %1302 = vmatprep.subr.mxu0 0.0
        %v1303 = vand.u32 %v1286, 4294901760
        %1304 = vmatpush1.msra.mxu0 %v1303
        %1305 = vmatprep.subr.mxu0 0.0
        %v1306 = vand.u32 %v1287, 4294901760
        %1307 = vmatpush1.msra.mxu0 %v1306
        %1308 = vmatprep.subr.mxu0 0.0
        %v1309 = vand.u32 %v1288, 4294901760
        %1310 = vmatpush1.msra.mxu0 %v1309
        %1311 = vmatprep.subr.mxu0 0.0
        %v1312 = vand.u32 %v1289, 4294901760
        %1313 = vmatpush1.msra.mxu0 %v1312
        %1314 = vmatprep.subr.mxu0 0.0
        %v1315 = vand.u32 %v1290, 4294901760
        %1316 = vmatpush1.msra.mxu0 %v1315
        %1317 = vmatprep.subr.mxu0 0.0
        %v1318 = vand.u32 %v1291, 4294901760
        %1319 = vmatpush1.msra.mxu0 %v1318
        %1320 = vmatprep.subr.mxu0 0.0
        %v1321 = vand.u32 %v1292, 4294901760
        %1322 = vmatpush1.msra.mxu0 %v1321
        %1323 = vmatprep.subr.mxu0 0.0
        %v1324 = vand.u32 %v1293, 4294901760
        %1325 = vmatpush1.msra.mxu0 %v1324
        %1326 = vmatprep.subr.mxu0 0.0
        %v1327 = vand.u32 %v1294, 4294901760
        %1328 = vmatpush1.msra.mxu0 %v1327
        %1329 = vmatprep.subr.mxu0 0.0
        %v1330 = vand.u32 %v1295, 4294901760
        %1331 = vmatpush1.msra.mxu0 %v1330
        %1332 = vmatprep.subr.mxu0 0.0
        %v1333 = vand.u32 %v1296, 4294901760
        %1334 = vmatpush1.msra.mxu0 %v1333
        %1335 = vmatprep.subr.mxu0 0.0
        %v1336 = vand.u32 %v1297, 4294901760
        %1337 = vmatpush1.msra.mxu0 %v1336
        %1338 = vmatprep.subr.mxu0 0.0
        %v1339 = vand.u32 %v1298, 4294901760
        %1340 = vmatpush1.msra.mxu0 %v1339
        %1341 = vmatprep.subr.mxu0 0.0
        %v1342 = vand.u32 %v1299, 4294901760
        %1343 = vmatpush1.msra.mxu0 %v1342
        %1344 = vmatprep.subr.mxu0 0.0
        %v1345 = vand.u32 %v1300, 4294901760
        %1346 = vmatpush1.msra.mxu0 %v1345
        %1347 = vmatprep.subr.mxu0 0.0
        %v1348 = vand.u32 %v1301, 4294901760
        %1349 = vmatpush1.msra.mxu0 %v1348
        %1350 = vmatprep.subr.mxu0 0.0
        %1351 = vmatpush1.msra.mxu0 0.0
        %1352 = vmatprep.subr.mxu0 0.0
        %1353 = vmatpush1.msra.mxu0 0.0
        %1354 = vmatprep.subr.mxu0 0.0
        %1355 = vmatpush1.msra.mxu0 0.0
        %1356 = vmatprep.subr.mxu0 0.0
        %1357 = vmatpush1.msra.mxu0 0.0
        %1358 = vmatprep.subr.mxu0 0.0
        %1359 = vmatpush1.msra.mxu0 0.0
        %1360 = vmatprep.subr.mxu0 0.0
        %1361 = vmatpush1.msra.mxu0 0.0
        %1362 = vmatprep.subr.mxu0 0.0
        %1363 = vmatpush1.msra.mxu0 0.0
        %1364 = vmatprep.subr.mxu0 0.0
        %1365 = vmatpush1.msra.mxu0 0.0
        %1366 = vmatprep.subr.mxu0 0.0
        %1367 = vmatpush1.msra.mxu0 0.0
        %1368 = vmatprep.subr.mxu0 0.0
        %1369 = vmatpush1.msra.mxu0 0.0
        %1370 = vmatprep.subr.mxu0 0.0
        %1371 = vmatpush1.msra.mxu0 0.0
        %1372 = vmatprep.subr.mxu0 0.0
        %1373 = vmatpush1.msra.mxu0 0.0
        %1374 = vmatprep.subr.mxu0 0.0
        %1375 = vmatpush1.msra.mxu0 0.0
        %1376 = vmatprep.subr.mxu0 0.0
        %1377 = vmatpush1.msra.mxu0 0.0
        %1378 = vmatprep.subr.mxu0 0.0
        %1379 = vmatpush1.msra.mxu0 0.0
        %1380 = vmatprep.subr.mxu0 0.0
        %1381 = vmatpush1.msra.mxu0 0.0
        %1382 = vmatprep.mubr.f32.mxu0 0.0
        %v1383 = vand.u32 %v1283, 4294901760
        %v1384 = vsub.f32 %v1283, %v1383
        %v1385 = vand.u32 %v1384, 4294901760
        %v1386 = vsub.f32 %v1384, %v1385
        %v1387 = vand.u32 %v1386, 4294901760
        %1388 = vmatmul.mubr.f32.gmra.mrb[0].mxu0 %v1387
        %v1389 = vpop.f32.mrb[0].mxu0
        %v1390 = vadd.f32 0.0, %v1389
        %v1391 = vpop.f32.mrb[0].mxu0
        %1392 = vdwg.mxu0
        %1393 = vmatprep.subr.mxu0 0.0
        %v1394 = vand.u32 %v1286, 4294901760
        %v1395 = vsub.f32 %v1286, %v1394
        %v1396 = vand.u32 %v1395, 4294901760
        %v1397 = vsub.f32 %v1395, %v1396
        %v1398 = vand.u32 %v1397, 4294901760
        %1399 = vmatpush1.msra.mxu0 %v1398
        %1400 = vmatprep.subr.mxu0 0.0
        %v1401 = vand.u32 %v1287, 4294901760
        %v1402 = vsub.f32 %v1287, %v1401
        %v1403 = vand.u32 %v1402, 4294901760
        %v1404 = vsub.f32 %v1402, %v1403
        %v1405 = vand.u32 %v1404, 4294901760
        %1406 = vmatpush1.msra.mxu0 %v1405
        %1407 = vmatprep.subr.mxu0 0.0
        %v1408 = vand.u32 %v1288, 4294901760
        %v1409 = vsub.f32 %v1288, %v1408
        %v1410 = vand.u32 %v1409, 4294901760
        %v1411 = vsub.f32 %v1409, %v1410
        %v1412 = vand.u32 %v1411, 4294901760
        %1413 = vmatpush1.msra.mxu0 %v1412
        %1414 = vmatprep.subr.mxu0 0.0
        %v1415 = vand.u32 %v1289, 4294901760
        %v1416 = vsub.f32 %v1289, %v1415
        %v1417 = vand.u32 %v1416, 4294901760
        %v1418 = vsub.f32 %v1416, %v1417
        %v1419 = vand.u32 %v1418, 4294901760
        %1420 = vmatpush1.msra.mxu0 %v1419
        %1421 = vmatprep.subr.mxu0 0.0
        %v1422 = vand.u32 %v1290, 4294901760
        %v1423 = vsub.f32 %v1290, %v1422
        %v1424 = vand.u32 %v1423, 4294901760
        %v1425 = vsub.f32 %v1423, %v1424
        %v1426 = vand.u32 %v1425, 4294901760
        %1427 = vmatpush1.msra.mxu0 %v1426
        %1428 = vmatprep.subr.mxu0 0.0
        %v1429 = vand.u32 %v1291, 4294901760
        %v1430 = vsub.f32 %v1291, %v1429
        %v1431 = vand.u32 %v1430, 4294901760
        %v1432 = vsub.f32 %v1430, %v1431
        %v1433 = vand.u32 %v1432, 4294901760
        %1434 = vmatpush1.msra.mxu0 %v1433
        %1435 = vmatprep.subr.mxu0 0.0
        %v1436 = vand.u32 %v1292, 4294901760
        %v1437 = vsub.f32 %v1292, %v1436
        %v1438 = vand.u32 %v1437, 4294901760
        %v1439 = vsub.f32 %v1437, %v1438
        %v1440 = vand.u32 %v1439, 4294901760
        %1441 = vmatpush1.msra.mxu0 %v1440
        %1442 = vmatprep.subr.mxu0 0.0
        %v1443 = vand.u32 %v1293, 4294901760
        %v1444 = vsub.f32 %v1293, %v1443
        %v1445 = vand.u32 %v1444, 4294901760
        %v1446 = vsub.f32 %v1444, %v1445
        %v1447 = vand.u32 %v1446, 4294901760
        %1448 = vmatpush1.msra.mxu0 %v1447
        %1449 = vmatprep.subr.mxu0 0.0
        %v1450 = vand.u32 %v1294, 4294901760
        %v1451 = vsub.f32 %v1294, %v1450
        %v1452 = vand.u32 %v1451, 4294901760
        %v1453 = vsub.f32 %v1451, %v1452
        %v1454 = vand.u32 %v1453, 4294901760
        %1455 = vmatpush1.msra.mxu0 %v1454
        %1456 = vmatprep.subr.mxu0 0.0
        %v1457 = vand.u32 %v1295, 4294901760
        %v1458 = vsub.f32 %v1295, %v1457
        %v1459 = vand.u32 %v1458, 4294901760
        %v1460 = vsub.f32 %v1458, %v1459
        %v1461 = vand.u32 %v1460, 4294901760
        %1462 = vmatpush1.msra.mxu0 %v1461
        %1463 = vmatprep.subr.mxu0 0.0
        %v1464 = vand.u32 %v1296, 4294901760
        %v1465 = vsub.f32 %v1296, %v1464
        %v1466 = vand.u32 %v1465, 4294901760
        %v1467 = vsub.f32 %v1465, %v1466
        %v1468 = vand.u32 %v1467, 4294901760
        %1469 = vmatpush1.msra.mxu0 %v1468
        %1470 = vmatprep.subr.mxu0 0.0
        %v1471 = vand.u32 %v1297, 4294901760
        %v1472 = vsub.f32 %v1297, %v1471
        %v1473 = vand.u32 %v1472, 4294901760
        %v1474 = vsub.f32 %v1472, %v1473
        %v1475 = vand.u32 %v1474, 4294901760
        %1476 = vmatpush1.msra.mxu0 %v1475
        %1477 = vmatprep.subr.mxu0 0.0
        %v1478 = vand.u32 %v1298, 4294901760
        %v1479 = vsub.f32 %v1298, %v1478
        %v1480 = vand.u32 %v1479, 4294901760
        %v1481 = vsub.f32 %v1479, %v1480
        %v1482 = vand.u32 %v1481, 4294901760
        %1483 = vmatpush1.msra.mxu0 %v1482
        %1484 = vmatprep.subr.mxu0 0.0
        %v1485 = vand.u32 %v1299, 4294901760
        %v1486 = vsub.f32 %v1299, %v1485
        %v1487 = vand.u32 %v1486, 4294901760
        %v1488 = vsub.f32 %v1486, %v1487
        %v1489 = vand.u32 %v1488, 4294901760
        %1490 = vmatpush1.msra.mxu0 %v1489
        %1491 = vmatprep.subr.mxu0 0.0
        %v1492 = vand.u32 %v1300, 4294901760
        %v1493 = vsub.f32 %v1300, %v1492
        %v1494 = vand.u32 %v1493, 4294901760
        %v1495 = vsub.f32 %v1493, %v1494
        %v1496 = vand.u32 %v1495, 4294901760
        %1497 = vmatpush1.msra.mxu0 %v1496
        %1498 = vmatprep.subr.mxu0 0.0
        %v1499 = vand.u32 %v1301, 4294901760
        %v1500 = vsub.f32 %v1301, %v1499
        %v1501 = vand.u32 %v1500, 4294901760
        %v1502 = vsub.f32 %v1500, %v1501
        %v1503 = vand.u32 %v1502, 4294901760
        %1504 = vmatpush1.msra.mxu0 %v1503
        %1505 = vmatprep.subr.mxu0 0.0
        %1506 = vmatpush1.msra.mxu0 0.0
        %1507 = vmatprep.subr.mxu0 0.0
        %1508 = vmatpush1.msra.mxu0 0.0
        %1509 = vmatprep.subr.mxu0 0.0
        %1510 = vmatpush1.msra.mxu0 0.0
        %1511 = vmatprep.subr.mxu0 0.0
        %1512 = vmatpush1.msra.mxu0 0.0
        %1513 = vmatprep.subr.mxu0 0.0
        %1514 = vmatpush1.msra.mxu0 0.0
        %1515 = vmatprep.subr.mxu0 0.0
        %1516 = vmatpush1.msra.mxu0 0.0
        %1517 = vmatprep.subr.mxu0 0.0
        %1518 = vmatpush1.msra.mxu0 0.0
        %1519 = vmatprep.subr.mxu0 0.0
        %1520 = vmatpush1.msra.mxu0 0.0
        %1521 = vmatprep.subr.mxu0 0.0
        %1522 = vmatpush1.msra.mxu0 0.0
        %1523 = vmatprep.subr.mxu0 0.0
        %1524 = vmatpush1.msra.mxu0 0.0
        %1525 = vmatprep.subr.mxu0 0.0
        %1526 = vmatpush1.msra.mxu0 0.0
        %1527 = vmatprep.subr.mxu0 0.0
        %1528 = vmatpush1.msra.mxu0 0.0
        %1529 = vmatprep.subr.mxu0 0.0
        %1530 = vmatpush1.msra.mxu0 0.0
        %1531 = vmatprep.subr.mxu0 0.0
        %1532 = vmatpush1.msra.mxu0 0.0
        %1533 = vmatprep.subr.mxu0 0.0
        %1534 = vmatpush1.msra.mxu0 0.0
        %1535 = vmatprep.subr.mxu0 0.0
        %1536 = vmatpush1.msra.mxu0 0.0
        %1537 = vmatprep.mubr.f32.mxu0 0.0
        %v1538 = vand.u32 %v1283, 4294901760
        %1539 = vmatmul.mubr.f32.gmra.mrb[0].mxu0 %v1538
        %v1540 = vpop.f32.mrb[0].mxu0
        %v1541 = vadd.f32 %v1390, %v1540
        %v1542 = vpop.f32.mrb[0].mxu0
        %1543 = vdwg.mxu0
        %1544 = vmatprep.subr.mxu0 0.0
        %v1545 = vand.u32 %v1286, 4294901760
        %v1546 = vsub.f32 %v1286, %v1545
        %1547 = vmatpush1.msra.mxu0 %v1546
        %1548 = vmatprep.subr.mxu0 0.0
        %v1549 = vand.u32 %v1287, 4294901760
        %v1550 = vsub.f32 %v1287, %v1549
        %1551 = vmatpush1.msra.mxu0 %v1550
        %1552 = vmatprep.subr.mxu0 0.0
        %v1553 = vand.u32 %v1288, 4294901760
        %v1554 = vsub.f32 %v1288, %v1553
        %1555 = vmatpush1.msra.mxu0 %v1554
        %1556 = vmatprep.subr.mxu0 0.0
        %v1557 = vand.u32 %v1289, 4294901760
        %v1558 = vsub.f32 %v1289, %v1557
        %1559 = vmatpush1.msra.mxu0 %v1558
        %1560 = vmatprep.subr.mxu0 0.0
        %v1561 = vand.u32 %v1290, 4294901760
        %v1562 = vsub.f32 %v1290, %v1561
        %1563 = vmatpush1.msra.mxu0 %v1562
        %1564 = vmatprep.subr.mxu0 0.0
        %v1565 = vand.u32 %v1291, 4294901760
        %v1566 = vsub.f32 %v1291, %v1565
        %1567 = vmatpush1.msra.mxu0 %v1566
        %1568 = vmatprep.subr.mxu0 0.0
        %v1569 = vand.u32 %v1292, 4294901760
        %v1570 = vsub.f32 %v1292, %v1569
        %1571 = vmatpush1.msra.mxu0 %v1570
        %1572 = vmatprep.subr.mxu0 0.0
        %v1573 = vand.u32 %v1293, 4294901760
        %v1574 = vsub.f32 %v1293, %v1573
        %1575 = vmatpush1.msra.mxu0 %v1574
        %1576 = vmatprep.subr.mxu0 0.0
        %v1577 = vand.u32 %v1294, 4294901760
        %v1578 = vsub.f32 %v1294, %v1577
        %1579 = vmatpush1.msra.mxu0 %v1578
        %1580 = vmatprep.subr.mxu0 0.0
        %v1581 = vand.u32 %v1295, 4294901760
        %v1582 = vsub.f32 %v1295, %v1581
        %1583 = vmatpush1.msra.mxu0 %v1582
        %1584 = vmatprep.subr.mxu0 0.0
        %v1585 = vand.u32 %v1296, 4294901760
        %v1586 = vsub.f32 %v1296, %v1585
        %1587 = vmatpush1.msra.mxu0 %v1586
        %1588 = vmatprep.subr.mxu0 0.0
        %v1589 = vand.u32 %v1297, 4294901760
        %v1590 = vsub.f32 %v1297, %v1589
        %1591 = vmatpush1.msra.mxu0 %v1590
        %1592 = vmatprep.subr.mxu0 0.0
        %v1593 = vand.u32 %v1298, 4294901760
        %v1594 = vsub.f32 %v1298, %v1593
        %1595 = vmatpush1.msra.mxu0 %v1594
        %1596 = vmatprep.subr.mxu0 0.0
        %v1597 = vand.u32 %v1299, 4294901760
        %v1598 = vsub.f32 %v1299, %v1597
        %1599 = vmatpush1.msra.mxu0 %v1598
        %1600 = vmatprep.subr.mxu0 0.0
        %v1601 = vand.u32 %v1300, 4294901760
        %v1602 = vsub.f32 %v1300, %v1601
        %1603 = vmatpush1.msra.mxu0 %v1602
        %1604 = vmatprep.subr.mxu0 0.0
        %v1605 = vand.u32 %v1301, 4294901760
        %v1606 = vsub.f32 %v1301, %v1605
        %1607 = vmatpush1.msra.mxu0 %v1606
        %1608 = vmatprep.subr.mxu0 0.0
        %1609 = vmatpush1.msra.mxu0 0.0
        %1610 = vmatprep.subr.mxu0 0.0
        %1611 = vmatpush1.msra.mxu0 0.0
        %1612 = vmatprep.subr.mxu0 0.0
        %1613 = vmatpush1.msra.mxu0 0.0
        %1614 = vmatprep.subr.mxu0 0.0
        %1615 = vmatpush1.msra.mxu0 0.0
        %1616 = vmatprep.subr.mxu0 0.0
        %1617 = vmatpush1.msra.mxu0 0.0
        %1618 = vmatprep.subr.mxu0 0.0
        %1619 = vmatpush1.msra.mxu0 0.0
        %1620 = vmatprep.subr.mxu0 0.0
        %1621 = vmatpush1.msra.mxu0 0.0
        %1622 = vmatprep.subr.mxu0 0.0
        %1623 = vmatpush1.msra.mxu0 0.0
        %1624 = vmatprep.subr.mxu0 0.0
        %1625 = vmatpush1.msra.mxu0 0.0
        %1626 = vmatprep.subr.mxu0 0.0
        %1627 = vmatpush1.msra.mxu0 0.0
        %1628 = vmatprep.subr.mxu0 0.0
        %1629 = vmatpush1.msra.mxu0 0.0
        %1630 = vmatprep.subr.mxu0 0.0
        %1631 = vmatpush1.msra.mxu0 0.0
        %1632 = vmatprep.subr.mxu0 0.0
        %1633 = vmatpush1.msra.mxu0 0.0
        %1634 = vmatprep.subr.mxu0 0.0
        %1635 = vmatpush1.msra.mxu0 0.0
        %1636 = vmatprep.subr.mxu0 0.0
        %1637 = vmatpush1.msra.mxu0 0.0
        %1638 = vmatprep.subr.mxu0 0.0
        %1639 = vmatpush1.msra.mxu0 0.0
        %1640 = vmatprep.mubr.f32.mxu0 0.0
        %v1641 = vand.u32 %v1283, 4294901760
        %v1642 = vsub.f32 %v1283, %v1641
        %1643 = vmatmul.mubr.f32.gmra.mrb[0].mxu0 %v1642
        %v1644 = vpop.f32.mrb[0].mxu0
        %v1645 = vadd.f32 %v1541, %v1644
        %v1646 = vpop.f32.mrb[0].mxu0
        %1647 = vdwg.mxu0
        %1648 = vmatprep.subr.mxu0 0.0
        %v1649 = vand.u32 %v1286, 4294901760
        %1650 = vmatpush1.msra.mxu0 %v1649
        %1651 = vmatprep.subr.mxu0 0.0
        %v1652 = vand.u32 %v1287, 4294901760
        %1653 = vmatpush1.msra.mxu0 %v1652
        %1654 = vmatprep.subr.mxu0 0.0
        %v1655 = vand.u32 %v1288, 4294901760
        %1656 = vmatpush1.msra.mxu0 %v1655
        %1657 = vmatprep.subr.mxu0 0.0
        %v1658 = vand.u32 %v1289, 4294901760
        %1659 = vmatpush1.msra.mxu0 %v1658
        %1660 = vmatprep.subr.mxu0 0.0
        %v1661 = vand.u32 %v1290, 4294901760
        %1662 = vmatpush1.msra.mxu0 %v1661
        %1663 = vmatprep.subr.mxu0 0.0
        %v1664 = vand.u32 %v1291, 4294901760
        %1665 = vmatpush1.msra.mxu0 %v1664
        %1666 = vmatprep.subr.mxu0 0.0
        %v1667 = vand.u32 %v1292, 4294901760
        %1668 = vmatpush1.msra.mxu0 %v1667
        %1669 = vmatprep.subr.mxu0 0.0
        %v1670 = vand.u32 %v1293, 4294901760
        %1671 = vmatpush1.msra.mxu0 %v1670
        %1672 = vmatprep.subr.mxu0 0.0
        %v1673 = vand.u32 %v1294, 4294901760
        %1674 = vmatpush1.msra.mxu0 %v1673
        %1675 = vmatprep.subr.mxu0 0.0
        %v1676 = vand.u32 %v1295, 4294901760
        %1677 = vmatpush1.msra.mxu0 %v1676
        %1678 = vmatprep.subr.mxu0 0.0
        %v1679 = vand.u32 %v1296, 4294901760
        %1680 = vmatpush1.msra.mxu0 %v1679
        %1681 = vmatprep.subr.mxu0 0.0
        %v1682 = vand.u32 %v1297, 4294901760
        %1683 = vmatpush1.msra.mxu0 %v1682
        %1684 = vmatprep.subr.mxu0 0.0
        %v1685 = vand.u32 %v1298, 4294901760
        %1686 = vmatpush1.msra.mxu0 %v1685
        %1687 = vmatprep.subr.mxu0 0.0
        %v1688 = vand.u32 %v1299, 4294901760
        %1689 = vmatpush1.msra.mxu0 %v1688
        %1690 = vmatprep.subr.mxu0 0.0
        %v1691 = vand.u32 %v1300, 4294901760
        %1692 = vmatpush1.msra.mxu0 %v1691
        %1693 = vmatprep.subr.mxu0 0.0
        %v1694 = vand.u32 %v1301, 4294901760
        %1695 = vmatpush1.msra.mxu0 %v1694
        %1696 = vmatprep.subr.mxu0 0.0
        %1697 = vmatpush1.msra.mxu0 0.0
        %1698 = vmatprep.subr.mxu0 0.0
        %1699 = vmatpush1.msra.mxu0 0.0
        %1700 = vmatprep.subr.mxu0 0.0
        %1701 = vmatpush1.msra.mxu0 0.0
        %1702 = vmatprep.subr.mxu0 0.0
        %1703 = vmatpush1.msra.mxu0 0.0
        %1704 = vmatprep.subr.mxu0 0.0
        %1705 = vmatpush1.msra.mxu0 0.0
        %1706 = vmatprep.subr.mxu0 0.0
        %1707 = vmatpush1.msra.mxu0 0.0
        %1708 = vmatprep.subr.mxu0 0.0
        %1709 = vmatpush1.msra.mxu0 0.0
        %1710 = vmatprep.subr.mxu0 0.0
        %1711 = vmatpush1.msra.mxu0 0.0
        %1712 = vmatprep.subr.mxu0 0.0
        %1713 = vmatpush1.msra.mxu0 0.0
        %1714 = vmatprep.subr.mxu0 0.0
        %1715 = vmatpush1.msra.mxu0 0.0
        %1716 = vmatprep.subr.mxu0 0.0
        %1717 = vmatpush1.msra.mxu0 0.0
        %1718 = vmatprep.subr.mxu0 0.0
        %1719 = vmatpush1.msra.mxu0 0.0
        %1720 = vmatprep.subr.mxu0 0.0
        %1721 = vmatpush1.msra.mxu0 0.0
        %1722 = vmatprep.subr.mxu0 0.0
        %1723 = vmatpush1.msra.mxu0 0.0
        %1724 = vmatprep.subr.mxu0 0.0
        %1725 = vmatpush1.msra.mxu0 0.0
        %1726 = vmatprep.subr.mxu0 0.0
        %1727 = vmatpush1.msra.mxu0 0.0
        %1728 = vmatprep.mubr.f32.mxu0 0.0
        %v1729 = vand.u32 %v1283, 4294901760
        %v1730 = vsub.f32 %v1283, %v1729
        %v1731 = vand.u32 %v1730, 4294901760
        %1732 = vmatmul.mubr.f32.gmra.mrb[0].mxu0 %v1731
        %v1733 = vpop.f32.mrb[0].mxu0
        %v1734 = vadd.f32 %v1645, %v1733
        %v1735 = vpop.f32.mrb[0].mxu0
        %1736 = vdwg.mxu0
        %1737 = vmatprep.subr.mxu0 0.0
        %v1738 = vand.u32 %v1286, 4294901760
        %v1739 = vsub.f32 %v1286, %v1738
        %v1740 = vand.u32 %v1739, 4294901760
        %1741 = vmatpush1.msra.mxu0 %v1740
        %1742 = vmatprep.subr.mxu0 0.0
        %v1743 = vand.u32 %v1287, 4294901760
        %v1744 = vsub.f32 %v1287, %v1743
        %v1745 = vand.u32 %v1744, 4294901760
        %1746 = vmatpush1.msra.mxu0 %v1745
        %1747 = vmatprep.subr.mxu0 0.0
        %v1748 = vand.u32 %v1288, 4294901760
        %v1749 = vsub.f32 %v1288, %v1748
        %v1750 = vand.u32 %v1749, 4294901760
        %1751 = vmatpush1.msra.mxu0 %v1750
        %1752 = vmatprep.subr.mxu0 0.0
        %v1753 = vand.u32 %v1289, 4294901760
        %v1754 = vsub.f32 %v1289, %v1753
        %v1755 = vand.u32 %v1754, 4294901760
        %1756 = vmatpush1.msra.mxu0 %v1755
        %1757 = vmatprep.subr.mxu0 0.0
        %v1758 = vand.u32 %v1290, 4294901760
        %v1759 = vsub.f32 %v1290, %v1758
        %v1760 = vand.u32 %v1759, 4294901760
        %1761 = vmatpush1.msra.mxu0 %v1760
        %1762 = vmatprep.subr.mxu0 0.0
        %v1763 = vand.u32 %v1291, 4294901760
        %v1764 = vsub.f32 %v1291, %v1763
        %v1765 = vand.u32 %v1764, 4294901760
        %1766 = vmatpush1.msra.mxu0 %v1765
        %1767 = vmatprep.subr.mxu0 0.0
        %v1768 = vand.u32 %v1292, 4294901760
        %v1769 = vsub.f32 %v1292, %v1768
        %v1770 = vand.u32 %v1769, 4294901760
        %1771 = vmatpush1.msra.mxu0 %v1770
        %1772 = vmatprep.subr.mxu0 0.0
        %v1773 = vand.u32 %v1293, 4294901760
        %v1774 = vsub.f32 %v1293, %v1773
        %v1775 = vand.u32 %v1774, 4294901760
        %1776 = vmatpush1.msra.mxu0 %v1775
        %1777 = vmatprep.subr.mxu0 0.0
        %v1778 = vand.u32 %v1294, 4294901760
        %v1779 = vsub.f32 %v1294, %v1778
        %v1780 = vand.u32 %v1779, 4294901760
        %1781 = vmatpush1.msra.mxu0 %v1780
        %1782 = vmatprep.subr.mxu0 0.0
        %v1783 = vand.u32 %v1295, 4294901760
        %v1784 = vsub.f32 %v1295, %v1783
        %v1785 = vand.u32 %v1784, 4294901760
        %1786 = vmatpush1.msra.mxu0 %v1785
        %1787 = vmatprep.subr.mxu0 0.0
        %v1788 = vand.u32 %v1296, 4294901760
        %v1789 = vsub.f32 %v1296, %v1788
        %v1790 = vand.u32 %v1789, 4294901760
        %1791 = vmatpush1.msra.mxu0 %v1790
        %1792 = vmatprep.subr.mxu0 0.0
        %v1793 = vand.u32 %v1297, 4294901760
        %v1794 = vsub.f32 %v1297, %v1793
        %v1795 = vand.u32 %v1794, 4294901760
        %1796 = vmatpush1.msra.mxu0 %v1795
        %1797 = vmatprep.subr.mxu0 0.0
        %v1798 = vand.u32 %v1298, 4294901760
        %v1799 = vsub.f32 %v1298, %v1798
        %v1800 = vand.u32 %v1799, 4294901760
        %1801 = vmatpush1.msra.mxu0 %v1800
        %1802 = vmatprep.subr.mxu0 0.0
        %v1803 = vand.u32 %v1299, 4294901760
        %v1804 = vsub.f32 %v1299, %v1803
        %v1805 = vand.u32 %v1804, 4294901760
        %1806 = vmatpush1.msra.mxu0 %v1805
        %1807 = vmatprep.subr.mxu0 0.0
        %v1808 = vand.u32 %v1300, 4294901760
        %v1809 = vsub.f32 %v1300, %v1808
        %v1810 = vand.u32 %v1809, 4294901760
        %1811 = vmatpush1.msra.mxu0 %v1810
        %1812 = vmatprep.subr.mxu0 0.0
        %v1813 = vand.u32 %v1301, 4294901760
        %v1814 = vsub.f32 %v1301, %v1813
        %v1815 = vand.u32 %v1814, 4294901760
        %1816 = vmatpush1.msra.mxu0 %v1815
        %1817 = vmatprep.subr.mxu0 0.0
        %1818 = vmatpush1.msra.mxu0 0.0
        %1819 = vmatprep.subr.mxu0 0.0
        %1820 = vmatpush1.msra.mxu0 0.0
        %1821 = vmatprep.subr.mxu0 0.0
        %1822 = vmatpush1.msra.mxu0 0.0
        %1823 = vmatprep.subr.mxu0 0.0
        %1824 = vmatpush1.msra.mxu0 0.0
        %1825 = vmatprep.subr.mxu0 0.0
        %1826 = vmatpush1.msra.mxu0 0.0
        %1827 = vmatprep.subr.mxu0 0.0
        %1828 = vmatpush1.msra.mxu0 0.0
        %1829 = vmatprep.subr.mxu0 0.0
        %1830 = vmatpush1.msra.mxu0 0.0
        %1831 = vmatprep.subr.mxu0 0.0
        %1832 = vmatpush1.msra.mxu0 0.0
        %1833 = vmatprep.subr.mxu0 0.0
        %1834 = vmatpush1.msra.mxu0 0.0
        %1835 = vmatprep.subr.mxu0 0.0
        %1836 = vmatpush1.msra.mxu0 0.0
        %1837 = vmatprep.subr.mxu0 0.0
        %1838 = vmatpush1.msra.mxu0 0.0
        %1839 = vmatprep.subr.mxu0 0.0
        %1840 = vmatpush1.msra.mxu0 0.0
        %1841 = vmatprep.subr.mxu0 0.0
        %1842 = vmatpush1.msra.mxu0 0.0
        %1843 = vmatprep.subr.mxu0 0.0
        %1844 = vmatpush1.msra.mxu0 0.0
        %1845 = vmatprep.subr.mxu0 0.0
        %1846 = vmatpush1.msra.mxu0 0.0
        %1847 = vmatprep.subr.mxu0 0.0
        %1848 = vmatpush1.msra.mxu0 0.0
        %1849 = vmatprep.mubr.f32.mxu0 0.0
        %v1850 = vand.u32 %v1283, 4294901760
        %1851 = vmatmul.mubr.f32.gmra.mrb[0].mxu0 %v1850
        %v1852 = vpop.f32.mrb[0].mxu0
        %v1853 = vadd.f32 %v1734, %v1852
        %v1854 = vpop.f32.mrb[0].mxu0
        %1855 = vdwg.mxu0
        %1856 = vmatprep.subr.mxu0 0.0
        %v1857 = vand.u32 %v1286, 4294901760
        %1858 = vmatpush1.msra.mxu0 %v1857
        %1859 = vmatprep.subr.mxu0 0.0
        %v1860 = vand.u32 %v1287, 4294901760
        %1861 = vmatpush1.msra.mxu0 %v1860
        %1862 = vmatprep.subr.mxu0 0.0
        %v1863 = vand.u32 %v1288, 4294901760
        %1864 = vmatpush1.msra.mxu0 %v1863
        %1865 = vmatprep.subr.mxu0 0.0
        %v1866 = vand.u32 %v1289, 4294901760
        %1867 = vmatpush1.msra.mxu0 %v1866
        %1868 = vmatprep.subr.mxu0 0.0
        %v1869 = vand.u32 %v1290, 4294901760
        %1870 = vmatpush1.msra.mxu0 %v1869
        %1871 = vmatprep.subr.mxu0 0.0
        %v1872 = vand.u32 %v1291, 4294901760
        %1873 = vmatpush1.msra.mxu0 %v1872
        %1874 = vmatprep.subr.mxu0 0.0
        %v1875 = vand.u32 %v1292, 4294901760
        %1876 = vmatpush1.msra.mxu0 %v1875
        %1877 = vmatprep.subr.mxu0 0.0
        %v1878 = vand.u32 %v1293, 4294901760
        %1879 = vmatpush1.msra.mxu0 %v1878
        %1880 = vmatprep.subr.mxu0 0.0
        %v1881 = vand.u32 %v1294, 4294901760
        %1882 = vmatpush1.msra.mxu0 %v1881
        %1883 = vmatprep.subr.mxu0 0.0
        %v1884 = vand.u32 %v1295, 4294901760
        %1885 = vmatpush1.msra.mxu0 %v1884
        %1886 = vmatprep.subr.mxu0 0.0
        %v1887 = vand.u32 %v1296, 4294901760
        %1888 = vmatpush1.msra.mxu0 %v1887
        %1889 = vmatprep.subr.mxu0 0.0
        %v1890 = vand.u32 %v1297, 4294901760
        %1891 = vmatpush1.msra.mxu0 %v1890
        %1892 = vmatprep.subr.mxu0 0.0
        %v1893 = vand.u32 %v1298, 4294901760
        %1894 = vmatpush1.msra.mxu0 %v1893
        %1895 = vmatprep.subr.mxu0 0.0
        %v1896 = vand.u32 %v1299, 4294901760
        %1897 = vmatpush1.msra.mxu0 %v1896
        %1898 = vmatprep.subr.mxu0 0.0
        %v1899 = vand.u32 %v1300, 4294901760
        %1900 = vmatpush1.msra.mxu0 %v1899
        %1901 = vmatprep.subr.mxu0 0.0
        %v1902 = vand.u32 %v1301, 4294901760
        %1903 = vmatpush1.msra.mxu0 %v1902
        %1904 = vmatprep.subr.mxu0 0.0
        %1905 = vmatpush1.msra.mxu0 0.0
        %1906 = vmatprep.subr.mxu0 0.0
        %1907 = vmatpush1.msra.mxu0 0.0
        %1908 = vmatprep.subr.mxu0 0.0
        %1909 = vmatpush1.msra.mxu0 0.0
        %1910 = vmatprep.subr.mxu0 0.0
        %1911 = vmatpush1.msra.mxu0 0.0
        %1912 = vmatprep.subr.mxu0 0.0
        %1913 = vmatpush1.msra.mxu0 0.0
        %1914 = vmatprep.subr.mxu0 0.0
        %1915 = vmatpush1.msra.mxu0 0.0
        %1916 = vmatprep.subr.mxu0 0.0
        %1917 = vmatpush1.msra.mxu0 0.0
        %1918 = vmatprep.subr.mxu0 0.0
        %1919 = vmatpush1.msra.mxu0 0.0
        %1920 = vmatprep.subr.mxu0 0.0
        %1921 = vmatpush1.msra.mxu0 0.0
        %1922 = vmatprep.subr.mxu0 0.0
        %1923 = vmatpush1.msra.mxu0 0.0
        %1924 = vmatprep.subr.mxu0 0.0
        %1925 = vmatpush1.msra.mxu0 0.0
        %1926 = vmatprep.subr.mxu0 0.0
        %1927 = vmatpush1.msra.mxu0 0.0
        %1928 = vmatprep.subr.mxu0 0.0
        %1929 = vmatpush1.msra.mxu0 0.0
        %1930 = vmatprep.subr.mxu0 0.0
        %1931 = vmatpush1.msra.mxu0 0.0
        %1932 = vmatprep.subr.mxu0 0.0
        %1933 = vmatpush1.msra.mxu0 0.0
        %1934 = vmatprep.subr.mxu0 0.0
        %1935 = vmatpush1.msra.mxu0 0.0
        %1936 = vmatprep.mubr.f32.mxu0 0.0
        %v1937 = vand.u32 %v1283, 4294901760
        %1938 = vmatmul.mubr.f32.gmra.mrb[0].mxu0 %v1937
        %v1939 = vpop.f32.mrb[0].mxu0
        %v1940 = vadd.f32 %v1853, %v1939
        %v1941 = vpop.f32.mrb[0].mxu0
        %1942 = vdwg.mxu0
        %1943 = vmatprep.subr.mxu0 0.0
        %v1944 = vand.u32 %v1286, 4294901760
        %1945 = vmatpush1.msra.mxu0 %v1944
        %1946 = vmatprep.subr.mxu0 0.0
        %v1947 = vand.u32 %v1287, 4294901760
        %1948 = vmatpush1.msra.mxu0 %v1947
        %1949 = vmatprep.subr.mxu0 0.0
        %v1950 = vand.u32 %v1288, 4294901760
        %1951 = vmatpush1.msra.mxu0 %v1950
        %1952 = vmatprep.subr.mxu0 0.0
        %v1953 = vand.u32 %v1289, 4294901760
        %1954 = vmatpush1.msra.mxu0 %v1953
        %1955 = vmatprep.subr.mxu0 0.0
        %v1956 = vand.u32 %v1290, 4294901760
        %1957 = vmatpush1.msra.mxu0 %v1956
        %1958 = vmatprep.subr.mxu0 0.0
        %v1959 = vand.u32 %v1291, 4294901760
        %1960 = vmatpush1.msra.mxu0 %v1959
        %1961 = vmatprep.subr.mxu0 0.0
        %v1962 = vand.u32 %v1292, 4294901760
        %1963 = vmatpush1.msra.mxu0 %v1962
        %1964 = vmatprep.subr.mxu0 0.0
        %v1965 = vand.u32 %v1293, 4294901760
        %1966 = vmatpush1.msra.mxu0 %v1965
        %1967 = vmatprep.subr.mxu0 0.0
        %v1968 = vand.u32 %v1294, 4294901760
        %1969 = vmatpush1.msra.mxu0 %v1968
        %1970 = vmatprep.subr.mxu0 0.0
        %v1971 = vand.u32 %v1295, 4294901760
        %1972 = vmatpush1.msra.mxu0 %v1971
        %1973 = vmatprep.subr.mxu0 0.0
        %v1974 = vand.u32 %v1296, 4294901760
        %1975 = vmatpush1.msra.mxu0 %v1974
        %1976 = vmatprep.subr.mxu0 0.0
        %v1977 = vand.u32 %v1297, 4294901760
        %1978 = vmatpush1.msra.mxu0 %v1977
        %1979 = vmatprep.subr.mxu0 0.0
        %v1980 = vand.u32 %v1298, 4294901760
        %1981 = vmatpush1.msra.mxu0 %v1980
        %1982 = vmatprep.subr.mxu0 0.0
        %v1983 = vand.u32 %v1299, 4294901760
        %1984 = vmatpush1.msra.mxu0 %v1983
        %1985 = vmatprep.subr.mxu0 0.0
        %v1986 = vand.u32 %v1300, 4294901760
        %1987 = vmatpush1.msra.mxu0 %v1986
        %1988 = vmatprep.subr.mxu0 0.0
        %v1989 = vand.u32 %v1301, 4294901760
        %1990 = vmatpush1.msra.mxu0 %v1989
        %1991 = vmatprep.subr.mxu0 0.0
        %1992 = vmatpush1.msra.mxu0 0.0
        %1993 = vmatprep.subr.mxu0 0.0
        %1994 = vmatpush1.msra.mxu0 0.0
        %1995 = vmatprep.subr.mxu0 0.0
        %1996 = vmatpush1.msra.mxu0 0.0
        %1997 = vmatprep.subr.mxu0 0.0
        %1998 = vmatpush1.msra.mxu0 0.0
        %1999 = vmatprep.subr.mxu0 0.0
        %2000 = vmatpush1.msra.mxu0 0.0
        %2001 = vmatprep.subr.mxu0 0.0
        %2002 = vmatpush1.msra.mxu0 0.0
        %2003 = vmatprep.subr.mxu0 0.0
        %2004 = vmatpush1.msra.mxu0 0.0
        %2005 = vmatprep.subr.mxu0 0.0
        %2006 = vmatpush1.msra.mxu0 0.0
        %2007 = vmatprep.subr.mxu0 0.0
        %2008 = vmatpush1.msra.mxu0 0.0
        %2009 = vmatprep.subr.mxu0 0.0
        %2010 = vmatpush1.msra.mxu0 0.0
        %2011 = vmatprep.subr.mxu0 0.0
        %2012 = vmatpush1.msra.mxu0 0.0
        %2013 = vmatprep.subr.mxu0 0.0
        %2014 = vmatpush1.msra.mxu0 0.0
        %2015 = vmatprep.subr.mxu0 0.0
        %2016 = vmatpush1.msra.mxu0 0.0
        %2017 = vmatprep.subr.mxu0 0.0
        %2018 = vmatpush1.msra.mxu0 0.0
        %2019 = vmatprep.subr.mxu0 0.0
        %2020 = vmatpush1.msra.mxu0 0.0
        %2021 = vmatprep.subr.mxu0 0.0
        %2022 = vmatpush1.msra.mxu0 0.0
        %2023 = vmatprep.mubr.f32.mxu0 0.0
        %v2024 = vand.u32 %v820, 4294901760
        %v2025 = vsub.f32 %v820, %v2024
        %v2026 = vand.u32 %v2025, 4294901760
        %v2027 = vsub.f32 %v2025, %v2026
        %v2028 = vand.u32 %v2027, 4294901760
        %2029 = vmatmul.mubr.f32.gmra.mrb[0].mxu0 %v2028
        %v2030 = vpop.f32.mrb[0].mxu0
        %v2031 = vadd.f32 0.0, %v2030
        %v2032 = vpop.f32.mrb[0].mxu0
        %2033 = vdwg.mxu0
        %2034 = vmatprep.subr.mxu0 0.0
        %v2035 = vand.u32 %v1286, 4294901760
        %v2036 = vsub.f32 %v1286, %v2035
        %v2037 = vand.u32 %v2036, 4294901760
        %v2038 = vsub.f32 %v2036, %v2037
        %v2039 = vand.u32 %v2038, 4294901760
        %2040 = vmatpush1.msra.mxu0 %v2039
        %2041 = vmatprep.subr.mxu0 0.0
        %v2042 = vand.u32 %v1287, 4294901760
        %v2043 = vsub.f32 %v1287, %v2042
        %v2044 = vand.u32 %v2043, 4294901760
        %v2045 = vsub.f32 %v2043, %v2044
        %v2046 = vand.u32 %v2045, 4294901760
        %2047 = vmatpush1.msra.mxu0 %v2046
        %2048 = vmatprep.subr.mxu0 0.0
        %v2049 = vand.u32 %v1288, 4294901760
        %v2050 = vsub.f32 %v1288, %v2049
        %v2051 = vand.u32 %v2050, 4294901760
        %v2052 = vsub.f32 %v2050, %v2051
        %v2053 = vand.u32 %v2052, 4294901760
        %2054 = vmatpush1.msra.mxu0 %v2053
        %2055 = vmatprep.subr.mxu0 0.0
        %v2056 = vand.u32 %v1289, 4294901760
        %v2057 = vsub.f32 %v1289, %v2056
        %v2058 = vand.u32 %v2057, 4294901760
        %v2059 = vsub.f32 %v2057, %v2058
        %v2060 = vand.u32 %v2059, 4294901760
        %2061 = vmatpush1.msra.mxu0 %v2060
        %2062 = vmatprep.subr.mxu0 0.0
        %v2063 = vand.u32 %v1290, 4294901760
        %v2064 = vsub.f32 %v1290, %v2063
        %v2065 = vand.u32 %v2064, 4294901760
        %v2066 = vsub.f32 %v2064, %v2065
        %v2067 = vand.u32 %v2066, 4294901760
        %2068 = vmatpush1.msra.mxu0 %v2067
        %2069 = vmatprep.subr.mxu0 0.0
        %v2070 = vand.u32 %v1291, 4294901760
        %v2071 = vsub.f32 %v1291, %v2070
        %v2072 = vand.u32 %v2071, 4294901760
        %v2073 = vsub.f32 %v2071, %v2072
        %v2074 = vand.u32 %v2073, 4294901760
        %2075 = vmatpush1.msra.mxu0 %v2074
        %2076 = vmatprep.subr.mxu0 0.0
        %v2077 = vand.u32 %v1292, 4294901760
        %v2078 = vsub.f32 %v1292, %v2077
        %v2079 = vand.u32 %v2078, 4294901760
        %v2080 = vsub.f32 %v2078, %v2079
        %v2081 = vand.u32 %v2080, 4294901760
        %2082 = vmatpush1.msra.mxu0 %v2081
        %2083 = vmatprep.subr.mxu0 0.0
        %v2084 = vand.u32 %v1293, 4294901760
        %v2085 = vsub.f32 %v1293, %v2084
        %v2086 = vand.u32 %v2085, 4294901760
        %v2087 = vsub.f32 %v2085, %v2086
        %v2088 = vand.u32 %v2087, 4294901760
        %2089 = vmatpush1.msra.mxu0 %v2088
        %2090 = vmatprep.subr.mxu0 0.0
        %v2091 = vand.u32 %v1294, 4294901760
        %v2092 = vsub.f32 %v1294, %v2091
        %v2093 = vand.u32 %v2092, 4294901760
        %v2094 = vsub.f32 %v2092, %v2093
        %v2095 = vand.u32 %v2094, 4294901760
        %2096 = vmatpush1.msra.mxu0 %v2095
        %2097 = vmatprep.subr.mxu0 0.0
        %v2098 = vand.u32 %v1295, 4294901760
        %v2099 = vsub.f32 %v1295, %v2098
        %v2100 = vand.u32 %v2099, 4294901760
        %v2101 = vsub.f32 %v2099, %v2100
        %v2102 = vand.u32 %v2101, 4294901760
        %2103 = vmatpush1.msra.mxu0 %v2102
        %2104 = vmatprep.subr.mxu0 0.0
        %v2105 = vand.u32 %v1296, 4294901760
        %v2106 = vsub.f32 %v1296, %v2105
        %v2107 = vand.u32 %v2106, 4294901760
        %v2108 = vsub.f32 %v2106, %v2107
        %v2109 = vand.u32 %v2108, 4294901760
        %2110 = vmatpush1.msra.mxu0 %v2109
        %2111 = vmatprep.subr.mxu0 0.0
        %v2112 = vand.u32 %v1297, 4294901760
        %v2113 = vsub.f32 %v1297, %v2112
        %v2114 = vand.u32 %v2113, 4294901760
        %v2115 = vsub.f32 %v2113, %v2114
        %v2116 = vand.u32 %v2115, 4294901760
        %2117 = vmatpush1.msra.mxu0 %v2116
        %2118 = vmatprep.subr.mxu0 0.0
        %v2119 = vand.u32 %v1298, 4294901760
        %v2120 = vsub.f32 %v1298, %v2119
        %v2121 = vand.u32 %v2120, 4294901760
        %v2122 = vsub.f32 %v2120, %v2121
        %v2123 = vand.u32 %v2122, 4294901760
        %2124 = vmatpush1.msra.mxu0 %v2123
        %2125 = vmatprep.subr.mxu0 0.0
        %v2126 = vand.u32 %v1299, 4294901760
        %v2127 = vsub.f32 %v1299, %v2126
        %v2128 = vand.u32 %v2127, 4294901760
        %v2129 = vsub.f32 %v2127, %v2128
        %v2130 = vand.u32 %v2129, 4294901760
        %2131 = vmatpush1.msra.mxu0 %v2130
        %2132 = vmatprep.subr.mxu0 0.0
        %v2133 = vand.u32 %v1300, 4294901760
        %v2134 = vsub.f32 %v1300, %v2133
        %v2135 = vand.u32 %v2134, 4294901760
        %v2136 = vsub.f32 %v2134, %v2135
        %v2137 = vand.u32 %v2136, 4294901760
        %2138 = vmatpush1.msra.mxu0 %v2137
        %2139 = vmatprep.subr.mxu0 0.0
        %v2140 = vand.u32 %v1301, 4294901760
        %v2141 = vsub.f32 %v1301, %v2140
        %v2142 = vand.u32 %v2141, 4294901760
        %v2143 = vsub.f32 %v2141, %v2142
        %v2144 = vand.u32 %v2143, 4294901760
        %2145 = vmatpush1.msra.mxu0 %v2144
        %2146 = vmatprep.subr.mxu0 0.0
        %2147 = vmatpush1.msra.mxu0 0.0
        %2148 = vmatprep.subr.mxu0 0.0
        %2149 = vmatpush1.msra.mxu0 0.0
        %2150 = vmatprep.subr.mxu0 0.0
        %2151 = vmatpush1.msra.mxu0 0.0
        %2152 = vmatprep.subr.mxu0 0.0
        %2153 = vmatpush1.msra.mxu0 0.0
        %2154 = vmatprep.subr.mxu0 0.0
        %2155 = vmatpush1.msra.mxu0 0.0
        %2156 = vmatprep.subr.mxu0 0.0
        %2157 = vmatpush1.msra.mxu0 0.0
        %2158 = vmatprep.subr.mxu0 0.0
        %2159 = vmatpush1.msra.mxu0 0.0
        %2160 = vmatprep.subr.mxu0 0.0
        %2161 = vmatpush1.msra.mxu0 0.0
        %2162 = vmatprep.subr.mxu0 0.0
        %2163 = vmatpush1.msra.mxu0 0.0
        %2164 = vmatprep.subr.mxu0 0.0
        %2165 = vmatpush1.msra.mxu0 0.0
        %2166 = vmatprep.subr.mxu0 0.0
        %2167 = vmatpush1.msra.mxu0 0.0
        %2168 = vmatprep.subr.mxu0 0.0
        %2169 = vmatpush1.msra.mxu0 0.0
        %2170 = vmatprep.subr.mxu0 0.0
        %2171 = vmatpush1.msra.mxu0 0.0
        %2172 = vmatprep.subr.mxu0 0.0
        %2173 = vmatpush1.msra.mxu0 0.0
        %2174 = vmatprep.subr.mxu0 0.0
        %2175 = vmatpush1.msra.mxu0 0.0
        %2176 = vmatprep.subr.mxu0 0.0
        %2177 = vmatpush1.msra.mxu0 0.0
        %2178 = vmatprep.mubr.f32.mxu0 0.0
        %v2179 = vand.u32 %v820, 4294901760
        %2180 = vmatmul.mubr.f32.gmra.mrb[0].mxu0 %v2179
        %v2181 = vpop.f32.mrb[0].mxu0
        %v2182 = vadd.f32 %v2031, %v2181
        %v2183 = vpop.f32.mrb[0].mxu0
        %2184 = vdwg.mxu0
        %2185 = vmatprep.subr.mxu0 0.0
        %v2186 = vand.u32 %v1286, 4294901760
        %v2187 = vsub.f32 %v1286, %v2186
        %2188 = vmatpush1.msra.mxu0 %v2187
        %2189 = vmatprep.subr.mxu0 0.0
        %v2190 = vand.u32 %v1287, 4294901760
        %v2191 = vsub.f32 %v1287, %v2190
        %2192 = vmatpush1.msra.mxu0 %v2191
        %2193 = vmatprep.subr.mxu0 0.0
        %v2194 = vand.u32 %v1288, 4294901760
        %v2195 = vsub.f32 %v1288, %v2194
        %2196 = vmatpush1.msra.mxu0 %v2195
        %2197 = vmatprep.subr.mxu0 0.0
        %v2198 = vand.u32 %v1289, 4294901760
        %v2199 = vsub.f32 %v1289, %v2198
        %2200 = vmatpush1.msra.mxu0 %v2199
        %2201 = vmatprep.subr.mxu0 0.0
        %v2202 = vand.u32 %v1290, 4294901760
        %v2203 = vsub.f32 %v1290, %v2202
        %2204 = vmatpush1.msra.mxu0 %v2203
        %2205 = vmatprep.subr.mxu0 0.0
        %v2206 = vand.u32 %v1291, 4294901760
        %v2207 = vsub.f32 %v1291, %v2206
        %2208 = vmatpush1.msra.mxu0 %v2207
        %2209 = vmatprep.subr.mxu0 0.0
        %v2210 = vand.u32 %v1292, 4294901760
        %v2211 = vsub.f32 %v1292, %v2210
        %2212 = vmatpush1.msra.mxu0 %v2211
        %2213 = vmatprep.subr.mxu0 0.0
        %v2214 = vand.u32 %v1293, 4294901760
        %v2215 = vsub.f32 %v1293, %v2214
        %2216 = vmatpush1.msra.mxu0 %v2215
        %2217 = vmatprep.subr.mxu0 0.0
        %v2218 = vand.u32 %v1294, 4294901760
        %v2219 = vsub.f32 %v1294, %v2218
        %2220 = vmatpush1.msra.mxu0 %v2219
        %2221 = vmatprep.subr.mxu0 0.0
        %v2222 = vand.u32 %v1295, 4294901760
        %v2223 = vsub.f32 %v1295, %v2222
        %2224 = vmatpush1.msra.mxu0 %v2223
        %2225 = vmatprep.subr.mxu0 0.0
        %v2226 = vand.u32 %v1296, 4294901760
        %v2227 = vsub.f32 %v1296, %v2226
        %2228 = vmatpush1.msra.mxu0 %v2227
        %2229 = vmatprep.subr.mxu0 0.0
        %v2230 = vand.u32 %v1297, 4294901760
        %v2231 = vsub.f32 %v1297, %v2230
        %2232 = vmatpush1.msra.mxu0 %v2231
        %2233 = vmatprep.subr.mxu0 0.0
        %v2234 = vand.u32 %v1298, 4294901760
        %v2235 = vsub.f32 %v1298, %v2234
        %2236 = vmatpush1.msra.mxu0 %v2235
        %2237 = vmatprep.subr.mxu0 0.0
        %v2238 = vand.u32 %v1299, 4294901760
        %v2239 = vsub.f32 %v1299, %v2238
        %2240 = vmatpush1.msra.mxu0 %v2239
        %2241 = vmatprep.subr.mxu0 0.0
        %v2242 = vand.u32 %v1300, 4294901760
        %v2243 = vsub.f32 %v1300, %v2242
        %2244 = vmatpush1.msra.mxu0 %v2243
        %2245 = vmatprep.subr.mxu0 0.0
        %v2246 = vand.u32 %v1301, 4294901760
        %v2247 = vsub.f32 %v1301, %v2246
        %2248 = vmatpush1.msra.mxu0 %v2247
        %2249 = vmatprep.subr.mxu0 0.0
        %2250 = vmatpush1.msra.mxu0 0.0
        %2251 = vmatprep.subr.mxu0 0.0
        %2252 = vmatpush1.msra.mxu0 0.0
        %2253 = vmatprep.subr.mxu0 0.0
        %2254 = vmatpush1.msra.mxu0 0.0
        %2255 = vmatprep.subr.mxu0 0.0
        %2256 = vmatpush1.msra.mxu0 0.0
        %2257 = vmatprep.subr.mxu0 0.0
        %2258 = vmatpush1.msra.mxu0 0.0
        %2259 = vmatprep.subr.mxu0 0.0
        %2260 = vmatpush1.msra.mxu0 0.0
        %2261 = vmatprep.subr.mxu0 0.0
        %2262 = vmatpush1.msra.mxu0 0.0
        %2263 = vmatprep.subr.mxu0 0.0
        %2264 = vmatpush1.msra.mxu0 0.0
        %2265 = vmatprep.subr.mxu0 0.0
        %2266 = vmatpush1.msra.mxu0 0.0
        %2267 = vmatprep.subr.mxu0 0.0
        %2268 = vmatpush1.msra.mxu0 0.0
        %2269 = vmatprep.subr.mxu0 0.0
        %2270 = vmatpush1.msra.mxu0 0.0
        %2271 = vmatprep.subr.mxu0 0.0
        %2272 = vmatpush1.msra.mxu0 0.0
        %2273 = vmatprep.subr.mxu0 0.0
        %2274 = vmatpush1.msra.mxu0 0.0
        %2275 = vmatprep.subr.mxu0 0.0
        %2276 = vmatpush1.msra.mxu0 0.0
        %2277 = vmatprep.subr.mxu0 0.0
        %2278 = vmatpush1.msra.mxu0 0.0
        %2279 = vmatprep.subr.mxu0 0.0
        %2280 = vmatpush1.msra.mxu0 0.0
        %2281 = vmatprep.mubr.f32.mxu0 0.0
        %v2282 = vand.u32 %v820, 4294901760
        %v2283 = vsub.f32 %v820, %v2282
        %2284 = vmatmul.mubr.f32.gmra.mrb[0].mxu0 %v2283
        %v2285 = vpop.f32.mrb[0].mxu0
        %v2286 = vadd.f32 %v2182, %v2285
        %v2287 = vpop.f32.mrb[0].mxu0
        %2288 = vdwg.mxu0
        %2289 = vmatprep.subr.mxu0 0.0
        %v2290 = vand.u32 %v1286, 4294901760
        %2291 = vmatpush1.msra.mxu0 %v2290
        %2292 = vmatprep.subr.mxu0 0.0
        %v2293 = vand.u32 %v1287, 4294901760
        %2294 = vmatpush1.msra.mxu0 %v2293
        %2295 = vmatprep.subr.mxu0 0.0
        %v2296 = vand.u32 %v1288, 4294901760
        %2297 = vmatpush1.msra.mxu0 %v2296
        %2298 = vmatprep.subr.mxu0 0.0
        %v2299 = vand.u32 %v1289, 4294901760
        %2300 = vmatpush1.msra.mxu0 %v2299
        %2301 = vmatprep.subr.mxu0 0.0
        %v2302 = vand.u32 %v1290, 4294901760
        %2303 = vmatpush1.msra.mxu0 %v2302
        %2304 = vmatprep.subr.mxu0 0.0
        %v2305 = vand.u32 %v1291, 4294901760
        %2306 = vmatpush1.msra.mxu0 %v2305
        %2307 = vmatprep.subr.mxu0 0.0
        %v2308 = vand.u32 %v1292, 4294901760
        %2309 = vmatpush1.msra.mxu0 %v2308
        %2310 = vmatprep.subr.mxu0 0.0
        %v2311 = vand.u32 %v1293, 4294901760
        %2312 = vmatpush1.msra.mxu0 %v2311
        %2313 = vmatprep.subr.mxu0 0.0
        %v2314 = vand.u32 %v1294, 4294901760
        %2315 = vmatpush1.msra.mxu0 %v2314
        %2316 = vmatprep.subr.mxu0 0.0
        %v2317 = vand.u32 %v1295, 4294901760
        %2318 = vmatpush1.msra.mxu0 %v2317
        %2319 = vmatprep.subr.mxu0 0.0
        %v2320 = vand.u32 %v1296, 4294901760
        %2321 = vmatpush1.msra.mxu0 %v2320
        %2322 = vmatprep.subr.mxu0 0.0
        %v2323 = vand.u32 %v1297, 4294901760
        %2324 = vmatpush1.msra.mxu0 %v2323
        %2325 = vmatprep.subr.mxu0 0.0
        %v2326 = vand.u32 %v1298, 4294901760
        %2327 = vmatpush1.msra.mxu0 %v2326
        %2328 = vmatprep.subr.mxu0 0.0
        %v2329 = vand.u32 %v1299, 4294901760
        %2330 = vmatpush1.msra.mxu0 %v2329
        %2331 = vmatprep.subr.mxu0 0.0
        %v2332 = vand.u32 %v1300, 4294901760
        %2333 = vmatpush1.msra.mxu0 %v2332
        %2334 = vmatprep.subr.mxu0 0.0
        %v2335 = vand.u32 %v1301, 4294901760
        %2336 = vmatpush1.msra.mxu0 %v2335
        %2337 = vmatprep.subr.mxu0 0.0
        %2338 = vmatpush1.msra.mxu0 0.0
        %2339 = vmatprep.subr.mxu0 0.0
        %2340 = vmatpush1.msra.mxu0 0.0
        %2341 = vmatprep.subr.mxu0 0.0
        %2342 = vmatpush1.msra.mxu0 0.0
        %2343 = vmatprep.subr.mxu0 0.0
        %2344 = vmatpush1.msra.mxu0 0.0
        %2345 = vmatprep.subr.mxu0 0.0
        %2346 = vmatpush1.msra.mxu0 0.0
        %2347 = vmatprep.subr.mxu0 0.0
        %2348 = vmatpush1.msra.mxu0 0.0
        %2349 = vmatprep.subr.mxu0 0.0
        %2350 = vmatpush1.msra.mxu0 0.0
        %2351 = vmatprep.subr.mxu0 0.0
        %2352 = vmatpush1.msra.mxu0 0.0
        %2353 = vmatprep.subr.mxu0 0.0
        %2354 = vmatpush1.msra.mxu0 0.0
        %2355 = vmatprep.subr.mxu0 0.0
        %2356 = vmatpush1.msra.mxu0 0.0
        %2357 = vmatprep.subr.mxu0 0.0
        %2358 = vmatpush1.msra.mxu0 0.0
        %2359 = vmatprep.subr.mxu0 0.0
        %2360 = vmatpush1.msra.mxu0 0.0
        %2361 = vmatprep.subr.mxu0 0.0
        %2362 = vmatpush1.msra.mxu0 0.0
        %2363 = vmatprep.subr.mxu0 0.0
        %2364 = vmatpush1.msra.mxu0 0.0
        %2365 = vmatprep.subr.mxu0 0.0
        %2366 = vmatpush1.msra.mxu0 0.0
        %2367 = vmatprep.subr.mxu0 0.0
        %2368 = vmatpush1.msra.mxu0 0.0
        %2369 = vmatprep.mubr.f32.mxu0 0.0
        %v2370 = vand.u32 %v820, 4294901760
        %v2371 = vsub.f32 %v820, %v2370
        %v2372 = vand.u32 %v2371, 4294901760
        %2373 = vmatmul.mubr.f32.gmra.mrb[0].mxu0 %v2372
        %v2374 = vpop.f32.mrb[0].mxu0
        %v2375 = vadd.f32 %v2286, %v2374
        %v2376 = vpop.f32.mrb[0].mxu0
        %2377 = vdwg.mxu0
        %2378 = vmatprep.subr.mxu0 0.0
        %v2379 = vand.u32 %v1286, 4294901760
        %v2380 = vsub.f32 %v1286, %v2379
        %v2381 = vand.u32 %v2380, 4294901760
        %2382 = vmatpush1.msra.mxu0 %v2381
        %2383 = vmatprep.subr.mxu0 0.0
        %v2384 = vand.u32 %v1287, 4294901760
        %v2385 = vsub.f32 %v1287, %v2384
        %v2386 = vand.u32 %v2385, 4294901760
        %2387 = vmatpush1.msra.mxu0 %v2386
        %2388 = vmatprep.subr.mxu0 0.0
        %v2389 = vand.u32 %v1288, 4294901760
        %v2390 = vsub.f32 %v1288, %v2389
        %v2391 = vand.u32 %v2390, 4294901760
        %2392 = vmatpush1.msra.mxu0 %v2391
        %2393 = vmatprep.subr.mxu0 0.0
        %v2394 = vand.u32 %v1289, 4294901760
        %v2395 = vsub.f32 %v1289, %v2394
        %v2396 = vand.u32 %v2395, 4294901760
        %2397 = vmatpush1.msra.mxu0 %v2396
        %2398 = vmatprep.subr.mxu0 0.0
        %v2399 = vand.u32 %v1290, 4294901760
        %v2400 = vsub.f32 %v1290, %v2399
        %v2401 = vand.u32 %v2400, 4294901760
        %2402 = vmatpush1.msra.mxu0 %v2401
        %2403 = vmatprep.subr.mxu0 0.0
        %v2404 = vand.u32 %v1291, 4294901760
        %v2405 = vsub.f32 %v1291, %v2404
        %v2406 = vand.u32 %v2405, 4294901760
        %2407 = vmatpush1.msra.mxu0 %v2406
        %2408 = vmatprep.subr.mxu0 0.0
        %v2409 = vand.u32 %v1292, 4294901760
        %v2410 = vsub.f32 %v1292, %v2409
        %v2411 = vand.u32 %v2410, 4294901760
        %2412 = vmatpush1.msra.mxu0 %v2411
        %2413 = vmatprep.subr.mxu0 0.0
        %v2414 = vand.u32 %v1293, 4294901760
        %v2415 = vsub.f32 %v1293, %v2414
        %v2416 = vand.u32 %v2415, 4294901760
        %2417 = vmatpush1.msra.mxu0 %v2416
        %2418 = vmatprep.subr.mxu0 0.0
        %v2419 = vand.u32 %v1294, 4294901760
        %v2420 = vsub.f32 %v1294, %v2419
        %v2421 = vand.u32 %v2420, 4294901760
        %2422 = vmatpush1.msra.mxu0 %v2421
        %2423 = vmatprep.subr.mxu0 0.0
        %v2424 = vand.u32 %v1295, 4294901760
        %v2425 = vsub.f32 %v1295, %v2424
        %v2426 = vand.u32 %v2425, 4294901760
        %2427 = vmatpush1.msra.mxu0 %v2426
        %2428 = vmatprep.subr.mxu0 0.0
        %v2429 = vand.u32 %v1296, 4294901760
        %v2430 = vsub.f32 %v1296, %v2429
        %v2431 = vand.u32 %v2430, 4294901760
        %2432 = vmatpush1.msra.mxu0 %v2431
        %2433 = vmatprep.subr.mxu0 0.0
        %v2434 = vand.u32 %v1297, 4294901760
        %v2435 = vsub.f32 %v1297, %v2434
        %v2436 = vand.u32 %v2435, 4294901760
        %2437 = vmatpush1.msra.mxu0 %v2436
        %2438 = vmatprep.subr.mxu0 0.0
        %v2439 = vand.u32 %v1298, 4294901760
        %v2440 = vsub.f32 %v1298, %v2439
        %v2441 = vand.u32 %v2440, 4294901760
        %2442 = vmatpush1.msra.mxu0 %v2441
        %2443 = vmatprep.subr.mxu0 0.0
        %v2444 = vand.u32 %v1299, 4294901760
        %v2445 = vsub.f32 %v1299, %v2444
        %v2446 = vand.u32 %v2445, 4294901760
        %2447 = vmatpush1.msra.mxu0 %v2446
        %2448 = vmatprep.subr.mxu0 0.0
        %v2449 = vand.u32 %v1300, 4294901760
        %v2450 = vsub.f32 %v1300, %v2449
        %v2451 = vand.u32 %v2450, 4294901760
        %2452 = vmatpush1.msra.mxu0 %v2451
        %2453 = vmatprep.subr.mxu0 0.0
        %v2454 = vand.u32 %v1301, 4294901760
        %v2455 = vsub.f32 %v1301, %v2454
        %v2456 = vand.u32 %v2455, 4294901760
        %2457 = vmatpush1.msra.mxu0 %v2456
        %2458 = vmatprep.subr.mxu0 0.0
        %2459 = vmatpush1.msra.mxu0 0.0
        %2460 = vmatprep.subr.mxu0 0.0
        %2461 = vmatpush1.msra.mxu0 0.0
        %2462 = vmatprep.subr.mxu0 0.0
        %2463 = vmatpush1.msra.mxu0 0.0
        %2464 = vmatprep.subr.mxu0 0.0
        %2465 = vmatpush1.msra.mxu0 0.0
        %2466 = vmatprep.subr.mxu0 0.0
        %2467 = vmatpush1.msra.mxu0 0.0
        %2468 = vmatprep.subr.mxu0 0.0
        %2469 = vmatpush1.msra.mxu0 0.0
        %2470 = vmatprep.subr.mxu0 0.0
        %2471 = vmatpush1.msra.mxu0 0.0
        %2472 = vmatprep.subr.mxu0 0.0
        %2473 = vmatpush1.msra.mxu0 0.0
        %2474 = vmatprep.subr.mxu0 0.0
        %2475 = vmatpush1.msra.mxu0 0.0
        %2476 = vmatprep.subr.mxu0 0.0
        %2477 = vmatpush1.msra.mxu0 0.0
        %2478 = vmatprep.subr.mxu0 0.0
        %2479 = vmatpush1.msra.mxu0 0.0
        %2480 = vmatprep.subr.mxu0 0.0
        %2481 = vmatpush1.msra.mxu0 0.0
        %2482 = vmatprep.subr.mxu0 0.0
        %2483 = vmatpush1.msra.mxu0 0.0
        %2484 = vmatprep.subr.mxu0 0.0
        %2485 = vmatpush1.msra.mxu0 0.0
        %2486 = vmatprep.subr.mxu0 0.0
        %2487 = vmatpush1.msra.mxu0 0.0
        %2488 = vmatprep.subr.mxu0 0.0
        %2489 = vmatpush1.msra.mxu0 0.0
        %2490 = vmatprep.mubr.f32.mxu0 0.0
        %v2491 = vand.u32 %v820, 4294901760
        %2492 = vmatmul.mubr.f32.gmra.mrb[0].mxu0 %v2491
        %v2493 = vpop.f32.mrb[0].mxu0
        %v2494 = vadd.f32 %v2375, %v2493
        %v2495 = vpop.f32.mrb[0].mxu0
        %2496 = vdwg.mxu0
        %2497 = vmatprep.subr.mxu0 0.0
        %v2498 = vand.u32 %v1286, 4294901760
        %2499 = vmatpush1.msra.mxu0 %v2498
        %2500 = vmatprep.subr.mxu0 0.0
        %v2501 = vand.u32 %v1287, 4294901760
        %2502 = vmatpush1.msra.mxu0 %v2501
        %2503 = vmatprep.subr.mxu0 0.0
        %v2504 = vand.u32 %v1288, 4294901760
        %2505 = vmatpush1.msra.mxu0 %v2504
        %2506 = vmatprep.subr.mxu0 0.0
        %v2507 = vand.u32 %v1289, 4294901760
        %2508 = vmatpush1.msra.mxu0 %v2507
        %2509 = vmatprep.subr.mxu0 0.0
        %v2510 = vand.u32 %v1290, 4294901760
        %2511 = vmatpush1.msra.mxu0 %v2510
        %2512 = vmatprep.subr.mxu0 0.0
        %v2513 = vand.u32 %v1291, 4294901760
        %2514 = vmatpush1.msra.mxu0 %v2513
        %2515 = vmatprep.subr.mxu0 0.0
        %v2516 = vand.u32 %v1292, 4294901760
        %2517 = vmatpush1.msra.mxu0 %v2516
        %2518 = vmatprep.subr.mxu0 0.0
        %v2519 = vand.u32 %v1293, 4294901760
        %2520 = vmatpush1.msra.mxu0 %v2519
        %2521 = vmatprep.subr.mxu0 0.0
        %v2522 = vand.u32 %v1294, 4294901760
        %2523 = vmatpush1.msra.mxu0 %v2522
        %2524 = vmatprep.subr.mxu0 0.0
        %v2525 = vand.u32 %v1295, 4294901760
        %2526 = vmatpush1.msra.mxu0 %v2525
        %2527 = vmatprep.subr.mxu0 0.0
        %v2528 = vand.u32 %v1296, 4294901760
        %2529 = vmatpush1.msra.mxu0 %v2528
        %2530 = vmatprep.subr.mxu0 0.0
        %v2531 = vand.u32 %v1297, 4294901760
        %2532 = vmatpush1.msra.mxu0 %v2531
        %2533 = vmatprep.subr.mxu0 0.0
        %v2534 = vand.u32 %v1298, 4294901760
        %2535 = vmatpush1.msra.mxu0 %v2534
        %2536 = vmatprep.subr.mxu0 0.0
        %v2537 = vand.u32 %v1299, 4294901760
        %2538 = vmatpush1.msra.mxu0 %v2537
        %2539 = vmatprep.subr.mxu0 0.0
        %v2540 = vand.u32 %v1300, 4294901760
        %2541 = vmatpush1.msra.mxu0 %v2540
        %2542 = vmatprep.subr.mxu0 0.0
        %v2543 = vand.u32 %v1301, 4294901760
        %2544 = vmatpush1.msra.mxu0 %v2543
        %2545 = vmatprep.subr.mxu0 0.0
        %2546 = vmatpush1.msra.mxu0 0.0
        %2547 = vmatprep.subr.mxu0 0.0
        %2548 = vmatpush1.msra.mxu0 0.0
        %2549 = vmatprep.subr.mxu0 0.0
        %2550 = vmatpush1.msra.mxu0 0.0
        %2551 = vmatprep.subr.mxu0 0.0
        %2552 = vmatpush1.msra.mxu0 0.0
        %2553 = vmatprep.subr.mxu0 0.0
        %2554 = vmatpush1.msra.mxu0 0.0
        %2555 = vmatprep.subr.mxu0 0.0
        %2556 = vmatpush1.msra.mxu0 0.0
        %2557 = vmatprep.subr.mxu0 0.0
        %2558 = vmatpush1.msra.mxu0 0.0
        %2559 = vmatprep.subr.mxu0 0.0
        %2560 = vmatpush1.msra.mxu0 0.0
        %2561 = vmatprep.subr.mxu0 0.0
        %2562 = vmatpush1.msra.mxu0 0.0
        %2563 = vmatprep.subr.mxu0 0.0
        %2564 = vmatpush1.msra.mxu0 0.0
        %2565 = vmatprep.subr.mxu0 0.0
        %2566 = vmatpush1.msra.mxu0 0.0
        %2567 = vmatprep.subr.mxu0 0.0
        %2568 = vmatpush1.msra.mxu0 0.0
        %2569 = vmatprep.subr.mxu0 0.0
        %2570 = vmatpush1.msra.mxu0 0.0
        %2571 = vmatprep.subr.mxu0 0.0
        %2572 = vmatpush1.msra.mxu0 0.0
        %2573 = vmatprep.subr.mxu0 0.0
        %2574 = vmatpush1.msra.mxu0 0.0
        %2575 = vmatprep.subr.mxu0 0.0
        %2576 = vmatpush1.msra.mxu0 0.0
        %2577 = vmatprep.mubr.f32.mxu0 0.0
        %v2578 = vand.u32 %v820, 4294901760
        %2579 = vmatmul.mubr.f32.gmra.mrb[0].mxu0 %v2578
        %v2580 = vpop.f32.mrb[0].mxu0
        %v2581 = vadd.f32 %v2494, %v2580
        %v2582 = vpop.f32.mrb[0].mxu0
        %2583 = vdwg.mxu0
        %2584 = vxpose.xlu0.b32.start [1/16] %v1940, 128
        %2585 = vxpose.xlu0.b32.cont [2/16] 0.0, 128
        %2586 = vxpose.xlu0.b32.cont [3/16] 0.0, 128
        %2587 = vxpose.xlu0.b32.cont [4/16] 0.0, 128
        %2588 = vxpose.xlu0.b32.cont [5/16] 0.0, 128
        %2589 = vxpose.xlu0.b32.cont [6/16] 0.0, 128
        %2590 = vxpose.xlu0.b32.cont [7/16] 0.0, 128
        %2591 = vxpose.xlu0.b32.cont [8/16] 0.0, 128
        %2592 = vxpose.xlu0.b32.cont [9/16] 0.0, 128
        %2593 = vxpose.xlu0.b32.cont [10/16] 0.0, 128
        %2594 = vxpose.xlu0.b32.cont [11/16] 0.0, 128
        %2595 = vxpose.xlu0.b32.cont [12/16] 0.0, 128
        %2596 = vxpose.xlu0.b32.cont [13/16] 0.0, 128
        %2597 = vxpose.xlu0.b32.cont [14/16] 0.0, 128
        %2598 = vxpose.xlu0.b32.cont [15/16] 0.0, 128
        %2599 = vxpose.xlu0.b32.end [16/16] 0.0, 128
        %v2600 = vpop.trf.xlu0
        %v2601 = vpop.trf.xlu0
        %v2602 = vpop.trf.xlu0
        %v2603 = vpop.trf.xlu0
        %v2604 = vpop.trf.xlu0
        %v2605 = vpop.trf.xlu0
        %v2606 = vpop.trf.xlu0
        %v2607 = vpop.trf.xlu0
        %v2608 = vpop.trf.xlu0
        %v2609 = vpop.trf.xlu0
        %v2610 = vpop.trf.xlu0
        %v2611 = vpop.trf.xlu0
        %v2612 = vpop.trf.xlu0
        %v2613 = vpop.trf.xlu0
        %v2614 = vpop.trf.xlu0
        %v2615 = vpop.trf.xlu0
        %v2616 = vlaneseq
        %v2617 = vshrl.u32 %v2616, 7
        %v2618 = vsub.s32 0, %v2617
        %v2619 = vrot.slane %v2600, %v2618
        %2621 = vbcast.lane.b32.xlu0 %v2619, 256
        %v2622 = vpop.permute.xlu0 %2621
        %v2623 = vlaneseq
        %v2624 = vshrl.u32 %v2623, 7
        %v2625 = vsub.s32 1, %v2624
        %v2626 = vrot.slane %v2600, %v2625
        %2628 = vbcast.lane.b32.xlu0 %v2626, 256
        %v2629 = vpop.permute.xlu0 %2628
        %v2630 = vlaneseq
        %v2631 = vshrl.u32 %v2630, 7
        %v2632 = vsub.s32 2, %v2631
        %v2633 = vrot.slane %v2600, %v2632
        %2635 = vbcast.lane.b32.xlu0 %v2633, 256
        %v2636 = vpop.permute.xlu0 %2635
        %v2637 = vlaneseq
        %v2638 = vshrl.u32 %v2637, 7
        %v2639 = vsub.s32 3, %v2638
        %v2640 = vrot.slane %v2600, %v2639
        %2642 = vbcast.lane.b32.xlu0 %v2640, 256
        %v2643 = vpop.permute.xlu0 %2642
        %2645 = vrot.lane.b32.xlu0 %v2581, 124
        %v2646 = vpop.permute.xlu0 %2645
        %2648 = vxpose.xlu0.b32.start [1/16] %v2646, 128
        %2649 = vxpose.xlu0.b32.cont [2/16] 0.0, 128
        %2650 = vxpose.xlu0.b32.cont [3/16] 0.0, 128
        %2651 = vxpose.xlu0.b32.cont [4/16] 0.0, 128
        %2652 = vxpose.xlu0.b32.cont [5/16] 0.0, 128
        %2653 = vxpose.xlu0.b32.cont [6/16] 0.0, 128
        %2654 = vxpose.xlu0.b32.cont [7/16] 0.0, 128
        %2655 = vxpose.xlu0.b32.cont [8/16] 0.0, 128
        %2656 = vxpose.xlu0.b32.cont [9/16] 0.0, 128
        %2657 = vxpose.xlu0.b32.cont [10/16] 0.0, 128
        %2658 = vxpose.xlu0.b32.cont [11/16] 0.0, 128
        %2659 = vxpose.xlu0.b32.cont [12/16] 0.0, 128
        %2660 = vxpose.xlu0.b32.cont [13/16] 0.0, 128
        %2661 = vxpose.xlu0.b32.cont [14/16] 0.0, 128
        %2662 = vxpose.xlu0.b32.cont [15/16] 0.0, 128
        %2663 = vxpose.xlu0.b32.end [16/16] 0.0, 128
        %v2664 = vpop.trf.xlu0
        %v2665 = vpop.trf.xlu0
        %v2666 = vpop.trf.xlu0
        %v2667 = vpop.trf.xlu0
        %v2668 = vpop.trf.xlu0
        %v2669 = vpop.trf.xlu0
        %v2670 = vpop.trf.xlu0
        %v2671 = vpop.trf.xlu0
        %v2672 = vpop.trf.xlu0
        %v2673 = vpop.trf.xlu0
        %v2674 = vpop.trf.xlu0
        %v2675 = vpop.trf.xlu0
        %v2676 = vpop.trf.xlu0
        %v2677 = vpop.trf.xlu0
        %v2678 = vpop.trf.xlu0
        %v2679 = vpop.trf.xlu0
        %v2682 = vunpack.c.l.s4 1966171168
        %v2683 = vunpack.c.0.s8 %v2682
        %v2684 = vlaneseq
        %v2685 = vshrl.u32 %v2684, 7
        %v2686 = vsub.s32 %v2683, %v2685
        %v2687 = vrot.slane %v2664, %v2686
        %v2688 = vcombine.high %v2687, %v2687
        %v2690 = vunpack.c.l.s4 1966171168
        %v2691 = vunpack.c.0.s8 %v2690
        %v2692 = vlaneseq
        %v2693 = vshrl.u32 %v2692, 7
        %v2694 = vsub.s32 %v2691, %v2693
        %v2695 = vrot.slane %v2687, %v2694
        %v2697 = vunpack.c.l.s4 1966171168
        %v2698 = vunpack.c.0.s8 %v2697
        %v2699 = vlaneseq
        %v2700 = vshrl.u32 %v2699, 7
        %v2701 = vsub.s32 %v2698, %v2700
        %v2702 = vrot.slane %v2688, %v2701
        %v2703 = vcombine.high %v2695, %v2695
        %v2704 = vcombine.high %v2702, %v2702
        %v2705 = vlaneseq
        %v2706 = vshrl.u32 %v2705, 7
        %v2707 = vsub.s32 0, %v2706
        %v2708 = vrot.slane %v2695, %v2707
        %v2709 = vlaneseq
        %v2710 = vshrl.u32 %v2709, 7
        %v2711 = vsub.s32 0, %v2710
        %v2712 = vrot.slane %v2702, %v2711
        %v2713 = vlaneseq
        %v2714 = vshrl.u32 %v2713, 7
        %v2715 = vsub.s32 0, %v2714
        %v2716 = vrot.slane %v2703, %v2715
        %v2717 = vlaneseq
        %v2718 = vshrl.u32 %v2717, 7
        %v2719 = vsub.s32 0, %v2718
        %v2720 = vrot.slane %v2704, %v2719
        %v2725 = vadd.f32 %v2622, %v2708
        %v2726 = vadd.f32 %v2629, %v2712
        %v2727 = vadd.f32 %v2636, %v2716
        %v2728 = vadd.f32 %v2643, %v2720
        %v2729 = vmul.f32 %v2725, 0.2
        %v2730 = vmul.f32 %v2726, 0.2
        %v2731 = vmul.f32 %v2727, 0.2
        %v2732 = vmul.f32 %v2728, 0.2
        %v2733 = vmax.f32 %v2725, %v2729
        %v2734 = vmax.f32 %v2726, %v2730
        %v2735 = vmax.f32 %v2727, %v2731
        %v2736 = vmax.f32 %v2728, %v2732
        %v2737 = vld [vmem:[%s356] sm:$0xff]
        %vm2738 = vcmp.ne.f32.partialorder %v2737, 0.0
        %v2739 = vsel %vm2738, 0.0, -1e+12
        %v2740 = vadd.f32 %v2733, %v2739
        %v2741 = vadd.f32 %v2734, %v2739
        %v2742 = vadd.f32 %v2735, %v2739
        %v2743 = vadd.f32 %v2736, %v2739
        %vm2744 = vcmask 64512
        %v2745 = vsel %vm2744, %v2740, -inf
        %2746 = vmax.xlane.f32.xlu0 %v2745
        %v2747 = vpop.xlane.xlu0 %2746
        %v2748 = vsel %vm2744, %v2741, -inf
        %2749 = vmax.xlane.f32.xlu0 %v2748
        %v2750 = vpop.xlane.xlu0 %2749
        %v2751 = vsel %vm2744, %v2742, -inf
        %2752 = vmax.xlane.f32.xlu0 %v2751
        %v2753 = vpop.xlane.xlu0 %2752
        %v2754 = vsel %vm2744, %v2743, -inf
        %2755 = vmax.xlane.f32.xlu0 %v2754
        %v2756 = vpop.xlane.xlu0 %2755
        %v2757 = vsub.f32 %v2740, %v2747
        %v2758 = vsub.f32 %v2741, %v2750
        %v2759 = vsub.f32 %v2742, %v2753
        %v2760 = vsub.f32 %v2743, %v2756
        %v2761 = vmul.f32 %v2757, 1.442695
        %v2762 = vpow.pop %v2761
        %v2763 = vmul.f32 %v2758, 1.442695
        %v2764 = vpow.pop %v2763
        %v2765 = vmul.f32 %v2759, 1.442695
        %v2766 = vpow.pop %v2765
        %v2767 = vmul.f32 %v2760, 1.442695
        %v2768 = vpow.pop %v2767
        %v2769 = vsel %vm2744, %v2762, 0.0
        %2770 = vadd.xlane.f32.xlu0 %v2769
        %v2771 = vpop.xlane.xlu0 %2770
        %v2772 = vsel %vm2744, %v2764, 0.0
        %2773 = vadd.xlane.f32.xlu0 %v2772
        %v2774 = vpop.xlane.xlu0 %2773
        %v2775 = vsel %vm2744, %v2766, 0.0
        %2776 = vadd.xlane.f32.xlu0 %v2775
        %v2777 = vpop.xlane.xlu0 %2776
        %v2778 = vsel %vm2744, %v2768, 0.0
        %2779 = vadd.xlane.f32.xlu0 %v2778
        %v2780 = vpop.xlane.xlu0 %2779
        %v2781 = vrcp.pop %v2771
        %v2782 = vmul.f32 1.0, %v2781
        %v2783 = vrcp.pop %v2774
        %v2784 = vmul.f32 1.0, %v2783
        %v2785 = vrcp.pop %v2777
        %v2786 = vmul.f32 1.0, %v2785
        %v2787 = vrcp.pop %v2780
        %v2788 = vmul.f32 1.0, %v2787
        %v2789 = vmul.f32 %v2762, %v2782
        %v2790 = vmul.f32 %v2764, %v2784
        %v2791 = vmul.f32 %v2766, %v2786
        %v2792 = vmul.f32 %v2768, %v2788
        %2793 = vst.msk [vmem:[%s338] sm:$0xff] %vm2744, %v2789
        %2794 = vst.msk [vmem:[%s338 + $0x8] sm:$0xff] %vm2744, %v2790
        %2795 = vst.msk [vmem:[%s338 + $0x10] sm:$0xff] %vm2744, %v2791
        %2796 = vst.msk [vmem:[%s338 + $0x18] sm:$0xff] %vm2744, %v2792
        %v2798 = vsel %vm2744, %v2789, 0
        %2800 = vmatprep.subr.mxu0 0.0
        %v2801 = vand.u32 %v820, 4294901760
        %2802 = vmatpush1.msra.mxu0 %v2801
        %2803 = vmatprep.subr.mxu0 0.0
        %2804 = vmatpush1.msra.mxu0 0.0
        %2805 = vmatprep.subr.mxu0 0.0
        %2806 = vmatpush1.msra.mxu0 0.0
        %2807 = vmatprep.subr.mxu0 0.0
        %2808 = vmatpush1.msra.mxu0 0.0
        %2809 = vmatprep.subr.mxu0 0.0
        %2810 = vmatpush1.msra.mxu0 0.0
        %2811 = vmatprep.subr.mxu0 0.0
        %2812 = vmatpush1.msra.mxu0 0.0
        %2813 = vmatprep.subr.mxu0 0.0
        %2814 = vmatpush1.msra.mxu0 0.0
        %2815 = vmatprep.subr.mxu0 0.0
        %2816 = vmatpush1.msra.mxu0 0.0
        %2817 = vmatprep.subr.mxu0 0.0
        %2818 = vmatpush1.msra.mxu0 0.0
        %2819 = vmatprep.subr.mxu0 0.0
        %2820 = vmatpush1.msra.mxu0 0.0
        %2821 = vmatprep.subr.mxu0 0.0
        %2822 = vmatpush1.msra.mxu0 0.0
        %2823 = vmatprep.subr.mxu0 0.0
        %2824 = vmatpush1.msra.mxu0 0.0
        %2825 = vmatprep.subr.mxu0 0.0
        %2826 = vmatpush1.msra.mxu0 0.0
        %2827 = vmatprep.subr.mxu0 0.0
        %2828 = vmatpush1.msra.mxu0 0.0
        %2829 = vmatprep.subr.mxu0 0.0
        %2830 = vmatpush1.msra.mxu0 0.0
        %2831 = vmatprep.subr.mxu0 0.0
        %2832 = vmatpush1.msra.mxu0 0.0
        %2833 = vmatprep.subr.mxu0 0.0
        %2834 = vmatpush1.msra.mxu0 0.0
        %2835 = vmatprep.subr.mxu0 0.0
        %2836 = vmatpush1.msra.mxu0 0.0
        %2837 = vmatprep.subr.mxu0 0.0
        %2838 = vmatpush1.msra.mxu0 0.0
        %2839 = vmatprep.subr.mxu0 0.0
        %2840 = vmatpush1.msra.mxu0 0.0
        %2841 = vmatprep.subr.mxu0 0.0
        %2842 = vmatpush1.msra.mxu0 0.0
        %2843 = vmatprep.subr.mxu0 0.0
        %2844 = vmatpush1.msra.mxu0 0.0
        %2845 = vmatprep.subr.mxu0 0.0
        %2846 = vmatpush1.msra.mxu0 0.0
        %2847 = vmatprep.subr.mxu0 0.0
        %2848 = vmatpush1.msra.mxu0 0.0
        %2849 = vmatprep.subr.mxu0 0.0
        %2850 = vmatpush1.msra.mxu0 0.0
        %2851 = vmatprep.subr.mxu0 0.0
        %2852 = vmatpush1.msra.mxu0 0.0
        %2853 = vmatprep.subr.mxu0 0.0
        %2854 = vmatpush1.msra.mxu0 0.0
        %2855 = vmatprep.subr.mxu0 0.0
        %2856 = vmatpush1.msra.mxu0 0.0
        %2857 = vmatprep.subr.mxu0 0.0
        %2858 = vmatpush1.msra.mxu0 0.0
        %2859 = vmatprep.subr.mxu0 0.0
        %2860 = vmatpush1.msra.mxu0 0.0
        %2861 = vmatprep.subr.mxu0 0.0
        %2862 = vmatpush1.msra.mxu0 0.0
        %2863 = vmatprep.subr.mxu0 0.0
        %2864 = vmatpush1.msra.mxu0 0.0
        %2865 = vmatprep.mubr.f32.mxu0 0.0
        %v2866 = vand.u32 %v2798, 4294901760
        %v2867 = vsub.f32 %v2798, %v2866
        %v2868 = vand.u32 %v2867, 4294901760
        %v2869 = vsub.f32 %v2867, %v2868
        %v2870 = vand.u32 %v2869, 4294901760
        %2871 = vmatmul.mubr.f32.gmra.mrb[0].mxu0 %v2870
        %v2872 = vpop.f32.mrb[0].mxu0
        %v2873 = vadd.f32 0.0, %v2872
        %v2874 = vpop.f32.mrb[0].mxu0
        %2875 = vdwg.mxu0
        %2876 = vmatprep.subr.mxu0 0.0
        %v2877 = vand.u32 %v820, 4294901760
        %v2878 = vsub.f32 %v820, %v2877
        %v2879 = vand.u32 %v2878, 4294901760
        %v2880 = vsub.f32 %v2878, %v2879
        %v2881 = vand.u32 %v2880, 4294901760
        %2882 = vmatpush1.msra.mxu0 %v2881
        %2883 = vmatprep.subr.mxu0 0.0
        %2884 = vmatpush1.msra.mxu0 0.0
        %2885 = vmatprep.subr.mxu0 0.0
        %2886 = vmatpush1.msra.mxu0 0.0
        %2887 = vmatprep.subr.mxu0 0.0
        %2888 = vmatpush1.msra.mxu0 0.0
        %2889 = vmatprep.subr.mxu0 0.0
        %2890 = vmatpush1.msra.mxu0 0.0
        %2891 = vmatprep.subr.mxu0 0.0
        %2892 = vmatpush1.msra.mxu0 0.0
        %2893 = vmatprep.subr.mxu0 0.0
        %2894 = vmatpush1.msra.mxu0 0.0
        %2895 = vmatprep.subr.mxu0 0.0
        %2896 = vmatpush1.msra.mxu0 0.0
        %2897 = vmatprep.subr.mxu0 0.0
        %2898 = vmatpush1.msra.mxu0 0.0
        %2899 = vmatprep.subr.mxu0 0.0
        %2900 = vmatpush1.msra.mxu0 0.0
        %2901 = vmatprep.subr.mxu0 0.0
        %2902 = vmatpush1.msra.mxu0 0.0
        %2903 = vmatprep.subr.mxu0 0.0
        %2904 = vmatpush1.msra.mxu0 0.0
        %2905 = vmatprep.subr.mxu0 0.0
        %2906 = vmatpush1.msra.mxu0 0.0
        %2907 = vmatprep.subr.mxu0 0.0
        %2908 = vmatpush1.msra.mxu0 0.0
        %2909 = vmatprep.subr.mxu0 0.0
        %2910 = vmatpush1.msra.mxu0 0.0
        %2911 = vmatprep.subr.mxu0 0.0
        %2912 = vmatpush1.msra.mxu0 0.0
        %2913 = vmatprep.subr.mxu0 0.0
        %2914 = vmatpush1.msra.mxu0 0.0
        %2915 = vmatprep.subr.mxu0 0.0
        %2916 = vmatpush1.msra.mxu0 0.0
        %2917 = vmatprep.subr.mxu0 0.0
        %2918 = vmatpush1.msra.mxu0 0.0
        %2919 = vmatprep.subr.mxu0 0.0
        %2920 = vmatpush1.msra.mxu0 0.0
        %2921 = vmatprep.subr.mxu0 0.0
        %2922 = vmatpush1.msra.mxu0 0.0
        %2923 = vmatprep.subr.mxu0 0.0
        %2924 = vmatpush1.msra.mxu0 0.0
        %2925 = vmatprep.subr.mxu0 0.0
        %2926 = vmatpush1.msra.mxu0 0.0
        %2927 = vmatprep.subr.mxu0 0.0
        %2928 = vmatpush1.msra.mxu0 0.0
        %2929 = vmatprep.subr.mxu0 0.0
        %2930 = vmatpush1.msra.mxu0 0.0
        %2931 = vmatprep.subr.mxu0 0.0
        %2932 = vmatpush1.msra.mxu0 0.0
        %2933 = vmatprep.subr.mxu0 0.0
        %2934 = vmatpush1.msra.mxu0 0.0
        %2935 = vmatprep.subr.mxu0 0.0
        %2936 = vmatpush1.msra.mxu0 0.0
        %2937 = vmatprep.subr.mxu0 0.0
        %2938 = vmatpush1.msra.mxu0 0.0
        %2939 = vmatprep.subr.mxu0 0.0
        %2940 = vmatpush1.msra.mxu0 0.0
        %2941 = vmatprep.subr.mxu0 0.0
        %2942 = vmatpush1.msra.mxu0 0.0
        %2943 = vmatprep.subr.mxu0 0.0
        %2944 = vmatpush1.msra.mxu0 0.0
        %2945 = vmatprep.mubr.f32.mxu0 0.0
        %v2946 = vand.u32 %v2798, 4294901760
        %2947 = vmatmul.mubr.f32.gmra.mrb[0].mxu0 %v2946
        %v2948 = vpop.f32.mrb[0].mxu0
        %v2949 = vadd.f32 %v2873, %v2948
        %v2950 = vpop.f32.mrb[0].mxu0
        %2951 = vdwg.mxu0
        %2952 = vmatprep.subr.mxu0 0.0
        %v2953 = vand.u32 %v820, 4294901760
        %v2954 = vsub.f32 %v820, %v2953
        %2955 = vmatpush1.msra.mxu0 %v2954
        %2956 = vmatprep.subr.mxu0 0.0
        %2957 = vmatpush1.msra.mxu0 0.0
        %2958 = vmatprep.subr.mxu0 0.0
        %2959 = vmatpush1.msra.mxu0 0.0
        %2960 = vmatprep.subr.mxu0 0.0
        %2961 = vmatpush1.msra.mxu0 0.0
        %2962 = vmatprep.subr.mxu0 0.0
        %2963 = vmatpush1.msra.mxu0 0.0
        %2964 = vmatprep.subr.mxu0 0.0
        %2965 = vmatpush1.msra.mxu0 0.0
        %2966 = vmatprep.subr.mxu0 0.0
        %2967 = vmatpush1.msra.mxu0 0.0
        %2968 = vmatprep.subr.mxu0 0.0
        %2969 = vmatpush1.msra.mxu0 0.0
        %2970 = vmatprep.subr.mxu0 0.0
        %2971 = vmatpush1.msra.mxu0 0.0
        %2972 = vmatprep.subr.mxu0 0.0
        %2973 = vmatpush1.msra.mxu0 0.0
        %2974 = vmatprep.subr.mxu0 0.0
        %2975 = vmatpush1.msra.mxu0 0.0
        %2976 = vmatprep.subr.mxu0 0.0
        %2977 = vmatpush1.msra.mxu0 0.0
        %2978 = vmatprep.subr.mxu0 0.0
        %2979 = vmatpush1.msra.mxu0 0.0
        %2980 = vmatprep.subr.mxu0 0.0
        %2981 = vmatpush1.msra.mxu0 0.0
        %2982 = vmatprep.subr.mxu0 0.0
        %2983 = vmatpush1.msra.mxu0 0.0
        %2984 = vmatprep.subr.mxu0 0.0
        %2985 = vmatpush1.msra.mxu0 0.0
        %2986 = vmatprep.subr.mxu0 0.0
        %2987 = vmatpush1.msra.mxu0 0.0
        %2988 = vmatprep.subr.mxu0 0.0
        %2989 = vmatpush1.msra.mxu0 0.0
        %2990 = vmatprep.subr.mxu0 0.0
        %2991 = vmatpush1.msra.mxu0 0.0
        %2992 = vmatprep.subr.mxu0 0.0
        %2993 = vmatpush1.msra.mxu0 0.0
        %2994 = vmatprep.subr.mxu0 0.0
        %2995 = vmatpush1.msra.mxu0 0.0
        %2996 = vmatprep.subr.mxu0 0.0
        %2997 = vmatpush1.msra.mxu0 0.0
        %2998 = vmatprep.subr.mxu0 0.0
        %2999 = vmatpush1.msra.mxu0 0.0
        %3000 = vmatprep.subr.mxu0 0.0
        %3001 = vmatpush1.msra.mxu0 0.0
        %3002 = vmatprep.subr.mxu0 0.0
        %3003 = vmatpush1.msra.mxu0 0.0
        %3004 = vmatprep.subr.mxu0 0.0
        %3005 = vmatpush1.msra.mxu0 0.0
        %3006 = vmatprep.subr.mxu0 0.0
        %3007 = vmatpush1.msra.mxu0 0.0
        %3008 = vmatprep.subr.mxu0 0.0
        %3009 = vmatpush1.msra.mxu0 0.0
        %3010 = vmatprep.subr.mxu0 0.0
        %3011 = vmatpush1.msra.mxu0 0.0
        %3012 = vmatprep.subr.mxu0 0.0
        %3013 = vmatpush1.msra.mxu0 0.0
        %3014 = vmatprep.subr.mxu0 0.0
        %3015 = vmatpush1.msra.mxu0 0.0
        %3016 = vmatprep.subr.mxu0 0.0
        %3017 = vmatpush1.msra.mxu0 0.0
        %3018 = vmatprep.mubr.f32.mxu0 0.0
        %v3019 = vand.u32 %v2798, 4294901760
        %v3020 = vsub.f32 %v2798, %v3019
        %3021 = vmatmul.mubr.f32.gmra.mrb[0].mxu0 %v3020
        %v3022 = vpop.f32.mrb[0].mxu0
        %v3023 = vadd.f32 %v2949, %v3022
        %v3024 = vpop.f32.mrb[0].mxu0
        %3025 = vdwg.mxu0
        %3026 = vmatprep.subr.mxu0 0.0
        %v3027 = vand.u32 %v820, 4294901760
        %3028 = vmatpush1.msra.mxu0 %v3027
        %3029 = vmatprep.subr.mxu0 0.0
        %3030 = vmatpush1.msra.mxu0 0.0
        %3031 = vmatprep.subr.mxu0 0.0
        %3032 = vmatpush1.msra.mxu0 0.0
        %3033 = vmatprep.subr.mxu0 0.0
        %3034 = vmatpush1.msra.mxu0 0.0
        %3035 = vmatprep.subr.mxu0 0.0
        %3036 = vmatpush1.msra.mxu0 0.0
        %3037 = vmatprep.subr.mxu0 0.0
        %3038 = vmatpush1.msra.mxu0 0.0
        %3039 = vmatprep.subr.mxu0 0.0
        %3040 = vmatpush1.msra.mxu0 0.0
        %3041 = vmatprep.subr.mxu0 0.0
        %3042 = vmatpush1.msra.mxu0 0.0
        %3043 = vmatprep.subr.mxu0 0.0
        %3044 = vmatpush1.msra.mxu0 0.0
        %3045 = vmatprep.subr.mxu0 0.0
        %3046 = vmatpush1.msra.mxu0 0.0
        %3047 = vmatprep.subr.mxu0 0.0
        %3048 = vmatpush1.msra.mxu0 0.0
        %3049 = vmatprep.subr.mxu0 0.0
        %3050 = vmatpush1.msra.mxu0 0.0
        %3051 = vmatprep.subr.mxu0 0.0
        %3052 = vmatpush1.msra.mxu0 0.0
        %3053 = vmatprep.subr.mxu0 0.0
        %3054 = vmatpush1.msra.mxu0 0.0
        %3055 = vmatprep.subr.mxu0 0.0
        %3056 = vmatpush1.msra.mxu0 0.0
        %3057 = vmatprep.subr.mxu0 0.0
        %3058 = vmatpush1.msra.mxu0 0.0
        %3059 = vmatprep.subr.mxu0 0.0
        %3060 = vmatpush1.msra.mxu0 0.0
        %3061 = vmatprep.subr.mxu0 0.0
        %3062 = vmatpush1.msra.mxu0 0.0
        %3063 = vmatprep.subr.mxu0 0.0
        %3064 = vmatpush1.msra.mxu0 0.0
        %3065 = vmatprep.subr.mxu0 0.0
        %3066 = vmatpush1.msra.mxu0 0.0
        %3067 = vmatprep.subr.mxu0 0.0
        %3068 = vmatpush1.msra.mxu0 0.0
        %3069 = vmatprep.subr.mxu0 0.0
        %3070 = vmatpush1.msra.mxu0 0.0
        %3071 = vmatprep.subr.mxu0 0.0
        %3072 = vmatpush1.msra.mxu0 0.0
        %3073 = vmatprep.subr.mxu0 0.0
        %3074 = vmatpush1.msra.mxu0 0.0
        %3075 = vmatprep.subr.mxu0 0.0
        %3076 = vmatpush1.msra.mxu0 0.0
        %3077 = vmatprep.subr.mxu0 0.0
        %3078 = vmatpush1.msra.mxu0 0.0
        %3079 = vmatprep.subr.mxu0 0.0
        %3080 = vmatpush1.msra.mxu0 0.0
        %3081 = vmatprep.subr.mxu0 0.0
        %3082 = vmatpush1.msra.mxu0 0.0
        %3083 = vmatprep.subr.mxu0 0.0
        %3084 = vmatpush1.msra.mxu0 0.0
        %3085 = vmatprep.subr.mxu0 0.0
        %3086 = vmatpush1.msra.mxu0 0.0
        %3087 = vmatprep.subr.mxu0 0.0
        %3088 = vmatpush1.msra.mxu0 0.0
        %3089 = vmatprep.subr.mxu0 0.0
        %3090 = vmatpush1.msra.mxu0 0.0
        %3091 = vmatprep.mubr.f32.mxu0 0.0
        %v3092 = vand.u32 %v2798, 4294901760
        %v3093 = vsub.f32 %v2798, %v3092
        %v3094 = vand.u32 %v3093, 4294901760
        %3095 = vmatmul.mubr.f32.gmra.mrb[0].mxu0 %v3094
        %v3096 = vpop.f32.mrb[0].mxu0
        %v3097 = vadd.f32 %v3023, %v3096
        %v3098 = vpop.f32.mrb[0].mxu0
        %3099 = vdwg.mxu0
        %3100 = vmatprep.subr.mxu0 0.0
        %v3101 = vand.u32 %v820, 4294901760
        %v3102 = vsub.f32 %v820, %v3101
        %v3103 = vand.u32 %v3102, 4294901760
        %3104 = vmatpush1.msra.mxu0 %v3103
        %3105 = vmatprep.subr.mxu0 0.0
        %3106 = vmatpush1.msra.mxu0 0.0
        %3107 = vmatprep.subr.mxu0 0.0
        %3108 = vmatpush1.msra.mxu0 0.0
        %3109 = vmatprep.subr.mxu0 0.0
        %3110 = vmatpush1.msra.mxu0 0.0
        %3111 = vmatprep.subr.mxu0 0.0
        %3112 = vmatpush1.msra.mxu0 0.0
        %3113 = vmatprep.subr.mxu0 0.0
        %3114 = vmatpush1.msra.mxu0 0.0
        %3115 = vmatprep.subr.mxu0 0.0
        %3116 = vmatpush1.msra.mxu0 0.0
        %3117 = vmatprep.subr.mxu0 0.0
        %3118 = vmatpush1.msra.mxu0 0.0
        %3119 = vmatprep.subr.mxu0 0.0
        %3120 = vmatpush1.msra.mxu0 0.0
        %3121 = vmatprep.subr.mxu0 0.0
        %3122 = vmatpush1.msra.mxu0 0.0
        %3123 = vmatprep.subr.mxu0 0.0
        %3124 = vmatpush1.msra.mxu0 0.0
        %3125 = vmatprep.subr.mxu0 0.0
        %3126 = vmatpush1.msra.mxu0 0.0
        %3127 = vmatprep.subr.mxu0 0.0
        %3128 = vmatpush1.msra.mxu0 0.0
        %3129 = vmatprep.subr.mxu0 0.0
        %3130 = vmatpush1.msra.mxu0 0.0
        %3131 = vmatprep.subr.mxu0 0.0
        %3132 = vmatpush1.msra.mxu0 0.0
        %3133 = vmatprep.subr.mxu0 0.0
        %3134 = vmatpush1.msra.mxu0 0.0
        %3135 = vmatprep.subr.mxu0 0.0
        %3136 = vmatpush1.msra.mxu0 0.0
        %3137 = vmatprep.subr.mxu0 0.0
        %3138 = vmatpush1.msra.mxu0 0.0
        %3139 = vmatprep.subr.mxu0 0.0
        %3140 = vmatpush1.msra.mxu0 0.0
        %3141 = vmatprep.subr.mxu0 0.0
        %3142 = vmatpush1.msra.mxu0 0.0
        %3143 = vmatprep.subr.mxu0 0.0
        %3144 = vmatpush1.msra.mxu0 0.0
        %3145 = vmatprep.subr.mxu0 0.0
        %3146 = vmatpush1.msra.mxu0 0.0
        %3147 = vmatprep.subr.mxu0 0.0
        %3148 = vmatpush1.msra.mxu0 0.0
        %3149 = vmatprep.subr.mxu0 0.0
        %3150 = vmatpush1.msra.mxu0 0.0
        %3151 = vmatprep.subr.mxu0 0.0
        %3152 = vmatpush1.msra.mxu0 0.0
        %3153 = vmatprep.subr.mxu0 0.0
        %3154 = vmatpush1.msra.mxu0 0.0
        %3155 = vmatprep.subr.mxu0 0.0
        %3156 = vmatpush1.msra.mxu0 0.0
        %3157 = vmatprep.subr.mxu0 0.0
        %3158 = vmatpush1.msra.mxu0 0.0
        %3159 = vmatprep.subr.mxu0 0.0
        %3160 = vmatpush1.msra.mxu0 0.0
        %3161 = vmatprep.subr.mxu0 0.0
        %3162 = vmatpush1.msra.mxu0 0.0
        %3163 = vmatprep.subr.mxu0 0.0
        %3164 = vmatpush1.msra.mxu0 0.0
        %3165 = vmatprep.subr.mxu0 0.0
        %3166 = vmatpush1.msra.mxu0 0.0
        %3167 = vmatprep.mubr.f32.mxu0 0.0
        %v3168 = vand.u32 %v2798, 4294901760
        %3169 = vmatmul.mubr.f32.gmra.mrb[0].mxu0 %v3168
        %v3170 = vpop.f32.mrb[0].mxu0
        %v3171 = vadd.f32 %v3097, %v3170
        %v3172 = vpop.f32.mrb[0].mxu0
        %3173 = vdwg.mxu0
        %3174 = vmatprep.subr.mxu0 0.0
        %v3175 = vand.u32 %v820, 4294901760
        %3176 = vmatpush1.msra.mxu0 %v3175
        %3177 = vmatprep.subr.mxu0 0.0
        %3178 = vmatpush1.msra.mxu0 0.0
        %3179 = vmatprep.subr.mxu0 0.0
        %3180 = vmatpush1.msra.mxu0 0.0
        %3181 = vmatprep.subr.mxu0 0.0
        %3182 = vmatpush1.msra.mxu0 0.0
        %3183 = vmatprep.subr.mxu0 0.0
        %3184 = vmatpush1.msra.mxu0 0.0
        %3185 = vmatprep.subr.mxu0 0.0
        %3186 = vmatpush1.msra.mxu0 0.0
        %3187 = vmatprep.subr.mxu0 0.0
        %3188 = vmatpush1.msra.mxu0 0.0
        %3189 = vmatprep.subr.mxu0 0.0
        %3190 = vmatpush1.msra.mxu0 0.0
        %3191 = vmatprep.subr.mxu0 0.0
        %3192 = vmatpush1.msra.mxu0 0.0
        %3193 = vmatprep.subr.mxu0 0.0
        %3194 = vmatpush1.msra.mxu0 0.0
        %3195 = vmatprep.subr.mxu0 0.0
        %3196 = vmatpush1.msra.mxu0 0.0
        %3197 = vmatprep.subr.mxu0 0.0
        %3198 = vmatpush1.msra.mxu0 0.0
        %3199 = vmatprep.subr.mxu0 0.0
        %3200 = vmatpush1.msra.mxu0 0.0
        %3201 = vmatprep.subr.mxu0 0.0
        %3202 = vmatpush1.msra.mxu0 0.0
        %3203 = vmatprep.subr.mxu0 0.0
        %3204 = vmatpush1.msra.mxu0 0.0
        %3205 = vmatprep.subr.mxu0 0.0
        %3206 = vmatpush1.msra.mxu0 0.0
        %3207 = vmatprep.subr.mxu0 0.0
        %3208 = vmatpush1.msra.mxu0 0.0
        %3209 = vmatprep.subr.mxu0 0.0
        %3210 = vmatpush1.msra.mxu0 0.0
        %3211 = vmatprep.subr.mxu0 0.0
        %3212 = vmatpush1.msra.mxu0 0.0
        %3213 = vmatprep.subr.mxu0 0.0
        %3214 = vmatpush1.msra.mxu0 0.0
        %3215 = vmatprep.subr.mxu0 0.0
        %3216 = vmatpush1.msra.mxu0 0.0
        %3217 = vmatprep.subr.mxu0 0.0
        %3218 = vmatpush1.msra.mxu0 0.0
        %3219 = vmatprep.subr.mxu0 0.0
        %3220 = vmatpush1.msra.mxu0 0.0
        %3221 = vmatprep.subr.mxu0 0.0
        %3222 = vmatpush1.msra.mxu0 0.0
        %3223 = vmatprep.subr.mxu0 0.0
        %3224 = vmatpush1.msra.mxu0 0.0
        %3225 = vmatprep.subr.mxu0 0.0
        %3226 = vmatpush1.msra.mxu0 0.0
        %3227 = vmatprep.subr.mxu0 0.0
        %3228 = vmatpush1.msra.mxu0 0.0
        %3229 = vmatprep.subr.mxu0 0.0
        %3230 = vmatpush1.msra.mxu0 0.0
        %3231 = vmatprep.subr.mxu0 0.0
        %3232 = vmatpush1.msra.mxu0 0.0
        %3233 = vmatprep.subr.mxu0 0.0
        %3234 = vmatpush1.msra.mxu0 0.0
        %3235 = vmatprep.subr.mxu0 0.0
        %3236 = vmatpush1.msra.mxu0 0.0
        %3237 = vmatprep.subr.mxu0 0.0
        %3238 = vmatpush1.msra.mxu0 0.0
        %3239 = vmatprep.mubr.f32.mxu0 0.0
        %v3240 = vand.u32 %v2798, 4294901760
        %3241 = vmatmul.mubr.f32.gmra.mrb[0].mxu0 %v3240
        %v3242 = vpop.f32.mrb[0].mxu0
        %v3243 = vadd.f32 %v3171, %v3242
        %v3244 = vpop.f32.mrb[0].mxu0
        %3245 = vdwg.mxu0
        %3247 = vrot.lane.b32.xlu0 %v820, 96
        %v3248 = vpop.permute.xlu0 %3247
        %v3251 = vsel %vm2744, %v2790, 0
        %3253 = vmatprep.subr.mxu0 0.0
        %v3254 = vand.u32 %v3248, 4294901760
        %3255 = vmatpush1.msra.mxu0 %v3254
        %3256 = vmatprep.subr.mxu0 0.0
        %3257 = vmatpush1.msra.mxu0 0.0
        %3258 = vmatprep.subr.mxu0 0.0
        %3259 = vmatpush1.msra.mxu0 0.0
        %3260 = vmatprep.subr.mxu0 0.0
        %3261 = vmatpush1.msra.mxu0 0.0
        %3262 = vmatprep.subr.mxu0 0.0
        %3263 = vmatpush1.msra.mxu0 0.0
        %3264 = vmatprep.subr.mxu0 0.0
        %3265 = vmatpush1.msra.mxu0 0.0
        %3266 = vmatprep.subr.mxu0 0.0
        %3267 = vmatpush1.msra.mxu0 0.0
        %3268 = vmatprep.subr.mxu0 0.0
        %3269 = vmatpush1.msra.mxu0 0.0
        %3270 = vmatprep.subr.mxu0 0.0
        %3271 = vmatpush1.msra.mxu0 0.0
        %3272 = vmatprep.subr.mxu0 0.0
        %3273 = vmatpush1.msra.mxu0 0.0
        %3274 = vmatprep.subr.mxu0 0.0
        %3275 = vmatpush1.msra.mxu0 0.0
        %3276 = vmatprep.subr.mxu0 0.0
        %3277 = vmatpush1.msra.mxu0 0.0
        %3278 = vmatprep.subr.mxu0 0.0
        %3279 = vmatpush1.msra.mxu0 0.0
        %3280 = vmatprep.subr.mxu0 0.0
        %3281 = vmatpush1.msra.mxu0 0.0
        %3282 = vmatprep.subr.mxu0 0.0
        %3283 = vmatpush1.msra.mxu0 0.0
        %3284 = vmatprep.subr.mxu0 0.0
        %3285 = vmatpush1.msra.mxu0 0.0
        %3286 = vmatprep.subr.mxu0 0.0
        %3287 = vmatpush1.msra.mxu0 0.0
        %3288 = vmatprep.subr.mxu0 0.0
        %3289 = vmatpush1.msra.mxu0 0.0
        %3290 = vmatprep.subr.mxu0 0.0
        %3291 = vmatpush1.msra.mxu0 0.0
        %3292 = vmatprep.subr.mxu0 0.0
        %3293 = vmatpush1.msra.mxu0 0.0
        %3294 = vmatprep.subr.mxu0 0.0
        %3295 = vmatpush1.msra.mxu0 0.0
        %3296 = vmatprep.subr.mxu0 0.0
        %3297 = vmatpush1.msra.mxu0 0.0
        %3298 = vmatprep.subr.mxu0 0.0
        %3299 = vmatpush1.msra.mxu0 0.0
        %3300 = vmatprep.subr.mxu0 0.0
        %3301 = vmatpush1.msra.mxu0 0.0
        %3302 = vmatprep.subr.mxu0 0.0
        %3303 = vmatpush1.msra.mxu0 0.0
        %3304 = vmatprep.subr.mxu0 0.0
        %3305 = vmatpush1.msra.mxu0 0.0
        %3306 = vmatprep.subr.mxu0 0.0
        %3307 = vmatpush1.msra.mxu0 0.0
        %3308 = vmatprep.subr.mxu0 0.0
        %3309 = vmatpush1.msra.mxu0 0.0
        %3310 = vmatprep.subr.mxu0 0.0
        %3311 = vmatpush1.msra.mxu0 0.0
        %3312 = vmatprep.subr.mxu0 0.0
        %3313 = vmatpush1.msra.mxu0 0.0
        %3314 = vmatprep.subr.mxu0 0.0
        %3315 = vmatpush1.msra.mxu0 0.0
        %3316 = vmatprep.subr.mxu0 0.0
        %3317 = vmatpush1.msra.mxu0 0.0
        %3318 = vmatprep.mubr.f32.mxu0 0.0
        %v3319 = vand.u32 %v3251, 4294901760
        %v3320 = vsub.f32 %v3251, %v3319
        %v3321 = vand.u32 %v3320, 4294901760
        %v3322 = vsub.f32 %v3320, %v3321
        %v3323 = vand.u32 %v3322, 4294901760
        %3324 = vmatmul.mubr.f32.gmra.mrb[0].mxu0 %v3323
        %v3325 = vpop.f32.mrb[0].mxu0
        %v3326 = vadd.f32 0.0, %v3325
        %v3327 = vpop.f32.mrb[0].mxu0
        %3328 = vdwg.mxu0
        %3329 = vmatprep.subr.mxu0 0.0
        %v3330 = vand.u32 %v3248, 4294901760
        %v3331 = vsub.f32 %v3248, %v3330
        %v3332 = vand.u32 %v3331, 4294901760
        %v3333 = vsub.f32 %v3331, %v3332
        %v3334 = vand.u32 %v3333, 4294901760
        %3335 = vmatpush1.msra.mxu0 %v3334
        %3336 = vmatprep.subr.mxu0 0.0
        %3337 = vmatpush1.msra.mxu0 0.0
        %3338 = vmatprep.subr.mxu0 0.0
        %3339 = vmatpush1.msra.mxu0 0.0
        %3340 = vmatprep.subr.mxu0 0.0
        %3341 = vmatpush1.msra.mxu0 0.0
        %3342 = vmatprep.subr.mxu0 0.0
        %3343 = vmatpush1.msra.mxu0 0.0
        %3344 = vmatprep.subr.mxu0 0.0
        %3345 = vmatpush1.msra.mxu0 0.0
        %3346 = vmatprep.subr.mxu0 0.0
        %3347 = vmatpush1.msra.mxu0 0.0
        %3348 = vmatprep.subr.mxu0 0.0
        %3349 = vmatpush1.msra.mxu0 0.0
        %3350 = vmatprep.subr.mxu0 0.0
        %3351 = vmatpush1.msra.mxu0 0.0
        %3352 = vmatprep.subr.mxu0 0.0
        %3353 = vmatpush1.msra.mxu0 0.0
        %3354 = vmatprep.subr.mxu0 0.0
        %3355 = vmatpush1.msra.mxu0 0.0
        %3356 = vmatprep.subr.mxu0 0.0
        %3357 = vmatpush1.msra.mxu0 0.0
        %3358 = vmatprep.subr.mxu0 0.0
        %3359 = vmatpush1.msra.mxu0 0.0
        %3360 = vmatprep.subr.mxu0 0.0
        %3361 = vmatpush1.msra.mxu0 0.0
        %3362 = vmatprep.subr.mxu0 0.0
        %3363 = vmatpush1.msra.mxu0 0.0
        %3364 = vmatprep.subr.mxu0 0.0
        %3365 = vmatpush1.msra.mxu0 0.0
        %3366 = vmatprep.subr.mxu0 0.0
        %3367 = vmatpush1.msra.mxu0 0.0
        %3368 = vmatprep.subr.mxu0 0.0
        %3369 = vmatpush1.msra.mxu0 0.0
        %3370 = vmatprep.subr.mxu0 0.0
        %3371 = vmatpush1.msra.mxu0 0.0
        %3372 = vmatprep.subr.mxu0 0.0
        %3373 = vmatpush1.msra.mxu0 0.0
        %3374 = vmatprep.subr.mxu0 0.0
        %3375 = vmatpush1.msra.mxu0 0.0
        %3376 = vmatprep.subr.mxu0 0.0
        %3377 = vmatpush1.msra.mxu0 0.0
        %3378 = vmatprep.subr.mxu0 0.0
        %3379 = vmatpush1.msra.mxu0 0.0
        %3380 = vmatprep.subr.mxu0 0.0
        %3381 = vmatpush1.msra.mxu0 0.0
        %3382 = vmatprep.subr.mxu0 0.0
        %3383 = vmatpush1.msra.mxu0 0.0
        %3384 = vmatprep.subr.mxu0 0.0
        %3385 = vmatpush1.msra.mxu0 0.0
        %3386 = vmatprep.subr.mxu0 0.0
        %3387 = vmatpush1.msra.mxu0 0.0
        %3388 = vmatprep.subr.mxu0 0.0
        %3389 = vmatpush1.msra.mxu0 0.0
        %3390 = vmatprep.subr.mxu0 0.0
        %3391 = vmatpush1.msra.mxu0 0.0
        %3392 = vmatprep.subr.mxu0 0.0
        %3393 = vmatpush1.msra.mxu0 0.0
        %3394 = vmatprep.subr.mxu0 0.0
        %3395 = vmatpush1.msra.mxu0 0.0
        %3396 = vmatprep.subr.mxu0 0.0
        %3397 = vmatpush1.msra.mxu0 0.0
        %3398 = vmatprep.mubr.f32.mxu0 0.0
        %v3399 = vand.u32 %v3251, 4294901760
        %3400 = vmatmul.mubr.f32.gmra.mrb[0].mxu0 %v3399
        %v3401 = vpop.f32.mrb[0].mxu0
        %v3402 = vadd.f32 %v3326, %v3401
        %v3403 = vpop.f32.mrb[0].mxu0
        %3404 = vdwg.mxu0
        %3405 = vmatprep.subr.mxu0 0.0
        %v3406 = vand.u32 %v3248, 4294901760
        %v3407 = vsub.f32 %v3248, %v3406
        %3408 = vmatpush1.msra.mxu0 %v3407
        %3409 = vmatprep.subr.mxu0 0.0
        %3410 = vmatpush1.msra.mxu0 0.0
        %3411 = vmatprep.subr.mxu0 0.0
        %3412 = vmatpush1.msra.mxu0 0.0
        %3413 = vmatprep.subr.mxu0 0.0
        %3414 = vmatpush1.msra.mxu0 0.0
        %3415 = vmatprep.subr.mxu0 0.0
        %3416 = vmatpush1.msra.mxu0 0.0
        %3417 = vmatprep.subr.mxu0 0.0
        %3418 = vmatpush1.msra.mxu0 0.0
        %3419 = vmatprep.subr.mxu0 0.0
        %3420 = vmatpush1.msra.mxu0 0.0
        %3421 = vmatprep.subr.mxu0 0.0
        %3422 = vmatpush1.msra.mxu0 0.0
        %3423 = vmatprep.subr.mxu0 0.0
        %3424 = vmatpush1.msra.mxu0 0.0
        %3425 = vmatprep.subr.mxu0 0.0
        %3426 = vmatpush1.msra.mxu0 0.0
        %3427 = vmatprep.subr.mxu0 0.0
        %3428 = vmatpush1.msra.mxu0 0.0
        %3429 = vmatprep.subr.mxu0 0.0
        %3430 = vmatpush1.msra.mxu0 0.0
        %3431 = vmatprep.subr.mxu0 0.0
        %3432 = vmatpush1.msra.mxu0 0.0
        %3433 = vmatprep.subr.mxu0 0.0
        %3434 = vmatpush1.msra.mxu0 0.0
        %3435 = vmatprep.subr.mxu0 0.0
        %3436 = vmatpush1.msra.mxu0 0.0
        %3437 = vmatprep.subr.mxu0 0.0
        %3438 = vmatpush1.msra.mxu0 0.0
        %3439 = vmatprep.subr.mxu0 0.0
        %3440 = vmatpush1.msra.mxu0 0.0
        %3441 = vmatprep.subr.mxu0 0.0
        %3442 = vmatpush1.msra.mxu0 0.0
        %3443 = vmatprep.subr.mxu0 0.0
        %3444 = vmatpush1.msra.mxu0 0.0
        %3445 = vmatprep.subr.mxu0 0.0
        %3446 = vmatpush1.msra.mxu0 0.0
        %3447 = vmatprep.subr.mxu0 0.0
        %3448 = vmatpush1.msra.mxu0 0.0
        %3449 = vmatprep.subr.mxu0 0.0
        %3450 = vmatpush1.msra.mxu0 0.0
        %3451 = vmatprep.subr.mxu0 0.0
        %3452 = vmatpush1.msra.mxu0 0.0
        %3453 = vmatprep.subr.mxu0 0.0
        %3454 = vmatpush1.msra.mxu0 0.0
        %3455 = vmatprep.subr.mxu0 0.0
        %3456 = vmatpush1.msra.mxu0 0.0
        %3457 = vmatprep.subr.mxu0 0.0
        %3458 = vmatpush1.msra.mxu0 0.0
        %3459 = vmatprep.subr.mxu0 0.0
        %3460 = vmatpush1.msra.mxu0 0.0
        %3461 = vmatprep.subr.mxu0 0.0
        %3462 = vmatpush1.msra.mxu0 0.0
        %3463 = vmatprep.subr.mxu0 0.0
        %3464 = vmatpush1.msra.mxu0 0.0
        %3465 = vmatprep.subr.mxu0 0.0
        %3466 = vmatpush1.msra.mxu0 0.0
        %3467 = vmatprep.subr.mxu0 0.0
        %3468 = vmatpush1.msra.mxu0 0.0
        %3469 = vmatprep.subr.mxu0 0.0
        %3470 = vmatpush1.msra.mxu0 0.0
        %3471 = vmatprep.mubr.f32.mxu0 0.0
        %v3472 = vand.u32 %v3251, 4294901760
        %v3473 = vsub.f32 %v3251, %v3472
        %3474 = vmatmul.mubr.f32.gmra.mrb[0].mxu0 %v3473
        %v3475 = vpop.f32.mrb[0].mxu0
        %v3476 = vadd.f32 %v3402, %v3475
        %v3477 = vpop.f32.mrb[0].mxu0
        %3478 = vdwg.mxu0
        %3479 = vmatprep.subr.mxu0 0.0
        %v3480 = vand.u32 %v3248, 4294901760
        %3481 = vmatpush1.msra.mxu0 %v3480
        %3482 = vmatprep.subr.mxu0 0.0
        %3483 = vmatpush1.msra.mxu0 0.0
        %3484 = vmatprep.subr.mxu0 0.0
        %3485 = vmatpush1.msra.mxu0 0.0
        %3486 = vmatprep.subr.mxu0 0.0
        %3487 = vmatpush1.msra.mxu0 0.0
        %3488 = vmatprep.subr.mxu0 0.0
        %3489 = vmatpush1.msra.mxu0 0.0
        %3490 = vmatprep.subr.mxu0 0.0
        %3491 = vmatpush1.msra.mxu0 0.0
        %3492 = vmatprep.subr.mxu0 0.0
        %3493 = vmatpush1.msra.mxu0 0.0
        %3494 = vmatprep.subr.mxu0 0.0
        %3495 = vmatpush1.msra.mxu0 0.0
        %3496 = vmatprep.subr.mxu0 0.0
        %3497 = vmatpush1.msra.mxu0 0.0
        %3498 = vmatprep.subr.mxu0 0.0
        %3499 = vmatpush1.msra.mxu0 0.0
        %3500 = vmatprep.subr.mxu0 0.0
        %3501 = vmatpush1.msra.mxu0 0.0
        %3502 = vmatprep.subr.mxu0 0.0
        %3503 = vmatpush1.msra.mxu0 0.0
        %3504 = vmatprep.subr.mxu0 0.0
        %3505 = vmatpush1.msra.mxu0 0.0
        %3506 = vmatprep.subr.mxu0 0.0
        %3507 = vmatpush1.msra.mxu0 0.0
        %3508 = vmatprep.subr.mxu0 0.0
        %3509 = vmatpush1.msra.mxu0 0.0
        %3510 = vmatprep.subr.mxu0 0.0
        %3511 = vmatpush1.msra.mxu0 0.0
        %3512 = vmatprep.subr.mxu0 0.0
        %3513 = vmatpush1.msra.mxu0 0.0
        %3514 = vmatprep.subr.mxu0 0.0
        %3515 = vmatpush1.msra.mxu0 0.0
        %3516 = vmatprep.subr.mxu0 0.0
        %3517 = vmatpush1.msra.mxu0 0.0
        %3518 = vmatprep.subr.mxu0 0.0
        %3519 = vmatpush1.msra.mxu0 0.0
        %3520 = vmatprep.subr.mxu0 0.0
        %3521 = vmatpush1.msra.mxu0 0.0
        %3522 = vmatprep.subr.mxu0 0.0
        %3523 = vmatpush1.msra.mxu0 0.0
        %3524 = vmatprep.subr.mxu0 0.0
        %3525 = vmatpush1.msra.mxu0 0.0
        %3526 = vmatprep.subr.mxu0 0.0
        %3527 = vmatpush1.msra.mxu0 0.0
        %3528 = vmatprep.subr.mxu0 0.0
        %3529 = vmatpush1.msra.mxu0 0.0
        %3530 = vmatprep.subr.mxu0 0.0
        %3531 = vmatpush1.msra.mxu0 0.0
        %3532 = vmatprep.subr.mxu0 0.0
        %3533 = vmatpush1.msra.mxu0 0.0
        %3534 = vmatprep.subr.mxu0 0.0
        %3535 = vmatpush1.msra.mxu0 0.0
        %3536 = vmatprep.subr.mxu0 0.0
        %3537 = vmatpush1.msra.mxu0 0.0
        %3538 = vmatprep.subr.mxu0 0.0
        %3539 = vmatpush1.msra.mxu0 0.0
        %3540 = vmatprep.subr.mxu0 0.0
        %3541 = vmatpush1.msra.mxu0 0.0
        %3542 = vmatprep.subr.mxu0 0.0
        %3543 = vmatpush1.msra.mxu0 0.0
        %3544 = vmatprep.mubr.f32.mxu0 0.0
        %v3545 = vand.u32 %v3251, 4294901760
        %v3546 = vsub.f32 %v3251, %v3545
        %v3547 = vand.u32 %v3546, 4294901760
        %3548 = vmatmul.mubr.f32.gmra.mrb[0].mxu0 %v3547
        %v3549 = vpop.f32.mrb[0].mxu0
        %v3550 = vadd.f32 %v3476, %v3549
        %v3551 = vpop.f32.mrb[0].mxu0
        %3552 = vdwg.mxu0
        %3553 = vmatprep.subr.mxu0 0.0
        %v3554 = vand.u32 %v3248, 4294901760
        %v3555 = vsub.f32 %v3248, %v3554
        %v3556 = vand.u32 %v3555, 4294901760
        %3557 = vmatpush1.msra.mxu0 %v3556
        %3558 = vmatprep.subr.mxu0 0.0
        %3559 = vmatpush1.msra.mxu0 0.0
        %3560 = vmatprep.subr.mxu0 0.0
        %3561 = vmatpush1.msra.mxu0 0.0
        %3562 = vmatprep.subr.mxu0 0.0
        %3563 = vmatpush1.msra.mxu0 0.0
        %3564 = vmatprep.subr.mxu0 0.0
        %3565 = vmatpush1.msra.mxu0 0.0
        %3566 = vmatprep.subr.mxu0 0.0
        %3567 = vmatpush1.msra.mxu0 0.0
        %3568 = vmatprep.subr.mxu0 0.0
        %3569 = vmatpush1.msra.mxu0 0.0
        %3570 = vmatprep.subr.mxu0 0.0
        %3571 = vmatpush1.msra.mxu0 0.0
        %3572 = vmatprep.subr.mxu0 0.0
        %3573 = vmatpush1.msra.mxu0 0.0
        %3574 = vmatprep.subr.mxu0 0.0
        %3575 = vmatpush1.msra.mxu0 0.0
        %3576 = vmatprep.subr.mxu0 0.0
        %3577 = vmatpush1.msra.mxu0 0.0
        %3578 = vmatprep.subr.mxu0 0.0
        %3579 = vmatpush1.msra.mxu0 0.0
        %3580 = vmatprep.subr.mxu0 0.0
        %3581 = vmatpush1.msra.mxu0 0.0
        %3582 = vmatprep.subr.mxu0 0.0
        %3583 = vmatpush1.msra.mxu0 0.0
        %3584 = vmatprep.subr.mxu0 0.0
        %3585 = vmatpush1.msra.mxu0 0.0
        %3586 = vmatprep.subr.mxu0 0.0
        %3587 = vmatpush1.msra.mxu0 0.0
        %3588 = vmatprep.subr.mxu0 0.0
        %3589 = vmatpush1.msra.mxu0 0.0
        %3590 = vmatprep.subr.mxu0 0.0
        %3591 = vmatpush1.msra.mxu0 0.0
        %3592 = vmatprep.subr.mxu0 0.0
        %3593 = vmatpush1.msra.mxu0 0.0
        %3594 = vmatprep.subr.mxu0 0.0
        %3595 = vmatpush1.msra.mxu0 0.0
        %3596 = vmatprep.subr.mxu0 0.0
        %3597 = vmatpush1.msra.mxu0 0.0
        %3598 = vmatprep.subr.mxu0 0.0
        %3599 = vmatpush1.msra.mxu0 0.0
        %3600 = vmatprep.subr.mxu0 0.0
        %3601 = vmatpush1.msra.mxu0 0.0
        %3602 = vmatprep.subr.mxu0 0.0
        %3603 = vmatpush1.msra.mxu0 0.0
        %3604 = vmatprep.subr.mxu0 0.0
        %3605 = vmatpush1.msra.mxu0 0.0
        %3606 = vmatprep.subr.mxu0 0.0
        %3607 = vmatpush1.msra.mxu0 0.0
        %3608 = vmatprep.subr.mxu0 0.0
        %3609 = vmatpush1.msra.mxu0 0.0
        %3610 = vmatprep.subr.mxu0 0.0
        %3611 = vmatpush1.msra.mxu0 0.0
        %3612 = vmatprep.subr.mxu0 0.0
        %3613 = vmatpush1.msra.mxu0 0.0
        %3614 = vmatprep.subr.mxu0 0.0
        %3615 = vmatpush1.msra.mxu0 0.0
        %3616 = vmatprep.subr.mxu0 0.0
        %3617 = vmatpush1.msra.mxu0 0.0
        %3618 = vmatprep.subr.mxu0 0.0
        %3619 = vmatpush1.msra.mxu0 0.0
        %3620 = vmatprep.mubr.f32.mxu0 0.0
        %v3621 = vand.u32 %v3251, 4294901760
        %3622 = vmatmul.mubr.f32.gmra.mrb[0].mxu0 %v3621
        %v3623 = vpop.f32.mrb[0].mxu0
        %v3624 = vadd.f32 %v3550, %v3623
        %v3625 = vpop.f32.mrb[0].mxu0
        %3626 = vdwg.mxu0
        %3627 = vmatprep.subr.mxu0 0.0
        %v3628 = vand.u32 %v3248, 4294901760
        %3629 = vmatpush1.msra.mxu0 %v3628
        %3630 = vmatprep.subr.mxu0 0.0
        %3631 = vmatpush1.msra.mxu0 0.0
        %3632 = vmatprep.subr.mxu0 0.0
        %3633 = vmatpush1.msra.mxu0 0.0
        %3634 = vmatprep.subr.mxu0 0.0
        %3635 = vmatpush1.msra.mxu0 0.0
        %3636 = vmatprep.subr.mxu0 0.0
        %3637 = vmatpush1.msra.mxu0 0.0
        %3638 = vmatprep.subr.mxu0 0.0
        %3639 = vmatpush1.msra.mxu0 0.0
        %3640 = vmatprep.subr.mxu0 0.0
        %3641 = vmatpush1.msra.mxu0 0.0
        %3642 = vmatprep.subr.mxu0 0.0
        %3643 = vmatpush1.msra.mxu0 0.0
        %3644 = vmatprep.subr.mxu0 0.0
        %3645 = vmatpush1.msra.mxu0 0.0
        %3646 = vmatprep.subr.mxu0 0.0
        %3647 = vmatpush1.msra.mxu0 0.0
        %3648 = vmatprep.subr.mxu0 0.0
        %3649 = vmatpush1.msra.mxu0 0.0
        %3650 = vmatprep.subr.mxu0 0.0
        %3651 = vmatpush1.msra.mxu0 0.0
        %3652 = vmatprep.subr.mxu0 0.0
        %3653 = vmatpush1.msra.mxu0 0.0
        %3654 = vmatprep.subr.mxu0 0.0
        %3655 = vmatpush1.msra.mxu0 0.0
        %3656 = vmatprep.subr.mxu0 0.0
        %3657 = vmatpush1.msra.mxu0 0.0
        %3658 = vmatprep.subr.mxu0 0.0
        %3659 = vmatpush1.msra.mxu0 0.0
        %3660 = vmatprep.subr.mxu0 0.0
        %3661 = vmatpush1.msra.mxu0 0.0
        %3662 = vmatprep.subr.mxu0 0.0
        %3663 = vmatpush1.msra.mxu0 0.0
        %3664 = vmatprep.subr.mxu0 0.0
        %3665 = vmatpush1.msra.mxu0 0.0
        %3666 = vmatprep.subr.mxu0 0.0
        %3667 = vmatpush1.msra.mxu0 0.0
        %3668 = vmatprep.subr.mxu0 0.0
        %3669 = vmatpush1.msra.mxu0 0.0
        %3670 = vmatprep.subr.mxu0 0.0
        %3671 = vmatpush1.msra.mxu0 0.0
        %3672 = vmatprep.subr.mxu0 0.0
        %3673 = vmatpush1.msra.mxu0 0.0
        %3674 = vmatprep.subr.mxu0 0.0
        %3675 = vmatpush1.msra.mxu0 0.0
        %3676 = vmatprep.subr.mxu0 0.0
        %3677 = vmatpush1.msra.mxu0 0.0
        %3678 = vmatprep.subr.mxu0 0.0
        %3679 = vmatpush1.msra.mxu0 0.0
        %3680 = vmatprep.subr.mxu0 0.0
        %3681 = vmatpush1.msra.mxu0 0.0
        %3682 = vmatprep.subr.mxu0 0.0
        %3683 = vmatpush1.msra.mxu0 0.0
        %3684 = vmatprep.subr.mxu0 0.0
        %3685 = vmatpush1.msra.mxu0 0.0
        %3686 = vmatprep.subr.mxu0 0.0
        %3687 = vmatpush1.msra.mxu0 0.0
        %3688 = vmatprep.subr.mxu0 0.0
        %3689 = vmatpush1.msra.mxu0 0.0
        %3690 = vmatprep.subr.mxu0 0.0
        %3691 = vmatpush1.msra.mxu0 0.0
        %3692 = vmatprep.mubr.f32.mxu0 0.0
        %v3693 = vand.u32 %v3251, 4294901760
        %3694 = vmatmul.mubr.f32.gmra.mrb[0].mxu0 %v3693
        %v3695 = vpop.f32.mrb[0].mxu0
        %v3696 = vadd.f32 %v3624, %v3695
        %v3697 = vpop.f32.mrb[0].mxu0
        %3698 = vdwg.mxu0
        %3699 = vrot.lane.b32.xlu0 %v820, 64
        %v3700 = vpop.permute.xlu0 %3699
        %v3703 = vsel %vm2744, %v2791, 0
        %3705 = vmatprep.subr.mxu0 0.0
        %v3706 = vand.u32 %v3700, 4294901760
        %3707 = vmatpush1.msra.mxu0 %v3706
        %3708 = vmatprep.subr.mxu0 0.0
        %3709 = vmatpush1.msra.mxu0 0.0
        %3710 = vmatprep.subr.mxu0 0.0
        %3711 = vmatpush1.msra.mxu0 0.0
        %3712 = vmatprep.subr.mxu0 0.0
        %3713 = vmatpush1.msra.mxu0 0.0
        %3714 = vmatprep.subr.mxu0 0.0
        %3715 = vmatpush1.msra.mxu0 0.0
        %3716 = vmatprep.subr.mxu0 0.0
        %3717 = vmatpush1.msra.mxu0 0.0
        %3718 = vmatprep.subr.mxu0 0.0
        %3719 = vmatpush1.msra.mxu0 0.0
        %3720 = vmatprep.subr.mxu0 0.0
        %3721 = vmatpush1.msra.mxu0 0.0
        %3722 = vmatprep.subr.mxu0 0.0
        %3723 = vmatpush1.msra.mxu0 0.0
        %3724 = vmatprep.subr.mxu0 0.0
        %3725 = vmatpush1.msra.mxu0 0.0
        %3726 = vmatprep.subr.mxu0 0.0
        %3727 = vmatpush1.msra.mxu0 0.0
        %3728 = vmatprep.subr.mxu0 0.0
        %3729 = vmatpush1.msra.mxu0 0.0
        %3730 = vmatprep.subr.mxu0 0.0
        %3731 = vmatpush1.msra.mxu0 0.0
        %3732 = vmatprep.subr.mxu0 0.0
        %3733 = vmatpush1.msra.mxu0 0.0
        %3734 = vmatprep.subr.mxu0 0.0
        %3735 = vmatpush1.msra.mxu0 0.0
        %3736 = vmatprep.subr.mxu0 0.0
        %3737 = vmatpush1.msra.mxu0 0.0
        %3738 = vmatprep.subr.mxu0 0.0
        %3739 = vmatpush1.msra.mxu0 0.0
        %3740 = vmatprep.subr.mxu0 0.0
        %3741 = vmatpush1.msra.mxu0 0.0
        %3742 = vmatprep.subr.mxu0 0.0
        %3743 = vmatpush1.msra.mxu0 0.0
        %3744 = vmatprep.subr.mxu0 0.0
        %3745 = vmatpush1.msra.mxu0 0.0
        %3746 = vmatprep.subr.mxu0 0.0
        %3747 = vmatpush1.msra.mxu0 0.0
        %3748 = vmatprep.subr.mxu0 0.0
        %3749 = vmatpush1.msra.mxu0 0.0
        %3750 = vmatprep.subr.mxu0 0.0
        %3751 = vmatpush1.msra.mxu0 0.0
        %3752 = vmatprep.subr.mxu0 0.0
        %3753 = vmatpush1.msra.mxu0 0.0
        %3754 = vmatprep.subr.mxu0 0.0
        %3755 = vmatpush1.msra.mxu0 0.0
        %3756 = vmatprep.subr.mxu0 0.0
        %3757 = vmatpush1.msra.mxu0 0.0
        %3758 = vmatprep.subr.mxu0 0.0
        %3759 = vmatpush1.msra.mxu0 0.0
        %3760 = vmatprep.subr.mxu0 0.0
        %3761 = vmatpush1.msra.mxu0 0.0
        %3762 = vmatprep.subr.mxu0 0.0
        %3763 = vmatpush1.msra.mxu0 0.0
        %3764 = vmatprep.subr.mxu0 0.0
        %3765 = vmatpush1.msra.mxu0 0.0
        %3766 = vmatprep.subr.mxu0 0.0
        %3767 = vmatpush1.msra.mxu0 0.0
        %3768 = vmatprep.subr.mxu0 0.0
        %3769 = vmatpush1.msra.mxu0 0.0
        %3770 = vmatprep.mubr.f32.mxu0 0.0
        %v3771 = vand.u32 %v3703, 4294901760
        %v3772 = vsub.f32 %v3703, %v3771
        %v3773 = vand.u32 %v3772, 4294901760
        %v3774 = vsub.f32 %v3772, %v3773
        %v3775 = vand.u32 %v3774, 4294901760
        %3776 = vmatmul.mubr.f32.gmra.mrb[0].mxu0 %v3775
        %v3777 = vpop.f32.mrb[0].mxu0
        %v3778 = vadd.f32 0.0, %v3777
        %v3779 = vpop.f32.mrb[0].mxu0
        %3780 = vdwg.mxu0
        %3781 = vmatprep.subr.mxu0 0.0
        %v3782 = vand.u32 %v3700, 4294901760
        %v3783 = vsub.f32 %v3700, %v3782
        %v3784 = vand.u32 %v3783, 4294901760
        %v3785 = vsub.f32 %v3783, %v3784
        %v3786 = vand.u32 %v3785, 4294901760
        %3787 = vmatpush1.msra.mxu0 %v3786
        %3788 = vmatprep.subr.mxu0 0.0
        %3789 = vmatpush1.msra.mxu0 0.0
        %3790 = vmatprep.subr.mxu0 0.0
        %3791 = vmatpush1.msra.mxu0 0.0
        %3792 = vmatprep.subr.mxu0 0.0
        %3793 = vmatpush1.msra.mxu0 0.0
        %3794 = vmatprep.subr.mxu0 0.0
        %3795 = vmatpush1.msra.mxu0 0.0
        %3796 = vmatprep.subr.mxu0 0.0
        %3797 = vmatpush1.msra.mxu0 0.0
        %3798 = vmatprep.subr.mxu0 0.0
        %3799 = vmatpush1.msra.mxu0 0.0
        %3800 = vmatprep.subr.mxu0 0.0
        %3801 = vmatpush1.msra.mxu0 0.0
        %3802 = vmatprep.subr.mxu0 0.0
        %3803 = vmatpush1.msra.mxu0 0.0
        %3804 = vmatprep.subr.mxu0 0.0
        %3805 = vmatpush1.msra.mxu0 0.0
        %3806 = vmatprep.subr.mxu0 0.0
        %3807 = vmatpush1.msra.mxu0 0.0
        %3808 = vmatprep.subr.mxu0 0.0
        %3809 = vmatpush1.msra.mxu0 0.0
        %3810 = vmatprep.subr.mxu0 0.0
        %3811 = vmatpush1.msra.mxu0 0.0
        %3812 = vmatprep.subr.mxu0 0.0
        %3813 = vmatpush1.msra.mxu0 0.0
        %3814 = vmatprep.subr.mxu0 0.0
        %3815 = vmatpush1.msra.mxu0 0.0
        %3816 = vmatprep.subr.mxu0 0.0
        %3817 = vmatpush1.msra.mxu0 0.0
        %3818 = vmatprep.subr.mxu0 0.0
        %3819 = vmatpush1.msra.mxu0 0.0
        %3820 = vmatprep.subr.mxu0 0.0
        %3821 = vmatpush1.msra.mxu0 0.0
        %3822 = vmatprep.subr.mxu0 0.0
        %3823 = vmatpush1.msra.mxu0 0.0
        %3824 = vmatprep.subr.mxu0 0.0
        %3825 = vmatpush1.msra.mxu0 0.0
        %3826 = vmatprep.subr.mxu0 0.0
        %3827 = vmatpush1.msra.mxu0 0.0
        %3828 = vmatprep.subr.mxu0 0.0
        %3829 = vmatpush1.msra.mxu0 0.0
        %3830 = vmatprep.subr.mxu0 0.0
        %3831 = vmatpush1.msra.mxu0 0.0
        %3832 = vmatprep.subr.mxu0 0.0
        %3833 = vmatpush1.msra.mxu0 0.0
        %3834 = vmatprep.subr.mxu0 0.0
        %3835 = vmatpush1.msra.mxu0 0.0
        %3836 = vmatprep.subr.mxu0 0.0
        %3837 = vmatpush1.msra.mxu0 0.0
        %3838 = vmatprep.subr.mxu0 0.0
        %3839 = vmatpush1.msra.mxu0 0.0
        %3840 = vmatprep.subr.mxu0 0.0
        %3841 = vmatpush1.msra.mxu0 0.0
        %3842 = vmatprep.subr.mxu0 0.0
        %3843 = vmatpush1.msra.mxu0 0.0
        %3844 = vmatprep.subr.mxu0 0.0
        %3845 = vmatpush1.msra.mxu0 0.0
        %3846 = vmatprep.subr.mxu0 0.0
        %3847 = vmatpush1.msra.mxu0 0.0
        %3848 = vmatprep.subr.mxu0 0.0
        %3849 = vmatpush1.msra.mxu0 0.0
        %3850 = vmatprep.mubr.f32.mxu0 0.0
        %v3851 = vand.u32 %v3703, 4294901760
        %3852 = vmatmul.mubr.f32.gmra.mrb[0].mxu0 %v3851
        %v3853 = vpop.f32.mrb[0].mxu0
        %v3854 = vadd.f32 %v3778, %v3853
        %v3855 = vpop.f32.mrb[0].mxu0
        %3856 = vdwg.mxu0
        %3857 = vmatprep.subr.mxu0 0.0
        %v3858 = vand.u32 %v3700, 4294901760
        %v3859 = vsub.f32 %v3700, %v3858
        %3860 = vmatpush1.msra.mxu0 %v3859
        %3861 = vmatprep.subr.mxu0 0.0
        %3862 = vmatpush1.msra.mxu0 0.0
        %3863 = vmatprep.subr.mxu0 0.0
        %3864 = vmatpush1.msra.mxu0 0.0
        %3865 = vmatprep.subr.mxu0 0.0
        %3866 = vmatpush1.msra.mxu0 0.0
        %3867 = vmatprep.subr.mxu0 0.0
        %3868 = vmatpush1.msra.mxu0 0.0
        %3869 = vmatprep.subr.mxu0 0.0
        %3870 = vmatpush1.msra.mxu0 0.0
        %3871 = vmatprep.subr.mxu0 0.0
        %3872 = vmatpush1.msra.mxu0 0.0
        %3873 = vmatprep.subr.mxu0 0.0
        %3874 = vmatpush1.msra.mxu0 0.0
        %3875 = vmatprep.subr.mxu0 0.0
        %3876 = vmatpush1.msra.mxu0 0.0
        %3877 = vmatprep.subr.mxu0 0.0
        %3878 = vmatpush1.msra.mxu0 0.0
        %3879 = vmatprep.subr.mxu0 0.0
        %3880 = vmatpush1.msra.mxu0 0.0
        %3881 = vmatprep.subr.mxu0 0.0
        %3882 = vmatpush1.msra.mxu0 0.0
        %3883 = vmatprep.subr.mxu0 0.0
        %3884 = vmatpush1.msra.mxu0 0.0
        %3885 = vmatprep.subr.mxu0 0.0
        %3886 = vmatpush1.msra.mxu0 0.0
        %3887 = vmatprep.subr.mxu0 0.0
        %3888 = vmatpush1.msra.mxu0 0.0
        %3889 = vmatprep.subr.mxu0 0.0
        %3890 = vmatpush1.msra.mxu0 0.0
        %3891 = vmatprep.subr.mxu0 0.0
        %3892 = vmatpush1.msra.mxu0 0.0
        %3893 = vmatprep.subr.mxu0 0.0
        %3894 = vmatpush1.msra.mxu0 0.0
        %3895 = vmatprep.subr.mxu0 0.0
        %3896 = vmatpush1.msra.mxu0 0.0
        %3897 = vmatprep.subr.mxu0 0.0
        %3898 = vmatpush1.msra.mxu0 0.0
        %3899 = vmatprep.subr.mxu0 0.0
        %3900 = vmatpush1.msra.mxu0 0.0
        %3901 = vmatprep.subr.mxu0 0.0
        %3902 = vmatpush1.msra.mxu0 0.0
        %3903 = vmatprep.subr.mxu0 0.0
        %3904 = vmatpush1.msra.mxu0 0.0
        %3905 = vmatprep.subr.mxu0 0.0
        %3906 = vmatpush1.msra.mxu0 0.0
        %3907 = vmatprep.subr.mxu0 0.0
        %3908 = vmatpush1.msra.mxu0 0.0
        %3909 = vmatprep.subr.mxu0 0.0
        %3910 = vmatpush1.msra.mxu0 0.0
        %3911 = vmatprep.subr.mxu0 0.0
        %3912 = vmatpush1.msra.mxu0 0.0
        %3913 = vmatprep.subr.mxu0 0.0
        %3914 = vmatpush1.msra.mxu0 0.0
        %3915 = vmatprep.subr.mxu0 0.0
        %3916 = vmatpush1.msra.mxu0 0.0
        %3917 = vmatprep.subr.mxu0 0.0
        %3918 = vmatpush1.msra.mxu0 0.0
        %3919 = vmatprep.subr.mxu0 0.0
        %3920 = vmatpush1.msra.mxu0 0.0
        %3921 = vmatprep.subr.mxu0 0.0
        %3922 = vmatpush1.msra.mxu0 0.0
        %3923 = vmatprep.mubr.f32.mxu0 0.0
        %v3924 = vand.u32 %v3703, 4294901760
        %v3925 = vsub.f32 %v3703, %v3924
        %3926 = vmatmul.mubr.f32.gmra.mrb[0].mxu0 %v3925
        %v3927 = vpop.f32.mrb[0].mxu0
        %v3928 = vadd.f32 %v3854, %v3927
        %v3929 = vpop.f32.mrb[0].mxu0
        %3930 = vdwg.mxu0
        %3931 = vmatprep.subr.mxu0 0.0
        %v3932 = vand.u32 %v3700, 4294901760
        %3933 = vmatpush1.msra.mxu0 %v3932
        %3934 = vmatprep.subr.mxu0 0.0
        %3935 = vmatpush1.msra.mxu0 0.0
        %3936 = vmatprep.subr.mxu0 0.0
        %3937 = vmatpush1.msra.mxu0 0.0
        %3938 = vmatprep.subr.mxu0 0.0
        %3939 = vmatpush1.msra.mxu0 0.0
        %3940 = vmatprep.subr.mxu0 0.0
        %3941 = vmatpush1.msra.mxu0 0.0
        %3942 = vmatprep.subr.mxu0 0.0
        %3943 = vmatpush1.msra.mxu0 0.0
        %3944 = vmatprep.subr.mxu0 0.0
        %3945 = vmatpush1.msra.mxu0 0.0
        %3946 = vmatprep.subr.mxu0 0.0
        %3947 = vmatpush1.msra.mxu0 0.0
        %3948 = vmatprep.subr.mxu0 0.0
        %3949 = vmatpush1.msra.mxu0 0.0
        %3950 = vmatprep.subr.mxu0 0.0
        %3951 = vmatpush1.msra.mxu0 0.0
        %3952 = vmatprep.subr.mxu0 0.0
        %3953 = vmatpush1.msra.mxu0 0.0
        %3954 = vmatprep.subr.mxu0 0.0
        %3955 = vmatpush1.msra.mxu0 0.0
        %3956 = vmatprep.subr.mxu0 0.0
        %3957 = vmatpush1.msra.mxu0 0.0
        %3958 = vmatprep.subr.mxu0 0.0
        %3959 = vmatpush1.msra.mxu0 0.0
        %3960 = vmatprep.subr.mxu0 0.0
        %3961 = vmatpush1.msra.mxu0 0.0
        %3962 = vmatprep.subr.mxu0 0.0
        %3963 = vmatpush1.msra.mxu0 0.0
        %3964 = vmatprep.subr.mxu0 0.0
        %3965 = vmatpush1.msra.mxu0 0.0
        %3966 = vmatprep.subr.mxu0 0.0
        %3967 = vmatpush1.msra.mxu0 0.0
        %3968 = vmatprep.subr.mxu0 0.0
        %3969 = vmatpush1.msra.mxu0 0.0
        %3970 = vmatprep.subr.mxu0 0.0
        %3971 = vmatpush1.msra.mxu0 0.0
        %3972 = vmatprep.subr.mxu0 0.0
        %3973 = vmatpush1.msra.mxu0 0.0
        %3974 = vmatprep.subr.mxu0 0.0
        %3975 = vmatpush1.msra.mxu0 0.0
        %3976 = vmatprep.subr.mxu0 0.0
        %3977 = vmatpush1.msra.mxu0 0.0
        %3978 = vmatprep.subr.mxu0 0.0
        %3979 = vmatpush1.msra.mxu0 0.0
        %3980 = vmatprep.subr.mxu0 0.0
        %3981 = vmatpush1.msra.mxu0 0.0
        %3982 = vmatprep.subr.mxu0 0.0
        %3983 = vmatpush1.msra.mxu0 0.0
        %3984 = vmatprep.subr.mxu0 0.0
        %3985 = vmatpush1.msra.mxu0 0.0
        %3986 = vmatprep.subr.mxu0 0.0
        %3987 = vmatpush1.msra.mxu0 0.0
        %3988 = vmatprep.subr.mxu0 0.0
        %3989 = vmatpush1.msra.mxu0 0.0
        %3990 = vmatprep.subr.mxu0 0.0
        %3991 = vmatpush1.msra.mxu0 0.0
        %3992 = vmatprep.subr.mxu0 0.0
        %3993 = vmatpush1.msra.mxu0 0.0
        %3994 = vmatprep.subr.mxu0 0.0
        %3995 = vmatpush1.msra.mxu0 0.0
        %3996 = vmatprep.mubr.f32.mxu0 0.0
        %v3997 = vand.u32 %v3703, 4294901760
        %v3998 = vsub.f32 %v3703, %v3997
        %v3999 = vand.u32 %v3998, 4294901760
        %4000 = vmatmul.mubr.f32.gmra.mrb[0].mxu0 %v3999
        %v4001 = vpop.f32.mrb[0].mxu0
        %v4002 = vadd.f32 %v3928, %v4001
        %v4003 = vpop.f32.mrb[0].mxu0
        %4004 = vdwg.mxu0
        %4005 = vmatprep.subr.mxu0 0.0
        %v4006 = vand.u32 %v3700, 4294901760
        %v4007 = vsub.f32 %v3700, %v4006
        %v4008 = vand.u32 %v4007, 4294901760
        %4009 = vmatpush1.msra.mxu0 %v4008
        %4010 = vmatprep.subr.mxu0 0.0
        %4011 = vmatpush1.msra.mxu0 0.0
        %4012 = vmatprep.subr.mxu0 0.0
        %4013 = vmatpush1.msra.mxu0 0.0
        %4014 = vmatprep.subr.mxu0 0.0
        %4015 = vmatpush1.msra.mxu0 0.0
        %4016 = vmatprep.subr.mxu0 0.0
        %4017 = vmatpush1.msra.mxu0 0.0
        %4018 = vmatprep.subr.mxu0 0.0
        %4019 = vmatpush1.msra.mxu0 0.0
        %4020 = vmatprep.subr.mxu0 0.0
        %4021 = vmatpush1.msra.mxu0 0.0
        %4022 = vmatprep.subr.mxu0 0.0
        %4023 = vmatpush1.msra.mxu0 0.0
        %4024 = vmatprep.subr.mxu0 0.0
        %4025 = vmatpush1.msra.mxu0 0.0
        %4026 = vmatprep.subr.mxu0 0.0
        %4027 = vmatpush1.msra.mxu0 0.0
        %4028 = vmatprep.subr.mxu0 0.0
        %4029 = vmatpush1.msra.mxu0 0.0
        %4030 = vmatprep.subr.mxu0 0.0
        %4031 = vmatpush1.msra.mxu0 0.0
        %4032 = vmatprep.subr.mxu0 0.0
        %4033 = vmatpush1.msra.mxu0 0.0
        %4034 = vmatprep.subr.mxu0 0.0
        %4035 = vmatpush1.msra.mxu0 0.0
        %4036 = vmatprep.subr.mxu0 0.0
        %4037 = vmatpush1.msra.mxu0 0.0
        %4038 = vmatprep.subr.mxu0 0.0
        %4039 = vmatpush1.msra.mxu0 0.0
        %4040 = vmatprep.subr.mxu0 0.0
        %4041 = vmatpush1.msra.mxu0 0.0
        %4042 = vmatprep.subr.mxu0 0.0
        %4043 = vmatpush1.msra.mxu0 0.0
        %4044 = vmatprep.subr.mxu0 0.0
        %4045 = vmatpush1.msra.mxu0 0.0
        %4046 = vmatprep.subr.mxu0 0.0
        %4047 = vmatpush1.msra.mxu0 0.0
        %4048 = vmatprep.subr.mxu0 0.0
        %4049 = vmatpush1.msra.mxu0 0.0
        %4050 = vmatprep.subr.mxu0 0.0
        %4051 = vmatpush1.msra.mxu0 0.0
        %4052 = vmatprep.subr.mxu0 0.0
        %4053 = vmatpush1.msra.mxu0 0.0
        %4054 = vmatprep.subr.mxu0 0.0
        %4055 = vmatpush1.msra.mxu0 0.0
        %4056 = vmatprep.subr.mxu0 0.0
        %4057 = vmatpush1.msra.mxu0 0.0
        %4058 = vmatprep.subr.mxu0 0.0
        %4059 = vmatpush1.msra.mxu0 0.0
        %4060 = vmatprep.subr.mxu0 0.0
        %4061 = vmatpush1.msra.mxu0 0.0
        %4062 = vmatprep.subr.mxu0 0.0
        %4063 = vmatpush1.msra.mxu0 0.0
        %4064 = vmatprep.subr.mxu0 0.0
        %4065 = vmatpush1.msra.mxu0 0.0
        %4066 = vmatprep.subr.mxu0 0.0
        %4067 = vmatpush1.msra.mxu0 0.0
        %4068 = vmatprep.subr.mxu0 0.0
        %4069 = vmatpush1.msra.mxu0 0.0
        %4070 = vmatprep.subr.mxu0 0.0
        %4071 = vmatpush1.msra.mxu0 0.0
        %4072 = vmatprep.mubr.f32.mxu0 0.0
        %v4073 = vand.u32 %v3703, 4294901760
        %4074 = vmatmul.mubr.f32.gmra.mrb[0].mxu0 %v4073
        %v4075 = vpop.f32.mrb[0].mxu0
        %v4076 = vadd.f32 %v4002, %v4075
        %v4077 = vpop.f32.mrb[0].mxu0
        %4078 = vdwg.mxu0
        %4079 = vmatprep.subr.mxu0 0.0
        %v4080 = vand.u32 %v3700, 4294901760
        %4081 = vmatpush1.msra.mxu0 %v4080
        %4082 = vmatprep.subr.mxu0 0.0
        %4083 = vmatpush1.msra.mxu0 0.0
        %4084 = vmatprep.subr.mxu0 0.0
        %4085 = vmatpush1.msra.mxu0 0.0
        %4086 = vmatprep.subr.mxu0 0.0
        %4087 = vmatpush1.msra.mxu0 0.0
        %4088 = vmatprep.subr.mxu0 0.0
        %4089 = vmatpush1.msra.mxu0 0.0
        %4090 = vmatprep.subr.mxu0 0.0
        %4091 = vmatpush1.msra.mxu0 0.0
        %4092 = vmatprep.subr.mxu0 0.0
        %4093 = vmatpush1.msra.mxu0 0.0
        %4094 = vmatprep.subr.mxu0 0.0
        %4095 = vmatpush1.msra.mxu0 0.0
        %4096 = vmatprep.subr.mxu0 0.0
        %4097 = vmatpush1.msra.mxu0 0.0
        %4098 = vmatprep.subr.mxu0 0.0
        %4099 = vmatpush1.msra.mxu0 0.0
        %4100 = vmatprep.subr.mxu0 0.0
        %4101 = vmatpush1.msra.mxu0 0.0
        %4102 = vmatprep.subr.mxu0 0.0
        %4103 = vmatpush1.msra.mxu0 0.0
        %4104 = vmatprep.subr.mxu0 0.0
        %4105 = vmatpush1.msra.mxu0 0.0
        %4106 = vmatprep.subr.mxu0 0.0
        %4107 = vmatpush1.msra.mxu0 0.0
        %4108 = vmatprep.subr.mxu0 0.0
        %4109 = vmatpush1.msra.mxu0 0.0
        %4110 = vmatprep.subr.mxu0 0.0
        %4111 = vmatpush1.msra.mxu0 0.0
        %4112 = vmatprep.subr.mxu0 0.0
        %4113 = vmatpush1.msra.mxu0 0.0
        %4114 = vmatprep.subr.mxu0 0.0
        %4115 = vmatpush1.msra.mxu0 0.0
        %4116 = vmatprep.subr.mxu0 0.0
        %4117 = vmatpush1.msra.mxu0 0.0
        %4118 = vmatprep.subr.mxu0 0.0
        %4119 = vmatpush1.msra.mxu0 0.0
        %4120 = vmatprep.subr.mxu0 0.0
        %4121 = vmatpush1.msra.mxu0 0.0
        %4122 = vmatprep.subr.mxu0 0.0
        %4123 = vmatpush1.msra.mxu0 0.0
        %4124 = vmatprep.subr.mxu0 0.0
        %4125 = vmatpush1.msra.mxu0 0.0
        %4126 = vmatprep.subr.mxu0 0.0
        %4127 = vmatpush1.msra.mxu0 0.0
        %4128 = vmatprep.subr.mxu0 0.0
        %4129 = vmatpush1.msra.mxu0 0.0
        %4130 = vmatprep.subr.mxu0 0.0
        %4131 = vmatpush1.msra.mxu0 0.0
        %4132 = vmatprep.subr.mxu0 0.0
        %4133 = vmatpush1.msra.mxu0 0.0
        %4134 = vmatprep.subr.mxu0 0.0
        %4135 = vmatpush1.msra.mxu0 0.0
        %4136 = vmatprep.subr.mxu0 0.0
        %4137 = vmatpush1.msra.mxu0 0.0
        %4138 = vmatprep.subr.mxu0 0.0
        %4139 = vmatpush1.msra.mxu0 0.0
        %4140 = vmatprep.subr.mxu0 0.0
        %4141 = vmatpush1.msra.mxu0 0.0
        %4142 = vmatprep.subr.mxu0 0.0
        %4143 = vmatpush1.msra.mxu0 0.0
        %4144 = vmatprep.mubr.f32.mxu0 0.0
        %v4145 = vand.u32 %v3703, 4294901760
        %4146 = vmatmul.mubr.f32.gmra.mrb[0].mxu0 %v4145
        %v4147 = vpop.f32.mrb[0].mxu0
        %v4148 = vadd.f32 %v4076, %v4147
        %v4149 = vpop.f32.mrb[0].mxu0
        %4150 = vdwg.mxu0
        %4151 = vrot.lane.b32.xlu0 %v820, 32
        %v4152 = vpop.permute.xlu0 %4151
        %v4155 = vsel %vm2744, %v2792, 0
        %4157 = vmatprep.subr.mxu0 0.0
        %v4158 = vand.u32 %v4152, 4294901760
        %4159 = vmatpush1.msra.mxu0 %v4158
        %4160 = vmatprep.subr.mxu0 0.0
        %4161 = vmatpush1.msra.mxu0 0.0
        %4162 = vmatprep.subr.mxu0 0.0
        %4163 = vmatpush1.msra.mxu0 0.0
        %4164 = vmatprep.subr.mxu0 0.0
        %4165 = vmatpush1.msra.mxu0 0.0
        %4166 = vmatprep.subr.mxu0 0.0
        %4167 = vmatpush1.msra.mxu0 0.0
        %4168 = vmatprep.subr.mxu0 0.0
        %4169 = vmatpush1.msra.mxu0 0.0
        %4170 = vmatprep.subr.mxu0 0.0
        %4171 = vmatpush1.msra.mxu0 0.0
        %4172 = vmatprep.subr.mxu0 0.0
        %4173 = vmatpush1.msra.mxu0 0.0
        %4174 = vmatprep.subr.mxu0 0.0
        %4175 = vmatpush1.msra.mxu0 0.0
        %4176 = vmatprep.subr.mxu0 0.0
        %4177 = vmatpush1.msra.mxu0 0.0
        %4178 = vmatprep.subr.mxu0 0.0
        %4179 = vmatpush1.msra.mxu0 0.0
        %4180 = vmatprep.subr.mxu0 0.0
        %4181 = vmatpush1.msra.mxu0 0.0
        %4182 = vmatprep.subr.mxu0 0.0
        %4183 = vmatpush1.msra.mxu0 0.0
        %4184 = vmatprep.subr.mxu0 0.0
        %4185 = vmatpush1.msra.mxu0 0.0
        %4186 = vmatprep.subr.mxu0 0.0
        %4187 = vmatpush1.msra.mxu0 0.0
        %4188 = vmatprep.subr.mxu0 0.0
        %4189 = vmatpush1.msra.mxu0 0.0
        %4190 = vmatprep.subr.mxu0 0.0
        %4191 = vmatpush1.msra.mxu0 0.0
        %4192 = vmatprep.subr.mxu0 0.0
        %4193 = vmatpush1.msra.mxu0 0.0
        %4194 = vmatprep.subr.mxu0 0.0
        %4195 = vmatpush1.msra.mxu0 0.0
        %4196 = vmatprep.subr.mxu0 0.0
        %4197 = vmatpush1.msra.mxu0 0.0
        %4198 = vmatprep.subr.mxu0 0.0
        %4199 = vmatpush1.msra.mxu0 0.0
        %4200 = vmatprep.subr.mxu0 0.0
        %4201 = vmatpush1.msra.mxu0 0.0
        %4202 = vmatprep.subr.mxu0 0.0
        %4203 = vmatpush1.msra.mxu0 0.0
        %4204 = vmatprep.subr.mxu0 0.0
        %4205 = vmatpush1.msra.mxu0 0.0
        %4206 = vmatprep.subr.mxu0 0.0
        %4207 = vmatpush1.msra.mxu0 0.0
        %4208 = vmatprep.subr.mxu0 0.0
        %4209 = vmatpush1.msra.mxu0 0.0
        %4210 = vmatprep.subr.mxu0 0.0
        %4211 = vmatpush1.msra.mxu0 0.0
        %4212 = vmatprep.subr.mxu0 0.0
        %4213 = vmatpush1.msra.mxu0 0.0
        %4214 = vmatprep.subr.mxu0 0.0
        %4215 = vmatpush1.msra.mxu0 0.0
        %4216 = vmatprep.subr.mxu0 0.0
        %4217 = vmatpush1.msra.mxu0 0.0
        %4218 = vmatprep.subr.mxu0 0.0
        %4219 = vmatpush1.msra.mxu0 0.0
        %4220 = vmatprep.subr.mxu0 0.0
        %4221 = vmatpush1.msra.mxu0 0.0
        %4222 = vmatprep.mubr.f32.mxu0 0.0
        %v4223 = vand.u32 %v4155, 4294901760
        %v4224 = vsub.f32 %v4155, %v4223
        %v4225 = vand.u32 %v4224, 4294901760
        %v4226 = vsub.f32 %v4224, %v4225
        %v4227 = vand.u32 %v4226, 4294901760
        %4228 = vmatmul.mubr.f32.gmra.mrb[0].mxu0 %v4227
        %v4229 = vpop.f32.mrb[0].mxu0
        %v4230 = vadd.f32 0.0, %v4229
        %v4231 = vpop.f32.mrb[0].mxu0
        %4232 = vdwg.mxu0
        %4233 = vmatprep.subr.mxu0 0.0
        %v4234 = vand.u32 %v4152, 4294901760
        %v4235 = vsub.f32 %v4152, %v4234
        %v4236 = vand.u32 %v4235, 4294901760
        %v4237 = vsub.f32 %v4235, %v4236
        %v4238 = vand.u32 %v4237, 4294901760
        %4239 = vmatpush1.msra.mxu0 %v4238
        %4240 = vmatprep.subr.mxu0 0.0
        %4241 = vmatpush1.msra.mxu0 0.0
        %4242 = vmatprep.subr.mxu0 0.0
        %4243 = vmatpush1.msra.mxu0 0.0
        %4244 = vmatprep.subr.mxu0 0.0
        %4245 = vmatpush1.msra.mxu0 0.0
        %4246 = vmatprep.subr.mxu0 0.0
        %4247 = vmatpush1.msra.mxu0 0.0
        %4248 = vmatprep.subr.mxu0 0.0
        %4249 = vmatpush1.msra.mxu0 0.0
        %4250 = vmatprep.subr.mxu0 0.0
        %4251 = vmatpush1.msra.mxu0 0.0
        %4252 = vmatprep.subr.mxu0 0.0
        %4253 = vmatpush1.msra.mxu0 0.0
        %4254 = vmatprep.subr.mxu0 0.0
        %4255 = vmatpush1.msra.mxu0 0.0
        %4256 = vmatprep.subr.mxu0 0.0
        %4257 = vmatpush1.msra.mxu0 0.0
        %4258 = vmatprep.subr.mxu0 0.0
        %4259 = vmatpush1.msra.mxu0 0.0
        %4260 = vmatprep.subr.mxu0 0.0
        %4261 = vmatpush1.msra.mxu0 0.0
        %4262 = vmatprep.subr.mxu0 0.0
        %4263 = vmatpush1.msra.mxu0 0.0
        %4264 = vmatprep.subr.mxu0 0.0
        %4265 = vmatpush1.msra.mxu0 0.0
        %4266 = vmatprep.subr.mxu0 0.0
        %4267 = vmatpush1.msra.mxu0 0.0
        %4268 = vmatprep.subr.mxu0 0.0
        %4269 = vmatpush1.msra.mxu0 0.0
        %4270 = vmatprep.subr.mxu0 0.0
        %4271 = vmatpush1.msra.mxu0 0.0
        %4272 = vmatprep.subr.mxu0 0.0
        %4273 = vmatpush1.msra.mxu0 0.0
        %4274 = vmatprep.subr.mxu0 0.0
        %4275 = vmatpush1.msra.mxu0 0.0
        %4276 = vmatprep.subr.mxu0 0.0
        %4277 = vmatpush1.msra.mxu0 0.0
        %4278 = vmatprep.subr.mxu0 0.0
        %4279 = vmatpush1.msra.mxu0 0.0
        %4280 = vmatprep.subr.mxu0 0.0
        %4281 = vmatpush1.msra.mxu0 0.0
        %4282 = vmatprep.subr.mxu0 0.0
        %4283 = vmatpush1.msra.mxu0 0.0
        %4284 = vmatprep.subr.mxu0 0.0
        %4285 = vmatpush1.msra.mxu0 0.0
        %4286 = vmatprep.subr.mxu0 0.0
        %4287 = vmatpush1.msra.mxu0 0.0
        %4288 = vmatprep.subr.mxu0 0.0
        %4289 = vmatpush1.msra.mxu0 0.0
        %4290 = vmatprep.subr.mxu0 0.0
        %4291 = vmatpush1.msra.mxu0 0.0
        %4292 = vmatprep.subr.mxu0 0.0
        %4293 = vmatpush1.msra.mxu0 0.0
        %4294 = vmatprep.subr.mxu0 0.0
        %4295 = vmatpush1.msra.mxu0 0.0
        %4296 = vmatprep.subr.mxu0 0.0
        %4297 = vmatpush1.msra.mxu0 0.0
        %4298 = vmatprep.subr.mxu0 0.0
        %4299 = vmatpush1.msra.mxu0 0.0
        %4300 = vmatprep.subr.mxu0 0.0
        %4301 = vmatpush1.msra.mxu0 0.0
        %4302 = vmatprep.mubr.f32.mxu0 0.0
        %v4303 = vand.u32 %v4155, 4294901760
        %4304 = vmatmul.mubr.f32.gmra.mrb[0].mxu0 %v4303
        %v4305 = vpop.f32.mrb[0].mxu0
        %v4306 = vadd.f32 %v4230, %v4305
        %v4307 = vpop.f32.mrb[0].mxu0
        %4308 = vdwg.mxu0
        %4309 = vmatprep.subr.mxu0 0.0
        %v4310 = vand.u32 %v4152, 4294901760
        %v4311 = vsub.f32 %v4152, %v4310
        %4312 = vmatpush1.msra.mxu0 %v4311
        %4313 = vmatprep.subr.mxu0 0.0
        %4314 = vmatpush1.msra.mxu0 0.0
        %4315 = vmatprep.subr.mxu0 0.0
        %4316 = vmatpush1.msra.mxu0 0.0
        %4317 = vmatprep.subr.mxu0 0.0
        %4318 = vmatpush1.msra.mxu0 0.0
        %4319 = vmatprep.subr.mxu0 0.0
        %4320 = vmatpush1.msra.mxu0 0.0
        %4321 = vmatprep.subr.mxu0 0.0
        %4322 = vmatpush1.msra.mxu0 0.0
        %4323 = vmatprep.subr.mxu0 0.0
        %4324 = vmatpush1.msra.mxu0 0.0
        %4325 = vmatprep.subr.mxu0 0.0
        %4326 = vmatpush1.msra.mxu0 0.0
        %4327 = vmatprep.subr.mxu0 0.0
        %4328 = vmatpush1.msra.mxu0 0.0
        %4329 = vmatprep.subr.mxu0 0.0
        %4330 = vmatpush1.msra.mxu0 0.0
        %4331 = vmatprep.subr.mxu0 0.0
        %4332 = vmatpush1.msra.mxu0 0.0
        %4333 = vmatprep.subr.mxu0 0.0
        %4334 = vmatpush1.msra.mxu0 0.0
        %4335 = vmatprep.subr.mxu0 0.0
        %4336 = vmatpush1.msra.mxu0 0.0
        %4337 = vmatprep.subr.mxu0 0.0
        %4338 = vmatpush1.msra.mxu0 0.0
        %4339 = vmatprep.subr.mxu0 0.0
        %4340 = vmatpush1.msra.mxu0 0.0
        %4341 = vmatprep.subr.mxu0 0.0
        %4342 = vmatpush1.msra.mxu0 0.0
        %4343 = vmatprep.subr.mxu0 0.0
        %4344 = vmatpush1.msra.mxu0 0.0
        %4345 = vmatprep.subr.mxu0 0.0
        %4346 = vmatpush1.msra.mxu0 0.0
        %4347 = vmatprep.subr.mxu0 0.0
        %4348 = vmatpush1.msra.mxu0 0.0
        %4349 = vmatprep.subr.mxu0 0.0
        %4350 = vmatpush1.msra.mxu0 0.0
        %4351 = vmatprep.subr.mxu0 0.0
        %4352 = vmatpush1.msra.mxu0 0.0
        %4353 = vmatprep.subr.mxu0 0.0
        %4354 = vmatpush1.msra.mxu0 0.0
        %4355 = vmatprep.subr.mxu0 0.0
        %4356 = vmatpush1.msra.mxu0 0.0
        %4357 = vmatprep.subr.mxu0 0.0
        %4358 = vmatpush1.msra.mxu0 0.0
        %4359 = vmatprep.subr.mxu0 0.0
        %4360 = vmatpush1.msra.mxu0 0.0
        %4361 = vmatprep.subr.mxu0 0.0
        %4362 = vmatpush1.msra.mxu0 0.0
        %4363 = vmatprep.subr.mxu0 0.0
        %4364 = vmatpush1.msra.mxu0 0.0
        %4365 = vmatprep.subr.mxu0 0.0
        %4366 = vmatpush1.msra.mxu0 0.0
        %4367 = vmatprep.subr.mxu0 0.0
        %4368 = vmatpush1.msra.mxu0 0.0
        %4369 = vmatprep.subr.mxu0 0.0
        %4370 = vmatpush1.msra.mxu0 0.0
        %4371 = vmatprep.subr.mxu0 0.0
        %4372 = vmatpush1.msra.mxu0 0.0
        %4373 = vmatprep.subr.mxu0 0.0
        %4374 = vmatpush1.msra.mxu0 0.0
        %4375 = vmatprep.mubr.f32.mxu0 0.0
        %v4376 = vand.u32 %v4155, 4294901760
        %v4377 = vsub.f32 %v4155, %v4376
        %4378 = vmatmul.mubr.f32.gmra.mrb[0].mxu0 %v4377
        %v4379 = vpop.f32.mrb[0].mxu0
        %v4380 = vadd.f32 %v4306, %v4379
        %v4381 = vpop.f32.mrb[0].mxu0
        %4382 = vdwg.mxu0
        %4383 = vmatprep.subr.mxu0 0.0
        %v4384 = vand.u32 %v4152, 4294901760
        %4385 = vmatpush1.msra.mxu0 %v4384
        %4386 = vmatprep.subr.mxu0 0.0
        %4387 = vmatpush1.msra.mxu0 0.0
        %4388 = vmatprep.subr.mxu0 0.0
        %4389 = vmatpush1.msra.mxu0 0.0
        %4390 = vmatprep.subr.mxu0 0.0
        %4391 = vmatpush1.msra.mxu0 0.0
        %4392 = vmatprep.subr.mxu0 0.0
        %4393 = vmatpush1.msra.mxu0 0.0
        %4394 = vmatprep.subr.mxu0 0.0
        %4395 = vmatpush1.msra.mxu0 0.0
        %4396 = vmatprep.subr.mxu0 0.0
        %4397 = vmatpush1.msra.mxu0 0.0
        %4398 = vmatprep.subr.mxu0 0.0
        %4399 = vmatpush1.msra.mxu0 0.0
        %4400 = vmatprep.subr.mxu0 0.0
        %4401 = vmatpush1.msra.mxu0 0.0
        %4402 = vmatprep.subr.mxu0 0.0
        %4403 = vmatpush1.msra.mxu0 0.0
        %4404 = vmatprep.subr.mxu0 0.0
        %4405 = vmatpush1.msra.mxu0 0.0
        %4406 = vmatprep.subr.mxu0 0.0
        %4407 = vmatpush1.msra.mxu0 0.0
        %4408 = vmatprep.subr.mxu0 0.0
        %4409 = vmatpush1.msra.mxu0 0.0
        %4410 = vmatprep.subr.mxu0 0.0
        %4411 = vmatpush1.msra.mxu0 0.0
        %4412 = vmatprep.subr.mxu0 0.0
        %4413 = vmatpush1.msra.mxu0 0.0
        %4414 = vmatprep.subr.mxu0 0.0
        %4415 = vmatpush1.msra.mxu0 0.0
        %4416 = vmatprep.subr.mxu0 0.0
        %4417 = vmatpush1.msra.mxu0 0.0
        %4418 = vmatprep.subr.mxu0 0.0
        %4419 = vmatpush1.msra.mxu0 0.0
        %4420 = vmatprep.subr.mxu0 0.0
        %4421 = vmatpush1.msra.mxu0 0.0
        %4422 = vmatprep.subr.mxu0 0.0
        %4423 = vmatpush1.msra.mxu0 0.0
        %4424 = vmatprep.subr.mxu0 0.0
        %4425 = vmatpush1.msra.mxu0 0.0
        %4426 = vmatprep.subr.mxu0 0.0
        %4427 = vmatpush1.msra.mxu0 0.0
        %4428 = vmatprep.subr.mxu0 0.0
        %4429 = vmatpush1.msra.mxu0 0.0
        %4430 = vmatprep.subr.mxu0 0.0
        %4431 = vmatpush1.msra.mxu0 0.0
        %4432 = vmatprep.subr.mxu0 0.0
        %4433 = vmatpush1.msra.mxu0 0.0
        %4434 = vmatprep.subr.mxu0 0.0
        %4435 = vmatpush1.msra.mxu0 0.0
        %4436 = vmatprep.subr.mxu0 0.0
        %4437 = vmatpush1.msra.mxu0 0.0
        %4438 = vmatprep.subr.mxu0 0.0
        %4439 = vmatpush1.msra.mxu0 0.0
        %4440 = vmatprep.subr.mxu0 0.0
        %4441 = vmatpush1.msra.mxu0 0.0
        %4442 = vmatprep.subr.mxu0 0.0
        %4443 = vmatpush1.msra.mxu0 0.0
        %4444 = vmatprep.subr.mxu0 0.0
        %4445 = vmatpush1.msra.mxu0 0.0
        %4446 = vmatprep.subr.mxu0 0.0
        %4447 = vmatpush1.msra.mxu0 0.0
        %4448 = vmatprep.mubr.f32.mxu0 0.0
        %v4449 = vand.u32 %v4155, 4294901760
        %v4450 = vsub.f32 %v4155, %v4449
        %v4451 = vand.u32 %v4450, 4294901760
        %4452 = vmatmul.mubr.f32.gmra.mrb[0].mxu0 %v4451
        %v4453 = vpop.f32.mrb[0].mxu0
        %v4454 = vadd.f32 %v4380, %v4453
        %v4455 = vpop.f32.mrb[0].mxu0
        %4456 = vdwg.mxu0
        %4457 = vmatprep.subr.mxu0 0.0
        %v4458 = vand.u32 %v4152, 4294901760
        %v4459 = vsub.f32 %v4152, %v4458
        %v4460 = vand.u32 %v4459, 4294901760
        %4461 = vmatpush1.msra.mxu0 %v4460
        %4462 = vmatprep.subr.mxu0 0.0
        %4463 = vmatpush1.msra.mxu0 0.0
        %4464 = vmatprep.subr.mxu0 0.0
        %4465 = vmatpush1.msra.mxu0 0.0
        %4466 = vmatprep.subr.mxu0 0.0
        %4467 = vmatpush1.msra.mxu0 0.0
        %4468 = vmatprep.subr.mxu0 0.0
        %4469 = vmatpush1.msra.mxu0 0.0
        %4470 = vmatprep.subr.mxu0 0.0
        %4471 = vmatpush1.msra.mxu0 0.0
        %4472 = vmatprep.subr.mxu0 0.0
        %4473 = vmatpush1.msra.mxu0 0.0
        %4474 = vmatprep.subr.mxu0 0.0
        %4475 = vmatpush1.msra.mxu0 0.0
        %4476 = vmatprep.subr.mxu0 0.0
        %4477 = vmatpush1.msra.mxu0 0.0
        %4478 = vmatprep.subr.mxu0 0.0
        %4479 = vmatpush1.msra.mxu0 0.0
        %4480 = vmatprep.subr.mxu0 0.0
        %4481 = vmatpush1.msra.mxu0 0.0
        %4482 = vmatprep.subr.mxu0 0.0
        %4483 = vmatpush1.msra.mxu0 0.0
        %4484 = vmatprep.subr.mxu0 0.0
        %4485 = vmatpush1.msra.mxu0 0.0
        %4486 = vmatprep.subr.mxu0 0.0
        %4487 = vmatpush1.msra.mxu0 0.0
        %4488 = vmatprep.subr.mxu0 0.0
        %4489 = vmatpush1.msra.mxu0 0.0
        %4490 = vmatprep.subr.mxu0 0.0
        %4491 = vmatpush1.msra.mxu0 0.0
        %4492 = vmatprep.subr.mxu0 0.0
        %4493 = vmatpush1.msra.mxu0 0.0
        %4494 = vmatprep.subr.mxu0 0.0
        %4495 = vmatpush1.msra.mxu0 0.0
        %4496 = vmatprep.subr.mxu0 0.0
        %4497 = vmatpush1.msra.mxu0 0.0
        %4498 = vmatprep.subr.mxu0 0.0
        %4499 = vmatpush1.msra.mxu0 0.0
        %4500 = vmatprep.subr.mxu0 0.0
        %4501 = vmatpush1.msra.mxu0 0.0
        %4502 = vmatprep.subr.mxu0 0.0
        %4503 = vmatpush1.msra.mxu0 0.0
        %4504 = vmatprep.subr.mxu0 0.0
        %4505 = vmatpush1.msra.mxu0 0.0
        %4506 = vmatprep.subr.mxu0 0.0
        %4507 = vmatpush1.msra.mxu0 0.0
        %4508 = vmatprep.subr.mxu0 0.0
        %4509 = vmatpush1.msra.mxu0 0.0
        %4510 = vmatprep.subr.mxu0 0.0
        %4511 = vmatpush1.msra.mxu0 0.0
        %4512 = vmatprep.subr.mxu0 0.0
        %4513 = vmatpush1.msra.mxu0 0.0
        %4514 = vmatprep.subr.mxu0 0.0
        %4515 = vmatpush1.msra.mxu0 0.0
        %4516 = vmatprep.subr.mxu0 0.0
        %4517 = vmatpush1.msra.mxu0 0.0
        %4518 = vmatprep.subr.mxu0 0.0
        %4519 = vmatpush1.msra.mxu0 0.0
        %4520 = vmatprep.subr.mxu0 0.0
        %4521 = vmatpush1.msra.mxu0 0.0
        %4522 = vmatprep.subr.mxu0 0.0
        %4523 = vmatpush1.msra.mxu0 0.0
        %4524 = vmatprep.mubr.f32.mxu0 0.0
        %v4525 = vand.u32 %v4155, 4294901760
        %4526 = vmatmul.mubr.f32.gmra.mrb[0].mxu0 %v4525
        %v4527 = vpop.f32.mrb[0].mxu0
        %v4528 = vadd.f32 %v4454, %v4527
        %v4529 = vpop.f32.mrb[0].mxu0
        %4530 = vdwg.mxu0
        %4531 = vmatprep.subr.mxu0 0.0
        %v4532 = vand.u32 %v4152, 4294901760
        %4533 = vmatpush1.msra.mxu0 %v4532
        %4534 = vmatprep.subr.mxu0 0.0
        %4535 = vmatpush1.msra.mxu0 0.0
        %4536 = vmatprep.subr.mxu0 0.0
        %4537 = vmatpush1.msra.mxu0 0.0
        %4538 = vmatprep.subr.mxu0 0.0
        %4539 = vmatpush1.msra.mxu0 0.0
        %4540 = vmatprep.subr.mxu0 0.0
        %4541 = vmatpush1.msra.mxu0 0.0
        %4542 = vmatprep.subr.mxu0 0.0
        %4543 = vmatpush1.msra.mxu0 0.0
        %4544 = vmatprep.subr.mxu0 0.0
        %4545 = vmatpush1.msra.mxu0 0.0
        %4546 = vmatprep.subr.mxu0 0.0
        %4547 = vmatpush1.msra.mxu0 0.0
        %4548 = vmatprep.subr.mxu0 0.0
        %4549 = vmatpush1.msra.mxu0 0.0
        %4550 = vmatprep.subr.mxu0 0.0
        %4551 = vmatpush1.msra.mxu0 0.0
        %4552 = vmatprep.subr.mxu0 0.0
        %4553 = vmatpush1.msra.mxu0 0.0
        %4554 = vmatprep.subr.mxu0 0.0
        %4555 = vmatpush1.msra.mxu0 0.0
        %4556 = vmatprep.subr.mxu0 0.0
        %4557 = vmatpush1.msra.mxu0 0.0
        %4558 = vmatprep.subr.mxu0 0.0
        %4559 = vmatpush1.msra.mxu0 0.0
        %4560 = vmatprep.subr.mxu0 0.0
        %4561 = vmatpush1.msra.mxu0 0.0
        %4562 = vmatprep.subr.mxu0 0.0
        %4563 = vmatpush1.msra.mxu0 0.0
        %4564 = vmatprep.subr.mxu0 0.0
        %4565 = vmatpush1.msra.mxu0 0.0
        %4566 = vmatprep.subr.mxu0 0.0
        %4567 = vmatpush1.msra.mxu0 0.0
        %4568 = vmatprep.subr.mxu0 0.0
        %4569 = vmatpush1.msra.mxu0 0.0
        %4570 = vmatprep.subr.mxu0 0.0
        %4571 = vmatpush1.msra.mxu0 0.0
        %4572 = vmatprep.subr.mxu0 0.0
        %4573 = vmatpush1.msra.mxu0 0.0
        %4574 = vmatprep.subr.mxu0 0.0
        %4575 = vmatpush1.msra.mxu0 0.0
        %4576 = vmatprep.subr.mxu0 0.0
        %4577 = vmatpush1.msra.mxu0 0.0
        %4578 = vmatprep.subr.mxu0 0.0
        %4579 = vmatpush1.msra.mxu0 0.0
        %4580 = vmatprep.subr.mxu0 0.0
        %4581 = vmatpush1.msra.mxu0 0.0
        %4582 = vmatprep.subr.mxu0 0.0
        %4583 = vmatpush1.msra.mxu0 0.0
        %4584 = vmatprep.subr.mxu0 0.0
        %4585 = vmatpush1.msra.mxu0 0.0
        %4586 = vmatprep.subr.mxu0 0.0
        %4587 = vmatpush1.msra.mxu0 0.0
        %4588 = vmatprep.subr.mxu0 0.0
        %4589 = vmatpush1.msra.mxu0 0.0
        %4590 = vmatprep.subr.mxu0 0.0
        %4591 = vmatpush1.msra.mxu0 0.0
        %4592 = vmatprep.subr.mxu0 0.0
        %4593 = vmatpush1.msra.mxu0 0.0
        %4594 = vmatprep.subr.mxu0 0.0
        %4595 = vmatpush1.msra.mxu0 0.0
        %4596 = vmatprep.mubr.f32.mxu0 0.0
        %v4597 = vand.u32 %v4155, 4294901760
        %4598 = vmatmul.mubr.f32.gmra.mrb[0].mxu0 %v4597
        %v4599 = vpop.f32.mrb[0].mxu0
        %v4600 = vadd.f32 %v4528, %v4599
        %v4601 = vpop.f32.mrb[0].mxu0
        %4602 = vdwg.mxu0
        %4604 = vrot.lane.b32.xlu0 %v3696, 32
        %v4605 = vpop.permute.xlu0 %4604
        %4608 = vrot.lane.b32.xlu0 %v4148, 64
        %v4609 = vpop.permute.xlu0 %4608
        %4612 = vrot.lane.b32.xlu0 %v4600, 96
        %v4613 = vpop.permute.xlu0 %4612
        %vm4615 = vcmask 261120
        %v4616 = vsel %vm4615, %v3243, %v4605
        %vm4617 = vcmask 523264
        %v4618 = vsel %vm4617, %v4616, %v4609
        %vm4619 = vcmask 785408
        %v4620 = vsel %vm4619, %v4618, %v4613
        %v4621 = vld [vmem:[%s5] sm:$0x1]
        %v4623 = vlaneseq
        %v4624 = vshrl.u32 %v4623, 7
        %v4625 = vsub.s32 0, %v4624
        %v4626 = vrot.slane %v4621, %v4625
        %v4628 = vadd.f32 %v4620, %v4626
        %4629 = vst [vmem:[%s331] sm:$0xff] %v4628
        %s4630 = sand.u32 %s192, 1
        %s4631 = scalar_lea.sflag [#allocation3], %s4630
        %s4632 = sand.u32 %s192, 1
        %s4633 = smul.addr %s4632, 8
        %s4634 = scalar_lea.vmem [#allocation2], %s4633
        %s4635 = sand.u32 %s220, 1
        %s4636 = scalar_lea.sflag [#allocation5], %s4635
        %s4637 = sand.u32 %s220, 1
        %s4638 = smul.addr %s4637, 32
        %s4639 = scalar_lea.vmem [#allocation4], %s4638
        // Predicated region
        $region45: #{tpu_custom_call.1} parent=43 // pred_check
          %p4640 = pneg %p202
        $region46: #{tpu_custom_call.1} parent=43 // pred_check_branch
          %4642 = sbr.rel (%p4640) target = $region48
        $region47: #{tpu_custom_call.1} parent=43 // pred_region
          %s4644 = ssub.s32 128, 128
          %4645 = vsyncadd %s4631, %s4644
          %s4646 = sadd.s32 %s30, %s29
          %s4647 = smul.addr %s4646, 128
          %s4648 = scalar_lea.hbm %s6, %s4647
          %s4650 = sshll.u32 %s4634, 4
          %s4651 = int_to_ptr.vmem [resolvable:$true] %s4650
          %4653 = dma.vmem_to_hbm [thread:$0]  %s4651, 128, %s4648, %s4631
        $region48: #{tpu_custom_call.1} parent=43 // pred_fallthru
          _
        // Predicated region
        $region49: #{tpu_custom_call.1} parent=43 // pred_check
          %p4654 = pneg %p230
        $region50: #{tpu_custom_call.1} parent=43 // pred_check_branch
          %4656 = sbr.rel (%p4654) target = $region52
        $region51: #{tpu_custom_call.1} parent=43 // pred_region
          %s4658 = ssub.s32 512, 512
          %4659 = vsyncadd %s4636, %s4658
          %s4660 = smul.addr %s29, 4
          %s4661 = sadd.s32 %s30, %s4660
          %s4662 = smul.addr %s4661, 128
          %s4663 = scalar_lea.hbm %s7, %s4662
          %s4664 = sshll.u32 %s4639, 4
          %s4665 = int_to_ptr.vmem [resolvable:$true] %s4664
          %4670 = dma.vmem_to_hbm [thread:$0]  %s4665, 512, %s4663, %s4636, 128, 128, 8
        $region52: #{tpu_custom_call.1} parent=43 // pred_fallthru
          _
      $region44: #{tpu_custom_call.1} parent=5 // pred_fallthru
        _
      %p4671 = scmp.le.s32.totalorder 2, %s20
      // Predicated region
      $region53: #{tpu_custom_call.1} parent=5 // pred_check
        %p4672 = pneg %p4671
      $region54: #{tpu_custom_call.1} parent=5 // pred_check_branch
        %4674 = sbr.rel (%p4672) target = $region56
      $region55: #{tpu_custom_call.1} parent=5 // pred_region
        %s4675 = ssub.s32 %s20, 2
        // Predicated region
        $region57: #{tpu_custom_call.1} parent=55 // pred_check
          %p4676 = pneg %p208
        $region58: #{tpu_custom_call.1} parent=55 // pred_check_branch
          %4678 = sbr.rel (%p4676) target = $region60
        $region59: #{tpu_custom_call.1} parent=55 // pred_region
          %s4679 = sand.u32 %s193, 1
          %s4680 = scalar_lea.sflag [#allocation3], %s4679
          %s4681 = sand.u32 %s193, 1
          %s4682 = smul.addr %s4681, 8
          %s4683 = scalar_lea.vmem [#allocation2], %s4682
          %4684 = dma.done %s4680, 128
        $region60: #{tpu_custom_call.1} parent=55 // pred_fallthru
          _
        // Predicated region
        $region61: #{tpu_custom_call.1} parent=55 // pred_check
          %p4685 = pneg %p236
        $region62: #{tpu_custom_call.1} parent=55 // pred_check_branch
          %4687 = sbr.rel (%p4685) target = $region64
        $region63: #{tpu_custom_call.1} parent=55 // pred_region
          %s4688 = sand.u32 %s221, 1
          %s4689 = scalar_lea.sflag [#allocation5], %s4688
          %s4690 = sand.u32 %s221, 1
          %s4691 = smul.addr %s4690, 32
          %s4692 = scalar_lea.vmem [#allocation4], %s4691
          %4693 = dma.done %s4689, 512
        $region64: #{tpu_custom_call.1} parent=55 // pred_fallthru
          _
      $region56: #{tpu_custom_call.1} parent=5 // pred_fallthru
        _
    $region6: #{tpu_custom_call.1} parent=1 // loop_footer
      %s24 = sadd.s32 1, %s20
    $region7: #{tpu_custom_call.1} parent=1 // loop_footer_branch
      %19 = sbr.rel target = $region3
    $region8: #{tpu_custom_call.1} parent=1 // loop_exit
      _
    %4694 = vsyncpa [#allocation3], 1
    %s4695 = scalar_lea.sflag [#allocation3], 1
    %4696 = vsyncpa %s4695, 1
    %4697 = vsyncpa [#allocation5], 1
    %s4698 = scalar_lea.sflag [#allocation5], 1
    %4699 = vsyncpa %s4698, 1

</llo_original>
